<compile_context>
chip_gen: v7x
topology: tpu7x:2x2x1
jax: 0.10.0
libtpu: 0.0.40
codegen_flags: <defaults>
</compile_context>

<pallas_src>
import functools

import jax
import jax.numpy as jnp
import numpy as np
from jax.experimental import pallas as pl
from jax.experimental.pallas import tpu as pltpu


def _head_attention_kernel(x_ref, wqkv_ref, wout_ref, bout_ref, o_ref,
                           *, batch, heads, dim_head, seq_len, dim):
    # x_ref    : (B*N, D)      f32   whole (flattened) batch
    # wqkv_ref : (D, 3*inner)  bf16  (transposed; Q cols pre-scaled by dim_head**-0.5)
    # wout_ref : (D, inner)    bf16  (native PyTorch layout -> lane-dense, inner=128)
    # bout_ref : (1, D)        f32
    # o_ref    : (B*N, D)      f32
    B, N, H, Dh, D = batch, seq_len, heads, dim_head, dim
    inner = H * Dh
    G = H * B                                                     # folded (head, batch) axis

    x = x_ref[...].astype(jnp.bfloat16)                           # (B*N, D)

    # QKV projection: one MXU matmul, f32 accumulation (scale folded into W_q).
    qkv = jnp.dot(x, wqkv_ref[...],
                  preferred_element_type=jnp.float32)             # (B*N, 3*inner) f32

    # Single relayout for the head split (cast once, before the relayout).
    # (B*N, 3*inner) -> (B*N, 3*H, Dh) -> (3*H, B*N, Dh) -> (3, G=H*B, N, Dh)
    # Group index g = h*B + b (the trailing reshapes are pure, row-major).
    qkv_heads = (qkv.astype(jnp.bfloat16)
                 .reshape(B * N, 3 * H, Dh)
                 .swapaxes(0, 1)
                 .reshape(3, G, N, Dh))
    q = qkv_heads[0]                                               # (G, N, Dh) bf16
    k = qkv_heads[1]
    v = qkv_heads[2]

    # Batched attention over (head, batch): contract Dh, no explicit K transpose.
    sim = jnp.einsum('gid,gjd->gij', q, k,
                     preferred_element_type=jnp.float32)           # (G, N, N) f32

    # Softmax in f32; denominator via approx reciprocal on the EUP.
    sim_max = jnp.max(sim, axis=-1, keepdims=True)
    p = jnp.exp(sim - sim_max)
    denom = jnp.sum(p, axis=-1, keepdims=True)
    attn = p * pl.reciprocal(denom, approx=True)
    # dropout(p=0.0) in eval mode == identity

    ctx = jnp.einsum('gij,gjd->gid', attn.astype(jnp.bfloat16), v,
                     preferred_element_type=jnp.float32)           # (G, N, Dh) f32

    # Merge heads back with one relayout: (G=h*B+b, N, Dh) -> (B*N, inner) == 'b n (h d)'.
    ctx = (ctx.astype(jnp.bfloat16)
           .reshape(H, B * N, Dh)
           .swapaxes(0, 1)
           .reshape(B * N, inner))                                 # (B*N, inner) bf16

    # Output projection: contract last dims so W_out stays lane-dense (D, inner).
    out = jax.lax.dot_general(ctx, wout_ref[...],
                              dimension_numbers=(((1,), (1,)), ((), ())),
                              preferred_element_type=jnp.float32)  # (B*N, D) f32
    out = out + bout_ref[...]                                      # + (1, D)

    o_ref[...] = out.astype(o_ref.dtype)


def head_attention(x, w_qkv, w_out, b_out, *, heads, dim_head):
    """x: (B, N, D); w_qkv: (3*H*Dh, D); w_out: (D, H*Dh); b_out: (D,)  [PyTorch layouts]."""
    B, N, D = x.shape
    inner = heads * dim_head
    scale = float(dim_head) ** -0.5

    # One-time weight prep (plain XLA, outside the kernel):
    #  - transpose W_qkv to (D, 3*inner) so the projection is a row-major matmul,
    #  - fold the attention scale into the Q columns,
    #  - cast matmul operands to bf16 (f32 accumulation happens in-kernel).
    wqkv_t = jnp.asarray(w_qkv).T                                  # (D, 3*inner)
    q_scale = jnp.concatenate([
        jnp.full((inner,), scale, dtype=wqkv_t.dtype),
        jnp.ones((2 * inner,), dtype=wqkv_t.dtype)])
    wqkv_t = (wqkv_t * q_scale[None, :]).astype(jnp.bfloat16)      # (D, 3*inner) bf16
    wout = jnp.asarray(w_out).astype(jnp.bfloat16)                 # (D, inner)   bf16, lane-dense
    bout2d = jnp.asarray(b_out).reshape(1, D).astype(jnp.float32)

    x_flat = x.reshape(B * N, D)                                   # free, contiguous reshape

    kernel = functools.partial(_head_attention_kernel, batch=B, heads=heads,
                               dim_head=dim_head, seq_len=N, dim=D)

    # Single grid step: the whole problem fits comfortably in VMEM (~40 KB),
    # and at these shapes per-step overhead dominates, so one fused step wins
    # on v5e/v6e; on v7x a grid=(B,) 2-TC split could be benchmarked against
    # this, but each core would pay its own launch/DMA cost on a tiny kernel.
    out_flat = pl.pallas_call(
        kernel,
        out_shape=jax.ShapeDtypeStruct((B * N, D), x.dtype),
        grid=(1,),
        in_specs=[
            pl.BlockSpec((B * N, D), lambda i: (0, 0)),
            pl.BlockSpec((D, 3 * inner), lambda i: (0, 0)),
            pl.BlockSpec((D, inner), lambda i: (0, 0)),
            pl.BlockSpec((1, D), lambda i: (0, 0)),
        ],
        out_specs=pl.BlockSpec((B * N, D), lambda i: (0, 0)),
    )(x_flat, wqkv_t, wout, bout2d)

    return out_flat.reshape(B, N, D)


def _reference(x, w_qkv, w_out, b_out, *, heads, dim_head):
    B, N, D = x.shape
    inner = heads * dim_head
    scale = dim_head ** -0.5
    qkv = jnp.einsum("bnd,ed->bne", x, w_qkv)                      # (B, N, 3*inner)
    q, k, v = jnp.split(qkv, 3, axis=-1)

    def split_heads(t):
        return t.reshape(B, N, heads, dim_head).transpose(0, 2, 1, 3)

    q, k, v = map(split_heads, (q, k, v))
    sim = jnp.einsum("bhid,bhjd->bhij", q, k) * scale
    attn = jax.nn.softmax(sim, axis=-1)
    out = jnp.einsum("bhij,bhjd->bhid", attn, v)
    out = out.transpose(0, 2, 1, 3).reshape(B, N, inner)
    return jnp.einsum("bne,de->bnd", out, w_out) + b_out


if __name__ == "__main__":
    # Module hyper-params (matching nn.Module defaults: heads=8, dim_head=16).
    dim, heads, dim_head = 32, 8, 16
    inner_dim = heads * dim_head
    B, N = 2, 8

    key = jax.random.PRNGKey(0)
    kx, kq, kw, kb = jax.random.split(key, 4)

    x = jax.random.normal(kx, (B, N, dim), dtype=jnp.float32)
    # Deterministic synthetic parameters (PyTorch Linear weight layout: (out, in)).
    w_qkv = jax.random.normal(kq, (inner_dim * 3, dim), dtype=jnp.float32) * 0.05
    w_out = jax.random.normal(kw, (dim, inner_dim), dtype=jnp.float32) * 0.05
    b_out = jax.random.normal(kb, (dim,), dtype=jnp.float32) * 0.05

    out = head_attention(x, w_qkv, w_out, b_out, heads=heads, dim_head=dim_head)
    out = jax.block_until_ready(out)

    ref = _reference(x, w_qkv, w_out, b_out, heads=heads, dim_head=dim_head)
    # bf16 MXU operands with f32 accumulation + approx reciprocal softmax
    # -> relaxed tolerance vs the f32 reference.
    np.testing.assert_allclose(np.asarray(out), np.asarray(ref), atol=2e-2, rtol=2e-2)

    print("KERNEL_OK")
</pallas_src>

<mosaic_0001>
module attributes {stable_mosaic.version = 11 : i64} {
  func.func @_head_attention_kernel(%arg0: i32, %arg1: memref<16x32xf32, #tpu.memory_space<vmem>>, %arg2: memref<32x384xbf16, #tpu.memory_space<vmem>>, %arg3: memref<32x128xbf16, #tpu.memory_space<vmem>>, %arg4: memref<1x32xf32, #tpu.memory_space<vmem>>, %arg5: memref<16x32xf32, #tpu.memory_space<vmem>>) attributes {dimension_semantics = [#tpu.dimension_semantics<arbitrary>], iteration_bounds = array<i64: 1>, scalar_prefetch = 0 : i64, scratch_operands = 0 : i64, tpu.core_type = #tpu.core_type<tc>, window_params = [{pipeline_mode = #tpu.pipeline_mode<synchronous>, transform_indices = @transform_0, window_bounds = array<i64: 16, 32>}, {pipeline_mode = #tpu.pipeline_mode<synchronous>, transform_indices = @transform_1, window_bounds = array<i64: 32, 384>}, {pipeline_mode = #tpu.pipeline_mode<synchronous>, transform_indices = @transform_2, window_bounds = array<i64: 32, 128>}, {pipeline_mode = #tpu.pipeline_mode<synchronous>, transform_indices = @transform_3, window_bounds = array<i64: 1, 32>}, {pipeline_mode = #tpu.pipeline_mode<synchronous>, transform_indices = @transform_4, window_bounds = array<i64: 16, 32>}]} {
    %c0 = arith.constant 0 : index
    %c0_0 = arith.constant 0 : index
    %0 = vector.load %arg1[%c0, %c0_0] : memref<16x32xf32, #tpu.memory_space<vmem>>, vector<16x32xf32>
    %1 = arith.truncf %0 : vector<16x32xf32> to vector<16x32xbf16>
    %c0_1 = arith.constant 0 : index
    %c0_2 = arith.constant 0 : index
    %2 = vector.load %arg2[%c0_1, %c0_2] : memref<32x384xbf16, #tpu.memory_space<vmem>>, vector<32x384xbf16>
    %cst = arith.constant dense<0.000000e+00> : vector<16x384xf32>
    %3 = tpu.matmul %1, %2, %cst {dimension_numbers = #tpu.dot_dimension_numbers<[1], [0], [0], [1], [0, 0, 1, 1], [], []>} : vector<16x32xbf16>, vector<32x384xbf16>, vector<16x384xf32> -> vector<16x384xf32>
    %4 = arith.truncf %3 : vector<16x384xf32> to vector<16x384xbf16>
    %5 = vector.shape_cast %4 : vector<16x384xbf16> to vector<16x24x16xbf16>
    %6 = tpu.transpose %5, [1, 0, 2] : vector<16x24x16xbf16> -> vector<24x16x16xbf16>
    %7 = vector.shape_cast %6 : vector<24x16x16xbf16> to vector<3x16x8x16xbf16>
    %8 = vector.extract_strided_slice %7 {offsets = [0, 0, 0, 0], sizes = [1, 16, 8, 16], strides = [1, 1, 1, 1]} : vector<3x16x8x16xbf16> to vector<1x16x8x16xbf16>
    %9 = vector.shape_cast %8 : vector<1x16x8x16xbf16> to vector<16x8x16xbf16>
    %10 = vector.extract_strided_slice %7 {offsets = [1, 0, 0, 0], sizes = [1, 16, 8, 16], strides = [1, 1, 1, 1]} : vector<3x16x8x16xbf16> to vector<1x16x8x16xbf16>
    %11 = vector.shape_cast %10 : vector<1x16x8x16xbf16> to vector<16x8x16xbf16>
    %12 = vector.extract_strided_slice %7 {offsets = [2, 0, 0, 0], sizes = [1, 16, 8, 16], strides = [1, 1, 1, 1]} : vector<3x16x8x16xbf16> to vector<1x16x8x16xbf16>
    %13 = vector.shape_cast %12 : vector<1x16x8x16xbf16> to vector<16x8x16xbf16>
    "tpu.trace_start"() <{level = 10 : i32, message = "gid,gjd->gij"}> : () -> ()
    %cst_3 = arith.constant dense<0.000000e+00> : vector<16x8x8xf32>
    %14 = tpu.matmul %9, %11, %cst_3 {dimension_numbers = #tpu.dot_dimension_numbers<[2], [2], [1], [1], [0, 0, 0, 1, 1, 1], [0], [0]>} : vector<16x8x16xbf16>, vector<16x8x16xbf16>, vector<16x8x8xf32> -> vector<16x8x8xf32>
    "tpu.trace_stop"() : () -> ()
    %cst_4 = arith.constant dense<0xFF800000> : vector<16x8xf32>
    %15 = vector.multi_reduction <maximumf>, %14, %cst_4 [2] : vector<16x8x8xf32> to vector<16x8xf32>
    %16 = vector.shape_cast %15 : vector<16x8xf32> to vector<16x8x1xf32>
    %17 = vector.broadcast %16 : vector<16x8x1xf32> to vector<16x8x8xf32>
    %18 = arith.subf %14, %17 : vector<16x8x8xf32>
    %19 = math.exp %18 : vector<16x8x8xf32>
    %cst_5 = arith.constant dense<0.000000e+00> : vector<16x8xf32>
    %20 = vector.multi_reduction <add>, %19, %cst_5 [2] : vector<16x8x8xf32> to vector<16x8xf32>
    %21 = vector.shape_cast %20 : vector<16x8xf32> to vector<16x8x1xf32>
    %22 = tpu.reciprocal %21 {approx = true} : vector<16x8x1xf32> -> vector<16x8x1xf32>
    %23 = vector.broadcast %22 : vector<16x8x1xf32> to vector<16x8x8xf32>
    %24 = arith.mulf %19, %23 : vector<16x8x8xf32>
    %25 = arith.truncf %24 : vector<16x8x8xf32> to vector<16x8x8xbf16>
    "tpu.trace_start"() <{level = 10 : i32, message = "gij,gjd->gid"}> : () -> ()
    %cst_6 = arith.constant dense<0.000000e+00> : vector<16x8x16xf32>
    %26 = tpu.matmul %25, %13, %cst_6 {dimension_numbers = #tpu.dot_dimension_numbers<[2], [1], [1], [2], [0, 0, 0, 1, 1, 2], [0], [0]>} : vector<16x8x8xbf16>, vector<16x8x16xbf16>, vector<16x8x16xf32> -> vector<16x8x16xf32>
    "tpu.trace_stop"() : () -> ()
    %27 = arith.truncf %26 : vector<16x8x16xf32> to vector<16x8x16xbf16>
    %28 = vector.shape_cast %27 : vector<16x8x16xbf16> to vector<8x16x16xbf16>
    %29 = tpu.transpose %28, [1, 0, 2] : vector<8x16x16xbf16> -> vector<16x8x16xbf16>
    %30 = vector.shape_cast %29 : vector<16x8x16xbf16> to vector<16x128xbf16>
    %c0_7 = arith.constant 0 : index
    %c0_8 = arith.constant 0 : index
    %31 = vector.load %arg3[%c0_7, %c0_8] : memref<32x128xbf16, #tpu.memory_space<vmem>>, vector<32x128xbf16>
    %cst_9 = arith.constant dense<0.000000e+00> : vector<16x32xf32>
    %32 = tpu.matmul %30, %31, %cst_9 {dimension_numbers = #tpu.dot_dimension_numbers<[1], [1], [0], [0], [0, 0, 1, 0], [], []>} : vector<16x128xbf16>, vector<32x128xbf16>, vector<16x32xf32> -> vector<16x32xf32>
    %c0_10 = arith.constant 0 : index
    %c0_11 = arith.constant 0 : index
    %33 = vector.load %arg4[%c0_10, %c0_11] : memref<1x32xf32, #tpu.memory_space<vmem>>, vector<1x32xf32>
    %34 = vector.broadcast %33 : vector<1x32xf32> to vector<16x32xf32>
    %35 = arith.addf %32, %34 : vector<16x32xf32>
    %c0_12 = arith.constant 0 : index
    %c0_13 = arith.constant 0 : index
    %36 = vector.load %arg5[%c0_12, %c0_13] : memref<16x32xf32, #tpu.memory_space<vmem>>, vector<16x32xf32>
    tpu.vector_store %arg5[%c0_12, %c0_13], %35 {strides = array<i32>} : memref<16x32xf32, #tpu.memory_space<vmem>>, vector<16x32xf32>,
    return
  }
  func.func @transform_0(%arg0: i32) -> (i32, i32) {
    %c0_i32 = arith.constant 0 : i32
    %c0_i32_0 = arith.constant 0 : i32
    %c0_i32_1 = arith.constant 0 : i32
    return %c0_i32, %c0_i32_0 : i32, i32
  }
  func.func @transform_1(%arg0: i32) -> (i32, i32) {
    %c0_i32 = arith.constant 0 : i32
    %c0_i32_0 = arith.constant 0 : i32
    %c0_i32_1 = arith.constant 0 : i32
    return %c0_i32, %c0_i32_0 : i32, i32
  }
  func.func @transform_2(%arg0: i32) -> (i32, i32) {
    %c0_i32 = arith.constant 0 : i32
    %c0_i32_0 = arith.constant 0 : i32
    %c0_i32_1 = arith.constant 0 : i32
    return %c0_i32, %c0_i32_0 : i32, i32
  }
  func.func @transform_3(%arg0: i32) -> (i32, i32) {
    %c0_i32 = arith.constant 0 : i32
    %c0_i32_0 = arith.constant 0 : i32
    %c0_i32_1 = arith.constant 0 : i32
    return %c0_i32, %c0_i32_0 : i32, i32
  }
  func.func @transform_4(%arg0: i32) -> (i32, i32) {
    %c0_i32 = arith.constant 0 : i32
    %c0_i32_0 = arith.constant 0 : i32
    %c0_i32_1 = arith.constant 0 : i32
    return %c0_i32, %c0_i32_0 : i32, i32
  }
}

</mosaic_0001>

<llo_original>
// kernel: tpu_custom_call.1
$region0: #{tpu_custom_call.1}
  #allocation0 [shape = 'u32[]', space=smem, size = 0x4, offset = 0x4, fixed_abs, tag = 'smem constant byte address 0x4 - core index']
  #allocation1 [shape = 'u32[144,128]{1,0:T(1,128)}', space=vmem, size = 0x12000, scoped, tag = 'internal scratch']
  %s0 = inlined_call_operand.hbm [shape: f32[16,32], index: 0, kind: input, shape index: {}]
  %s1 = inlined_call_operand.hbm [shape: bf16[32,384], index: 1, kind: input, shape index: {}]
  %s2 = inlined_call_operand.hbm [shape: bf16[32,128], index: 2, kind: input, shape index: {}]
  %s3 = inlined_call_operand.vmem [shape: f32[1,32], index: 3, kind: input, shape index: {}]
  %s4 = inlined_call_operand.hbm [shape: f32[16,32], index: 4, kind: output, shape index: {}]
  %s5 = sld [smem:[#allocation0]]
  $region38: #{tpu_custom_call.1} parent=0
    _
  %s7 = ssub.s32 1, %s5
  %s8 = scalar_select 0, %s7, %s5
  $region1: #{tpu_custom_call.1} parent=0
    #allocation2 [shape = 'u8[8192]{0}', space=vmem, size = 0x2000, scoped, tag = 'input window, operand 0, single buffered']
    #allocation3 [shape = 's32[1]{0}', space=sflag, size = 0x4, scoped, tag = 'scoped memory for tpu_custom_call.1']
    #allocation4 [shape = 's32[1]{0}', space=sflag, size = 0x4, scoped, tag = 'scoped memory for tpu_custom_call.1']
    #allocation5 [shape = 'u8[24576]{0}', space=vmem, size = 0x6000, scoped, tag = 'input window, operand 1, single buffered']
    #allocation6 [shape = 's32[1]{0}', space=sflag, size = 0x4, scoped, tag = 'scoped memory for tpu_custom_call.1']
    #allocation7 [shape = 'u8[8192]{0}', space=vmem, size = 0x2000, scoped, tag = 'input window, operand 2, single buffered']
    #allocation8 [shape = 'u8[8192]{0}', space=vmem, size = 0x2000, scoped, tag = 'output window, operand 0, single buffered']
    %9 = vsyncpa [#allocation3], 0
    %10 = vsyncpa [#allocation6], 0
    %11 = vsyncpa [#allocation4], 0
    // Predicated region
    $region2: #{tpu_custom_call.1} parent=1 // pred_check
      _
    $region3: #{tpu_custom_call.1} parent=1 // pred_check_branch
      %13 = sbr.rel (0) target = $region5
    $region4: #{tpu_custom_call.1} parent=1 // pred_region
      %s15 = ssub.s32 256, 256
      %16 = vsyncadd [#allocation3], %s15
      %s17 = sshll.u32 [#allocation2], 4
      %s18 = int_to_ptr.vmem [resolvable:$true] %s17
      %23 = dma.hbm_to_vmem [thread:$0]  %s0, 256, %s18, [#allocation3], 128, 128, 8
    $region5: #{tpu_custom_call.1} parent=1 // pred_fallthru
      _
    // Predicated region
    $region6: #{tpu_custom_call.1} parent=1 // pred_check
      _
    $region7: #{tpu_custom_call.1} parent=1 // pred_check_branch
      %25 = sbr.rel (0) target = $region9
    $region8: #{tpu_custom_call.1} parent=1 // pred_region
      %s27 = ssub.s32 768, 768
      %28 = vsyncadd [#allocation6], %s27
      %s29 = sshll.u32 [#allocation5], 4
      %s30 = int_to_ptr.vmem [resolvable:$true] %s29
      %35 = dma.hbm_to_vmem [thread:$0]  %s1, 768, %s30, [#allocation6], 192, 192, 12
    $region9: #{tpu_custom_call.1} parent=1 // pred_fallthru
      _
    // Predicated region
    $region10: #{tpu_custom_call.1} parent=1 // pred_check
      _
    $region11: #{tpu_custom_call.1} parent=1 // pred_check_branch
      %37 = sbr.rel (0) target = $region13
    $region12: #{tpu_custom_call.1} parent=1 // pred_region
      %s39 = ssub.s32 256, 256
      %40 = vsyncadd [#allocation6], %s39
      %s41 = sshll.u32 [#allocation7], 4
      %s42 = int_to_ptr.vmem [resolvable:$true] %s41
      %47 = dma.hbm_to_vmem [thread:$0]  %s2, 256, %s42, [#allocation6], 64, 64, 4
    $region13: #{tpu_custom_call.1} parent=1 // pred_fallthru
      _
    // Predicated region
    $region14: #{tpu_custom_call.1} parent=1 // pred_check
      _
    $region15: #{tpu_custom_call.1} parent=1 // pred_check_branch
      %49 = sbr.rel (0) target = $region17
    $region16: #{tpu_custom_call.1} parent=1 // pred_region
      _
    $region17: #{tpu_custom_call.1} parent=1 // pred_fallthru
      _
    // Predicated region
    $region18: #{tpu_custom_call.1} parent=1 // pred_check
      _
    $region19: #{tpu_custom_call.1} parent=1 // pred_check_branch
      %51 = sbr.rel (0) target = $region21
    $region20: #{tpu_custom_call.1} parent=1 // pred_region
      %52 = dma.done [#allocation3], 256
    $region21: #{tpu_custom_call.1} parent=1 // pred_fallthru
      _
    // Predicated region
    $region22: #{tpu_custom_call.1} parent=1 // pred_check
      _
    $region23: #{tpu_custom_call.1} parent=1 // pred_check_branch
      %54 = sbr.rel (0) target = $region25
    $region24: #{tpu_custom_call.1} parent=1 // pred_region
      %55 = dma.done [#allocation6], 768
    $region25: #{tpu_custom_call.1} parent=1 // pred_fallthru
      _
    // Predicated region
    $region26: #{tpu_custom_call.1} parent=1 // pred_check
      _
    $region27: #{tpu_custom_call.1} parent=1 // pred_check_branch
      %57 = sbr.rel (0) target = $region29
    $region28: #{tpu_custom_call.1} parent=1 // pred_region
      %58 = dma.done [#allocation6], 256
    $region29: #{tpu_custom_call.1} parent=1 // pred_fallthru
      _
    %v60 = vld [vmem:[#allocation2] sm:$0xff]
    %v61 = vld [vmem:[#allocation2 + $0x8] sm:$0xff]
    %v62 = vpack.c.bf16 %v61, %v60
    %v63 = vld [vmem:[#allocation5] sm:$0xff]
    %v64 = vld [vmem:[#allocation5 + $0x8] sm:$0xf]
    %v65 = vld [vmem:[#allocation5 + $0xc] sm:$0xff]
    %v66 = vld [vmem:[#allocation5 + $0x14] sm:$0xf]
    %v67 = vld [vmem:[#allocation5 + $0x18] sm:$0xff]
    %v68 = vld [vmem:[#allocation5 + $0x20] sm:$0xf]
    %v69 = vld [vmem:[#allocation5 + $0x24] sm:$0xff]
    %v70 = vld [vmem:[#allocation5 + $0x2c] sm:$0xf]
    %v79 = vunpack.c.l.b16 %v63
    %v80 = vunpack.c.h.b16 %v63
    %v81 = vunpack.c.l.b16 %v64
    %v82 = vunpack.c.l.b16 %v65
    %v83 = vunpack.c.h.b16 %v65
    %v84 = vunpack.c.l.b16 %v66
    %v85 = vunpack.c.l.b16 %v67
    %v86 = vunpack.c.h.b16 %v67
    %v87 = vunpack.c.l.b16 %v68
    %v88 = vunpack.c.l.b16 %v69
    %v89 = vunpack.c.h.b16 %v69
    %v90 = vunpack.c.l.b16 %v70
    %v91 = vpack.c.b16 %v82, %v79
    %v92 = vpack.c.b16 %v83, %v80
    %v93 = vpack.c.b16 %v84, %v81
    %v94 = vpack.c.b16 %v88, %v85
    %v95 = vpack.c.b16 %v89, %v86
    %v96 = vpack.c.b16 %v90, %v87
    %vm103 = vcmask 261120
    %v105 = vsel %vm103, %v62, 0
    %107 = vmatprep.subr.bf16.mxu0 %v92
    %108 = vmatpush1.bf16.msra.mxu0 %v91
    %109 = vmatprep.subr.bf16.mxu0 %v95
    %110 = vmatpush1.bf16.msra.mxu0 %v94
    %111 = vmatprep.subr.bf16.mxu0 0
    %112 = vmatpush1.bf16.msra.mxu0 0
    %113 = vmatprep.subr.bf16.mxu0 0
    %114 = vmatpush1.bf16.msra.mxu0 0
    %115 = vmatprep.subr.bf16.mxu0 0
    %116 = vmatpush1.bf16.msra.mxu0 0
    %117 = vmatprep.subr.bf16.mxu0 0
    %118 = vmatpush1.bf16.msra.mxu0 0
    %119 = vmatprep.subr.bf16.mxu0 0
    %120 = vmatpush1.bf16.msra.mxu0 0
    %121 = vmatprep.subr.bf16.mxu0 0
    %122 = vmatpush1.bf16.msra.mxu0 0
    %123 = vmatprep.subr.bf16.mxu0 0
    %124 = vmatpush1.bf16.msra.mxu0 0
    %125 = vmatprep.subr.bf16.mxu0 0
    %126 = vmatpush1.bf16.msra.mxu0 0
    %127 = vmatprep.subr.bf16.mxu0 0
    %128 = vmatpush1.bf16.msra.mxu0 0
    %129 = vmatprep.subr.bf16.mxu0 0
    %130 = vmatpush1.bf16.msra.mxu0 0
    %131 = vmatprep.subr.bf16.mxu0 0
    %132 = vmatpush1.bf16.msra.mxu0 0
    %133 = vmatprep.subr.bf16.mxu0 0
    %134 = vmatpush1.bf16.msra.mxu0 0
    %135 = vmatprep.subr.bf16.mxu0 0
    %136 = vmatpush1.bf16.msra.mxu0 0
    %137 = vmatprep.subr.bf16.mxu0 0
    %138 = vmatpush1.bf16.msra.mxu0 0
    %139 = vmatprep.mubr.bf16.mxu0 0
    %140 = vmatmul.mubr.bf16.gmra.mrb[0].mxu0 %v105
    %v141 = vpop.f32.mrb[0].mxu0
    %v142 = vadd.f32 0.0, %v141
    %v143 = vpop.f32.mrb[0].mxu0
    %v144 = vadd.f32 0.0, %v143
    %v145 = vpop.f32.mrb[0].mxu0
    %v146 = vadd.f32 0.0, %v145
    %v147 = vpop.f32.mrb[0].mxu0
    %v148 = vadd.f32 0.0, %v147
    %149 = vdwg.mxu0
    %150 = vmatprep.subr.bf16.mxu0 0
    %151 = vmatpush1.bf16.msra.mxu0 %v93
    %152 = vmatprep.subr.bf16.mxu0 0
    %153 = vmatpush1.bf16.msra.mxu0 %v96
    %154 = vmatprep.subr.bf16.mxu0 0
    %155 = vmatpush1.bf16.msra.mxu0 0
    %156 = vmatprep.subr.bf16.mxu0 0
    %157 = vmatpush1.bf16.msra.mxu0 0
    %158 = vmatprep.subr.bf16.mxu0 0
    %159 = vmatpush1.bf16.msra.mxu0 0
    %160 = vmatprep.subr.bf16.mxu0 0
    %161 = vmatpush1.bf16.msra.mxu0 0
    %162 = vmatprep.subr.bf16.mxu0 0
    %163 = vmatpush1.bf16.msra.mxu0 0
    %164 = vmatprep.subr.bf16.mxu0 0
    %165 = vmatpush1.bf16.msra.mxu0 0
    %166 = vmatprep.subr.bf16.mxu0 0
    %167 = vmatpush1.bf16.msra.mxu0 0
    %168 = vmatprep.subr.bf16.mxu0 0
    %169 = vmatpush1.bf16.msra.mxu0 0
    %170 = vmatprep.subr.bf16.mxu0 0
    %171 = vmatpush1.bf16.msra.mxu0 0
    %172 = vmatprep.subr.bf16.mxu0 0
    %173 = vmatpush1.bf16.msra.mxu0 0
    %174 = vmatprep.subr.bf16.mxu0 0
    %175 = vmatpush1.bf16.msra.mxu0 0
    %176 = vmatprep.subr.bf16.mxu0 0
    %177 = vmatpush1.bf16.msra.mxu0 0
    %178 = vmatprep.subr.bf16.mxu0 0
    %179 = vmatpush1.bf16.msra.mxu0 0
    %180 = vmatprep.subr.bf16.mxu0 0
    %181 = vmatpush1.bf16.msra.mxu0 0
    %182 = vmatprep.mubr.bf16.mxu0 0
    %183 = vmatmul.mubr.bf16.gmra.mrb[0].mxu0 %v105
    %v184 = vpop.f32.mrb[0].mxu0
    %v185 = vadd.f32 0.0, %v184
    %v186 = vpop.f32.mrb[0].mxu0
    %v187 = vpop.f32.mrb[0].mxu0
    %v188 = vadd.f32 0.0, %v187
    %v189 = vpop.f32.mrb[0].mxu0
    %190 = vdwg.mxu0
    %v191 = vpack.c.bf16 %v146, %v142
    %v192 = vpack.c.bf16 %v148, %v144
    %v193 = vpack.c.bf16 %v188, %v185
    %195 = vrot.lane.b32.xlu0 %v191, 112
    %v196 = vpop.permute.xlu0 %195
    %197 = vrot.lane.b32.xlu0 %v191, 96
    %v198 = vpop.permute.xlu0 %197
    %199 = vrot.lane.b32.xlu0 %v191, 80
    %v200 = vpop.permute.xlu0 %199
    %201 = vrot.lane.b32.xlu0 %v191, 64
    %v202 = vpop.permute.xlu0 %201
    %203 = vrot.lane.b32.xlu0 %v191, 48
    %v204 = vpop.permute.xlu0 %203
    %205 = vrot.lane.b32.xlu0 %v191, 32
    %v206 = vpop.permute.xlu0 %205
    %207 = vrot.lane.b32.xlu0 %v191, 16
    %v208 = vpop.permute.xlu0 %207
    %210 = vrot.lane.b32.xlu0 %v192, 112
    %v211 = vpop.permute.xlu0 %210
    %212 = vrot.lane.b32.xlu0 %v192, 96
    %v213 = vpop.permute.xlu0 %212
    %214 = vrot.lane.b32.xlu0 %v192, 80
    %v215 = vpop.permute.xlu0 %214
    %216 = vrot.lane.b32.xlu0 %v192, 64
    %v217 = vpop.permute.xlu0 %216
    %218 = vrot.lane.b32.xlu0 %v192, 48
    %v219 = vpop.permute.xlu0 %218
    %220 = vrot.lane.b32.xlu0 %v192, 32
    %v221 = vpop.permute.xlu0 %220
    %222 = vrot.lane.b32.xlu0 %v192, 16
    %v223 = vpop.permute.xlu0 %222
    %225 = vrot.lane.b32.xlu0 %v193, 112
    %v226 = vpop.permute.xlu0 %225
    %227 = vrot.lane.b32.xlu0 %v193, 96
    %v228 = vpop.permute.xlu0 %227
    %229 = vrot.lane.b32.xlu0 %v193, 80
    %v230 = vpop.permute.xlu0 %229
    %231 = vrot.lane.b32.xlu0 %v193, 64
    %v232 = vpop.permute.xlu0 %231
    %233 = vrot.lane.b32.xlu0 %v193, 48
    %v234 = vpop.permute.xlu0 %233
    %235 = vrot.lane.b32.xlu0 %v193, 32
    %v236 = vpop.permute.xlu0 %235
    %237 = vrot.lane.b32.xlu0 %v193, 16
    %v238 = vpop.permute.xlu0 %237
    %v241 = vpack.i.b16 %v196, %v191
    %v243 = vshrl.u32 %v191, 16
    %v244 = vshrl.u32 %v196, 16
    %v245 = vpack.i.b16 %v244, %v243
    %v249 = vpack.i.b16 %v200, %v198
    %v251 = vshrl.u32 %v198, 16
    %v252 = vshrl.u32 %v200, 16
    %v253 = vpack.i.b16 %v252, %v251
    %v257 = vpack.i.b16 %v204, %v202
    %v259 = vshrl.u32 %v202, 16
    %v260 = vshrl.u32 %v204, 16
    %v261 = vpack.i.b16 %v260, %v259
    %v265 = vpack.i.b16 %v208, %v206
    %v267 = vshrl.u32 %v206, 16
    %v268 = vshrl.u32 %v208, 16
    %v269 = vpack.i.b16 %v268, %v267
    %v273 = vpack.i.b16 %v211, %v192
    %v275 = vshrl.u32 %v192, 16
    %v276 = vshrl.u32 %v211, 16
    %v277 = vpack.i.b16 %v276, %v275
    %v281 = vpack.i.b16 %v215, %v213
    %v283 = vshrl.u32 %v213, 16
    %v284 = vshrl.u32 %v215, 16
    %v285 = vpack.i.b16 %v284, %v283
    %v289 = vpack.i.b16 %v219, %v217
    %v291 = vshrl.u32 %v217, 16
    %v292 = vshrl.u32 %v219, 16
    %v293 = vpack.i.b16 %v292, %v291
    %v297 = vpack.i.b16 %v223, %v221
    %v299 = vshrl.u32 %v221, 16
    %v300 = vshrl.u32 %v223, 16
    %v301 = vpack.i.b16 %v300, %v299
    %v305 = vpack.i.b16 %v226, %v193
    %v307 = vshrl.u32 %v193, 16
    %v308 = vshrl.u32 %v226, 16
    %v309 = vpack.i.b16 %v308, %v307
    %v313 = vpack.i.b16 %v230, %v228
    %v315 = vshrl.u32 %v228, 16
    %v316 = vshrl.u32 %v230, 16
    %v317 = vpack.i.b16 %v316, %v315
    %v321 = vpack.i.b16 %v234, %v232
    %v323 = vshrl.u32 %v232, 16
    %v324 = vshrl.u32 %v234, 16
    %v325 = vpack.i.b16 %v324, %v323
    %v329 = vpack.i.b16 %v238, %v236
    %v331 = vshrl.u32 %v236, 16
    %v332 = vshrl.u32 %v238, 16
    %v333 = vpack.i.b16 %v332, %v331
    %v335 = vcombine.low %v241, %v257
    %v336 = vcombine.high %v241, %v257
    %v338 = vunpack.c.l.s4 1983009808
    %v339 = vunpack.c.0.s8 %v338
    %v340 = vlaneseq
    %v341 = vshrl.u32 %v340, 7
    %v342 = vsub.s32 %v339, %v341
    %v343 = vrot.slane %v335, %v342
    %v345 = vunpack.c.l.s4 1983009808
    %v346 = vunpack.c.0.s8 %v345
    %v347 = vlaneseq
    %v348 = vshrl.u32 %v347, 7
    %v349 = vsub.s32 %v346, %v348
    %v350 = vrot.slane %v336, %v349
    %v351 = vcombine.low %v249, %v265
    %v352 = vcombine.high %v249, %v265
    %v354 = vunpack.c.l.s4 1983009808
    %v355 = vunpack.c.0.s8 %v354
    %v356 = vlaneseq
    %v357 = vshrl.u32 %v356, 7
    %v358 = vsub.s32 %v355, %v357
    %v359 = vrot.slane %v351, %v358
    %v361 = vunpack.c.l.s4 1983009808
    %v362 = vunpack.c.0.s8 %v361
    %v363 = vlaneseq
    %v364 = vshrl.u32 %v363, 7
    %v365 = vsub.s32 %v362, %v364
    %v366 = vrot.slane %v352, %v365
    %v367 = vcombine.low %v273, %v289
    %v368 = vcombine.high %v273, %v289
    %v370 = vunpack.c.l.s4 1983009808
    %v371 = vunpack.c.0.s8 %v370
    %v372 = vlaneseq
    %v373 = vshrl.u32 %v372, 7
    %v374 = vsub.s32 %v371, %v373
    %v375 = vrot.slane %v367, %v374
    %v377 = vunpack.c.l.s4 1983009808
    %v378 = vunpack.c.0.s8 %v377
    %v379 = vlaneseq
    %v380 = vshrl.u32 %v379, 7
    %v381 = vsub.s32 %v378, %v380
    %v382 = vrot.slane %v368, %v381
    %v383 = vcombine.low %v281, %v297
    %v384 = vcombine.high %v281, %v297
    %v386 = vunpack.c.l.s4 1983009808
    %v387 = vunpack.c.0.s8 %v386
    %v388 = vlaneseq
    %v389 = vshrl.u32 %v388, 7
    %v390 = vsub.s32 %v387, %v389
    %v391 = vrot.slane %v383, %v390
    %v393 = vunpack.c.l.s4 1983009808
    %v394 = vunpack.c.0.s8 %v393
    %v395 = vlaneseq
    %v396 = vshrl.u32 %v395, 7
    %v397 = vsub.s32 %v394, %v396
    %v398 = vrot.slane %v384, %v397
    %v399 = vcombine.low %v343, %v359
    %v400 = vcombine.high %v343, %v359
    %v402 = vunpack.c.l.s4 1934713408
    %v403 = vunpack.c.0.s8 %v402
    %v404 = vlaneseq
    %v405 = vshrl.u32 %v404, 7
    %v406 = vsub.s32 %v403, %v405
    %v407 = vrot.slane %v399, %v406
    %v409 = vunpack.c.l.s4 1934713408
    %v410 = vunpack.c.0.s8 %v409
    %v411 = vlaneseq
    %v412 = vshrl.u32 %v411, 7
    %v413 = vsub.s32 %v410, %v412
    %v414 = vrot.slane %v400, %v413
    %v415 = vcombine.low %v350, %v366
    %v416 = vcombine.high %v350, %v366
    %v418 = vunpack.c.l.s4 1934713408
    %v419 = vunpack.c.0.s8 %v418
    %v420 = vlaneseq
    %v421 = vshrl.u32 %v420, 7
    %v422 = vsub.s32 %v419, %v421
    %v423 = vrot.slane %v415, %v422
    %v425 = vunpack.c.l.s4 1934713408
    %v426 = vunpack.c.0.s8 %v425
    %v427 = vlaneseq
    %v428 = vshrl.u32 %v427, 7
    %v429 = vsub.s32 %v426, %v428
    %v430 = vrot.slane %v416, %v429
    %v431 = vcombine.low %v375, %v391
    %v432 = vcombine.high %v375, %v391
    %v434 = vunpack.c.l.s4 1934713408
    %v435 = vunpack.c.0.s8 %v434
    %v436 = vlaneseq
    %v437 = vshrl.u32 %v436, 7
    %v438 = vsub.s32 %v435, %v437
    %v439 = vrot.slane %v431, %v438
    %v441 = vunpack.c.l.s4 1934713408
    %v442 = vunpack.c.0.s8 %v441
    %v443 = vlaneseq
    %v444 = vshrl.u32 %v443, 7
    %v445 = vsub.s32 %v442, %v444
    %v446 = vrot.slane %v432, %v445
    %v447 = vcombine.low %v382, %v398
    %v448 = vcombine.high %v382, %v398
    %v450 = vunpack.c.l.s4 1934713408
    %v451 = vunpack.c.0.s8 %v450
    %v452 = vlaneseq
    %v453 = vshrl.u32 %v452, 7
    %v454 = vsub.s32 %v451, %v453
    %v455 = vrot.slane %v447, %v454
    %v457 = vunpack.c.l.s4 1934713408
    %v458 = vunpack.c.0.s8 %v457
    %v459 = vlaneseq
    %v460 = vshrl.u32 %v459, 7
    %v461 = vsub.s32 %v458, %v460
    %v462 = vrot.slane %v448, %v461
    %v463 = vcombine.low %v407, %v439
    %v464 = vcombine.high %v407, %v439
    %v465 = vcombine.low %v414, %v446
    %v466 = vcombine.high %v414, %v446
    %v467 = vcombine.low %v423, %v455
    %v468 = vcombine.high %v423, %v455
    %v469 = vcombine.low %v430, %v462
    %v470 = vcombine.high %v430, %v462
    %v471 = vcombine.low %v245, %v261
    %v472 = vcombine.high %v245, %v261
    %v474 = vunpack.c.l.s4 1983009808
    %v475 = vunpack.c.0.s8 %v474
    %v476 = vlaneseq
    %v477 = vshrl.u32 %v476, 7
    %v478 = vsub.s32 %v475, %v477
    %v479 = vrot.slane %v471, %v478
    %v481 = vunpack.c.l.s4 1983009808
    %v482 = vunpack.c.0.s8 %v481
    %v483 = vlaneseq
    %v484 = vshrl.u32 %v483, 7
    %v485 = vsub.s32 %v482, %v484
    %v486 = vrot.slane %v472, %v485
    %v487 = vcombine.low %v253, %v269
    %v488 = vcombine.high %v253, %v269
    %v490 = vunpack.c.l.s4 1983009808
    %v491 = vunpack.c.0.s8 %v490
    %v492 = vlaneseq
    %v493 = vshrl.u32 %v492, 7
    %v494 = vsub.s32 %v491, %v493
    %v495 = vrot.slane %v487, %v494
    %v497 = vunpack.c.l.s4 1983009808
    %v498 = vunpack.c.0.s8 %v497
    %v499 = vlaneseq
    %v500 = vshrl.u32 %v499, 7
    %v501 = vsub.s32 %v498, %v500
    %v502 = vrot.slane %v488, %v501
    %v503 = vcombine.low %v277, %v293
    %v504 = vcombine.high %v277, %v293
    %v506 = vunpack.c.l.s4 1983009808
    %v507 = vunpack.c.0.s8 %v506
    %v508 = vlaneseq
    %v509 = vshrl.u32 %v508, 7
    %v510 = vsub.s32 %v507, %v509
    %v511 = vrot.slane %v503, %v510
    %v513 = vunpack.c.l.s4 1983009808
    %v514 = vunpack.c.0.s8 %v513
    %v515 = vlaneseq
    %v516 = vshrl.u32 %v515, 7
    %v517 = vsub.s32 %v514, %v516
    %v518 = vrot.slane %v504, %v517
    %v519 = vcombine.low %v285, %v301
    %v520 = vcombine.high %v285, %v301
    %v522 = vunpack.c.l.s4 1983009808
    %v523 = vunpack.c.0.s8 %v522
    %v524 = vlaneseq
    %v525 = vshrl.u32 %v524, 7
    %v526 = vsub.s32 %v523, %v525
    %v527 = vrot.slane %v519, %v526
    %v529 = vunpack.c.l.s4 1983009808
    %v530 = vunpack.c.0.s8 %v529
    %v531 = vlaneseq
    %v532 = vshrl.u32 %v531, 7
    %v533 = vsub.s32 %v530, %v532
    %v534 = vrot.slane %v520, %v533
    %v535 = vcombine.low %v479, %v495
    %v536 = vcombine.high %v479, %v495
    %v538 = vunpack.c.l.s4 1934713408
    %v539 = vunpack.c.0.s8 %v538
    %v540 = vlaneseq
    %v541 = vshrl.u32 %v540, 7
    %v542 = vsub.s32 %v539, %v541
    %v543 = vrot.slane %v535, %v542
    %v545 = vunpack.c.l.s4 1934713408
    %v546 = vunpack.c.0.s8 %v545
    %v547 = vlaneseq
    %v548 = vshrl.u32 %v547, 7
    %v549 = vsub.s32 %v546, %v548
    %v550 = vrot.slane %v536, %v549
    %v551 = vcombine.low %v486, %v502
    %v552 = vcombine.high %v486, %v502
    %v554 = vunpack.c.l.s4 1934713408
    %v555 = vunpack.c.0.s8 %v554
    %v556 = vlaneseq
    %v557 = vshrl.u32 %v556, 7
    %v558 = vsub.s32 %v555, %v557
    %v559 = vrot.slane %v551, %v558
    %v561 = vunpack.c.l.s4 1934713408
    %v562 = vunpack.c.0.s8 %v561
    %v563 = vlaneseq
    %v564 = vshrl.u32 %v563, 7
    %v565 = vsub.s32 %v562, %v564
    %v566 = vrot.slane %v552, %v565
    %v567 = vcombine.low %v511, %v527
    %v568 = vcombine.high %v511, %v527
    %v570 = vunpack.c.l.s4 1934713408
    %v571 = vunpack.c.0.s8 %v570
    %v572 = vlaneseq
    %v573 = vshrl.u32 %v572, 7
    %v574 = vsub.s32 %v571, %v573
    %v575 = vrot.slane %v567, %v574
    %v577 = vunpack.c.l.s4 1934713408
    %v578 = vunpack.c.0.s8 %v577
    %v579 = vlaneseq
    %v580 = vshrl.u32 %v579, 7
    %v581 = vsub.s32 %v578, %v580
    %v582 = vrot.slane %v568, %v581
    %v583 = vcombine.low %v518, %v534
    %v584 = vcombine.high %v518, %v534
    %v586 = vunpack.c.l.s4 1934713408
    %v587 = vunpack.c.0.s8 %v586
    %v588 = vlaneseq
    %v589 = vshrl.u32 %v588, 7
    %v590 = vsub.s32 %v587, %v589
    %v591 = vrot.slane %v583, %v590
    %v593 = vunpack.c.l.s4 1934713408
    %v594 = vunpack.c.0.s8 %v593
    %v595 = vlaneseq
    %v596 = vshrl.u32 %v595, 7
    %v597 = vsub.s32 %v594, %v596
    %v598 = vrot.slane %v584, %v597
    %v599 = vcombine.low %v543, %v575
    %v600 = vcombine.high %v543, %v575
    %v601 = vcombine.low %v550, %v582
    %v602 = vcombine.high %v550, %v582
    %v603 = vcombine.low %v559, %v591
    %v604 = vcombine.high %v559, %v591
    %v605 = vcombine.low %v566, %v598
    %v606 = vcombine.high %v566, %v598
    %v607 = vcombine.low %v305, %v321
    %v608 = vcombine.high %v305, %v321
    %v610 = vunpack.c.l.s4 1983009808
    %v611 = vunpack.c.0.s8 %v610
    %v612 = vlaneseq
    %v613 = vshrl.u32 %v612, 7
    %v614 = vsub.s32 %v611, %v613
    %v615 = vrot.slane %v607, %v614
    %v617 = vunpack.c.l.s4 1983009808
    %v618 = vunpack.c.0.s8 %v617
    %v619 = vlaneseq
    %v620 = vshrl.u32 %v619, 7
    %v621 = vsub.s32 %v618, %v620
    %v622 = vrot.slane %v608, %v621
    %v623 = vcombine.low %v313, %v329
    %v624 = vcombine.high %v313, %v329
    %v626 = vunpack.c.l.s4 1983009808
    %v627 = vunpack.c.0.s8 %v626
    %v628 = vlaneseq
    %v629 = vshrl.u32 %v628, 7
    %v630 = vsub.s32 %v627, %v629
    %v631 = vrot.slane %v623, %v630
    %v633 = vunpack.c.l.s4 1983009808
    %v634 = vunpack.c.0.s8 %v633
    %v635 = vlaneseq
    %v636 = vshrl.u32 %v635, 7
    %v637 = vsub.s32 %v634, %v636
    %v638 = vrot.slane %v624, %v637
    %v639 = vcombine.low %v615, %v631
    %v640 = vcombine.high %v615, %v631
    %v642 = vunpack.c.l.s4 1934713408
    %v643 = vunpack.c.0.s8 %v642
    %v644 = vlaneseq
    %v645 = vshrl.u32 %v644, 7
    %v646 = vsub.s32 %v643, %v645
    %v647 = vrot.slane %v639, %v646
    %v649 = vunpack.c.l.s4 1934713408
    %v650 = vunpack.c.0.s8 %v649
    %v651 = vlaneseq
    %v652 = vshrl.u32 %v651, 7
    %v653 = vsub.s32 %v650, %v652
    %v654 = vrot.slane %v640, %v653
    %v655 = vcombine.low %v622, %v638
    %v656 = vcombine.high %v622, %v638
    %v658 = vunpack.c.l.s4 1934713408
    %v659 = vunpack.c.0.s8 %v658
    %v660 = vlaneseq
    %v661 = vshrl.u32 %v660, 7
    %v662 = vsub.s32 %v659, %v661
    %v663 = vrot.slane %v655, %v662
    %v665 = vunpack.c.l.s4 1934713408
    %v666 = vunpack.c.0.s8 %v665
    %v667 = vlaneseq
    %v668 = vshrl.u32 %v667, 7
    %v669 = vsub.s32 %v666, %v668
    %v670 = vrot.slane %v656, %v669
    %v671 = vcombine.high %v647, 0
    %v672 = vcombine.high %v654, 0
    %v673 = vcombine.high %v663, 0
    %v674 = vcombine.high %v670, 0
    %v675 = vcombine.low %v309, %v325
    %v676 = vcombine.high %v309, %v325
    %v678 = vunpack.c.l.s4 1983009808
    %v679 = vunpack.c.0.s8 %v678
    %v680 = vlaneseq
    %v681 = vshrl.u32 %v680, 7
    %v682 = vsub.s32 %v679, %v681
    %v683 = vrot.slane %v675, %v682
    %v685 = vunpack.c.l.s4 1983009808
    %v686 = vunpack.c.0.s8 %v685
    %v687 = vlaneseq
    %v688 = vshrl.u32 %v687, 7
    %v689 = vsub.s32 %v686, %v688
    %v690 = vrot.slane %v676, %v689
    %v691 = vcombine.low %v317, %v333
    %v692 = vcombine.high %v317, %v333
    %v694 = vunpack.c.l.s4 1983009808
    %v695 = vunpack.c.0.s8 %v694
    %v696 = vlaneseq
    %v697 = vshrl.u32 %v696, 7
    %v698 = vsub.s32 %v695, %v697
    %v699 = vrot.slane %v691, %v698
    %v701 = vunpack.c.l.s4 1983009808
    %v702 = vunpack.c.0.s8 %v701
    %v703 = vlaneseq
    %v704 = vshrl.u32 %v703, 7
    %v705 = vsub.s32 %v702, %v704
    %v706 = vrot.slane %v692, %v705
    %v707 = vcombine.low %v683, %v699
    %v708 = vcombine.high %v683, %v699
    %v710 = vunpack.c.l.s4 1934713408
    %v711 = vunpack.c.0.s8 %v710
    %v712 = vlaneseq
    %v713 = vshrl.u32 %v712, 7
    %v714 = vsub.s32 %v711, %v713
    %v715 = vrot.slane %v707, %v714
    %v717 = vunpack.c.l.s4 1934713408
    %v718 = vunpack.c.0.s8 %v717
    %v719 = vlaneseq
    %v720 = vshrl.u32 %v719, 7
    %v721 = vsub.s32 %v718, %v720
    %v722 = vrot.slane %v708, %v721
    %v723 = vcombine.low %v690, %v706
    %v724 = vcombine.high %v690, %v706
    %v726 = vunpack.c.l.s4 1934713408
    %v727 = vunpack.c.0.s8 %v726
    %v728 = vlaneseq
    %v729 = vshrl.u32 %v728, 7
    %v730 = vsub.s32 %v727, %v729
    %v731 = vrot.slane %v723, %v730
    %v733 = vunpack.c.l.s4 1934713408
    %v734 = vunpack.c.0.s8 %v733
    %v735 = vlaneseq
    %v736 = vshrl.u32 %v735, 7
    %v737 = vsub.s32 %v734, %v736
    %v738 = vrot.slane %v724, %v737
    %v739 = vcombine.high %v715, 0
    %v740 = vcombine.high %v722, 0
    %v741 = vcombine.high %v731, 0
    %v742 = vcombine.high %v738, 0
    %v743 = vcombine.low %v463, %v465
    %v744 = vcombine.high %v463, %v465
    %v746 = vunpack.c.l.s4 1983009808
    %v747 = vunpack.c.0.s8 %v746
    %v748 = vlaneseq
    %v749 = vshrl.u32 %v748, 7
    %v750 = vsub.s32 %v747, %v749
    %v751 = vrot.slane %v743, %v750
    %v753 = vunpack.c.l.s4 1983009808
    %v754 = vunpack.c.0.s8 %v753
    %v755 = vlaneseq
    %v756 = vshrl.u32 %v755, 7
    %v757 = vsub.s32 %v754, %v756
    %v758 = vrot.slane %v744, %v757
    %v759 = vcombine.low %v464, %v466
    %v760 = vcombine.high %v464, %v466
    %v762 = vunpack.c.l.s4 1983009808
    %v763 = vunpack.c.0.s8 %v762
    %v764 = vlaneseq
    %v765 = vshrl.u32 %v764, 7
    %v766 = vsub.s32 %v763, %v765
    %v767 = vrot.slane %v759, %v766
    %v769 = vunpack.c.l.s4 1983009808
    %v770 = vunpack.c.0.s8 %v769
    %v771 = vlaneseq
    %v772 = vshrl.u32 %v771, 7
    %v773 = vsub.s32 %v770, %v772
    %v774 = vrot.slane %v760, %v773
    %v775 = vcombine.low %v467, %v469
    %v776 = vcombine.high %v467, %v469
    %v778 = vunpack.c.l.s4 1983009808
    %v779 = vunpack.c.0.s8 %v778
    %v780 = vlaneseq
    %v781 = vshrl.u32 %v780, 7
    %v782 = vsub.s32 %v779, %v781
    %v783 = vrot.slane %v775, %v782
    %v785 = vunpack.c.l.s4 1983009808
    %v786 = vunpack.c.0.s8 %v785
    %v787 = vlaneseq
    %v788 = vshrl.u32 %v787, 7
    %v789 = vsub.s32 %v786, %v788
    %v790 = vrot.slane %v776, %v789
    %v791 = vcombine.low %v468, %v470
    %v792 = vcombine.high %v468, %v470
    %v794 = vunpack.c.l.s4 1983009808
    %v795 = vunpack.c.0.s8 %v794
    %v796 = vlaneseq
    %v797 = vshrl.u32 %v796, 7
    %v798 = vsub.s32 %v795, %v797
    %v799 = vrot.slane %v791, %v798
    %v801 = vunpack.c.l.s4 1983009808
    %v802 = vunpack.c.0.s8 %v801
    %v803 = vlaneseq
    %v804 = vshrl.u32 %v803, 7
    %v805 = vsub.s32 %v802, %v804
    %v806 = vrot.slane %v792, %v805
    %v807 = vcombine.low %v751, %v767
    %v808 = vcombine.high %v751, %v767
    %v810 = vunpack.c.l.s4 1934713408
    %v811 = vunpack.c.0.s8 %v810
    %v812 = vlaneseq
    %v813 = vshrl.u32 %v812, 7
    %v814 = vsub.s32 %v811, %v813
    %v815 = vrot.slane %v807, %v814
    %v817 = vunpack.c.l.s4 1934713408
    %v818 = vunpack.c.0.s8 %v817
    %v819 = vlaneseq
    %v820 = vshrl.u32 %v819, 7
    %v821 = vsub.s32 %v818, %v820
    %v822 = vrot.slane %v808, %v821
    %v823 = vcombine.low %v758, %v774
    %v824 = vcombine.high %v758, %v774
    %v826 = vunpack.c.l.s4 1934713408
    %v827 = vunpack.c.0.s8 %v826
    %v828 = vlaneseq
    %v829 = vshrl.u32 %v828, 7
    %v830 = vsub.s32 %v827, %v829
    %v831 = vrot.slane %v823, %v830
    %v833 = vunpack.c.l.s4 1934713408
    %v834 = vunpack.c.0.s8 %v833
    %v835 = vlaneseq
    %v836 = vshrl.u32 %v835, 7
    %v837 = vsub.s32 %v834, %v836
    %v838 = vrot.slane %v824, %v837
    %v839 = vcombine.low %v783, %v799
    %v840 = vcombine.high %v783, %v799
    %v842 = vunpack.c.l.s4 1934713408
    %v843 = vunpack.c.0.s8 %v842
    %v844 = vlaneseq
    %v845 = vshrl.u32 %v844, 7
    %v846 = vsub.s32 %v843, %v845
    %v847 = vrot.slane %v839, %v846
    %v849 = vunpack.c.l.s4 1934713408
    %v850 = vunpack.c.0.s8 %v849
    %v851 = vlaneseq
    %v852 = vshrl.u32 %v851, 7
    %v853 = vsub.s32 %v850, %v852
    %v854 = vrot.slane %v840, %v853
    %v855 = vcombine.low %v790, %v806
    %v856 = vcombine.high %v790, %v806
    %v858 = vunpack.c.l.s4 1934713408
    %v859 = vunpack.c.0.s8 %v858
    %v860 = vlaneseq
    %v861 = vshrl.u32 %v860, 7
    %v862 = vsub.s32 %v859, %v861
    %v863 = vrot.slane %v855, %v862
    %v865 = vunpack.c.l.s4 1934713408
    %v866 = vunpack.c.0.s8 %v865
    %v867 = vlaneseq
    %v868 = vshrl.u32 %v867, 7
    %v869 = vsub.s32 %v866, %v868
    %v870 = vrot.slane %v856, %v869
    %v871 = vcombine.low %v815, %v847
    %v872 = vcombine.high %v815, %v847
    %v873 = vcombine.low %v822, %v854
    %v874 = vcombine.high %v822, %v854
    %v875 = vcombine.low %v831, %v863
    %v876 = vcombine.high %v831, %v863
    %v877 = vcombine.low %v838, %v870
    %v878 = vcombine.high %v838, %v870
    %v879 = vcombine.low %v599, %v601
    %v880 = vcombine.high %v599, %v601
    %v882 = vunpack.c.l.s4 1983009808
    %v883 = vunpack.c.0.s8 %v882
    %v884 = vlaneseq
    %v885 = vshrl.u32 %v884, 7
    %v886 = vsub.s32 %v883, %v885
    %v887 = vrot.slane %v879, %v886
    %v889 = vunpack.c.l.s4 1983009808
    %v890 = vunpack.c.0.s8 %v889
    %v891 = vlaneseq
    %v892 = vshrl.u32 %v891, 7
    %v893 = vsub.s32 %v890, %v892
    %v894 = vrot.slane %v880, %v893
    %v895 = vcombine.low %v600, %v602
    %v896 = vcombine.high %v600, %v602
    %v898 = vunpack.c.l.s4 1983009808
    %v899 = vunpack.c.0.s8 %v898
    %v900 = vlaneseq
    %v901 = vshrl.u32 %v900, 7
    %v902 = vsub.s32 %v899, %v901
    %v903 = vrot.slane %v895, %v902
    %v905 = vunpack.c.l.s4 1983009808
    %v906 = vunpack.c.0.s8 %v905
    %v907 = vlaneseq
    %v908 = vshrl.u32 %v907, 7
    %v909 = vsub.s32 %v906, %v908
    %v910 = vrot.slane %v896, %v909
    %v911 = vcombine.low %v603, %v605
    %v912 = vcombine.high %v603, %v605
    %v914 = vunpack.c.l.s4 1983009808
    %v915 = vunpack.c.0.s8 %v914
    %v916 = vlaneseq
    %v917 = vshrl.u32 %v916, 7
    %v918 = vsub.s32 %v915, %v917
    %v919 = vrot.slane %v911, %v918
    %v921 = vunpack.c.l.s4 1983009808
    %v922 = vunpack.c.0.s8 %v921
    %v923 = vlaneseq
    %v924 = vshrl.u32 %v923, 7
    %v925 = vsub.s32 %v922, %v924
    %v926 = vrot.slane %v912, %v925
    %v927 = vcombine.low %v604, %v606
    %v928 = vcombine.high %v604, %v606
    %v930 = vunpack.c.l.s4 1983009808
    %v931 = vunpack.c.0.s8 %v930
    %v932 = vlaneseq
    %v933 = vshrl.u32 %v932, 7
    %v934 = vsub.s32 %v931, %v933
    %v935 = vrot.slane %v927, %v934
    %v937 = vunpack.c.l.s4 1983009808
    %v938 = vunpack.c.0.s8 %v937
    %v939 = vlaneseq
    %v940 = vshrl.u32 %v939, 7
    %v941 = vsub.s32 %v938, %v940
    %v942 = vrot.slane %v928, %v941
    %v943 = vcombine.low %v887, %v903
    %v944 = vcombine.high %v887, %v903
    %v946 = vunpack.c.l.s4 1934713408
    %v947 = vunpack.c.0.s8 %v946
    %v948 = vlaneseq
    %v949 = vshrl.u32 %v948, 7
    %v950 = vsub.s32 %v947, %v949
    %v951 = vrot.slane %v943, %v950
    %v953 = vunpack.c.l.s4 1934713408
    %v954 = vunpack.c.0.s8 %v953
    %v955 = vlaneseq
    %v956 = vshrl.u32 %v955, 7
    %v957 = vsub.s32 %v954, %v956
    %v958 = vrot.slane %v944, %v957
    %v959 = vcombine.low %v894, %v910
    %v960 = vcombine.high %v894, %v910
    %v962 = vunpack.c.l.s4 1934713408
    %v963 = vunpack.c.0.s8 %v962
    %v964 = vlaneseq
    %v965 = vshrl.u32 %v964, 7
    %v966 = vsub.s32 %v963, %v965
    %v967 = vrot.slane %v959, %v966
    %v969 = vunpack.c.l.s4 1934713408
    %v970 = vunpack.c.0.s8 %v969
    %v971 = vlaneseq
    %v972 = vshrl.u32 %v971, 7
    %v973 = vsub.s32 %v970, %v972
    %v974 = vrot.slane %v960, %v973
    %v975 = vcombine.low %v919, %v935
    %v976 = vcombine.high %v919, %v935
    %v978 = vunpack.c.l.s4 1934713408
    %v979 = vunpack.c.0.s8 %v978
    %v980 = vlaneseq
    %v981 = vshrl.u32 %v980, 7
    %v982 = vsub.s32 %v979, %v981
    %v983 = vrot.slane %v975, %v982
    %v985 = vunpack.c.l.s4 1934713408
    %v986 = vunpack.c.0.s8 %v985
    %v987 = vlaneseq
    %v988 = vshrl.u32 %v987, 7
    %v989 = vsub.s32 %v986, %v988
    %v990 = vrot.slane %v976, %v989
    %v991 = vcombine.low %v926, %v942
    %v992 = vcombine.high %v926, %v942
    %v994 = vunpack.c.l.s4 1934713408
    %v995 = vunpack.c.0.s8 %v994
    %v996 = vlaneseq
    %v997 = vshrl.u32 %v996, 7
    %v998 = vsub.s32 %v995, %v997
    %v999 = vrot.slane %v991, %v998
    %v1001 = vunpack.c.l.s4 1934713408
    %v1002 = vunpack.c.0.s8 %v1001
    %v1003 = vlaneseq
    %v1004 = vshrl.u32 %v1003, 7
    %v1005 = vsub.s32 %v1002, %v1004
    %v1006 = vrot.slane %v992, %v1005
    %v1007 = vcombine.low %v951, %v983
    %v1008 = vcombine.high %v951, %v983
    %v1009 = vcombine.low %v958, %v990
    %v1010 = vcombine.high %v958, %v990
    %v1011 = vcombine.low %v967, %v999
    %v1012 = vcombine.high %v967, %v999
    %v1013 = vcombine.low %v974, %v1006
    %v1014 = vcombine.high %v974, %v1006
    %v1015 = vcombine.low %v647, %v654
    %v1017 = vunpack.c.l.s4 1983009808
    %v1018 = vunpack.c.0.s8 %v1017
    %v1019 = vlaneseq
    %v1020 = vshrl.u32 %v1019, 7
    %v1021 = vsub.s32 %v1018, %v1020
    %v1022 = vrot.slane %v1015, %v1021
    %v1023 = vcombine.low %v671, %v672
    %v1025 = vunpack.c.l.s4 1983009808
    %v1026 = vunpack.c.0.s8 %v1025
    %v1027 = vlaneseq
    %v1028 = vshrl.u32 %v1027, 7
    %v1029 = vsub.s32 %v1026, %v1028
    %v1030 = vrot.slane %v1023, %v1029
    %v1031 = vcombine.low %v663, %v670
    %v1033 = vunpack.c.l.s4 1983009808
    %v1034 = vunpack.c.0.s8 %v1033
    %v1035 = vlaneseq
    %v1036 = vshrl.u32 %v1035, 7
    %v1037 = vsub.s32 %v1034, %v1036
    %v1038 = vrot.slane %v1031, %v1037
    %v1039 = vcombine.low %v673, %v674
    %v1041 = vunpack.c.l.s4 1983009808
    %v1042 = vunpack.c.0.s8 %v1041
    %v1043 = vlaneseq
    %v1044 = vshrl.u32 %v1043, 7
    %v1045 = vsub.s32 %v1042, %v1044
    %v1046 = vrot.slane %v1039, %v1045
    %v1047 = vcombine.low %v1022, %v1030
    %v1048 = vcombine.high %v1022, %v1030
    %v1050 = vunpack.c.l.s4 1934713408
    %v1051 = vunpack.c.0.s8 %v1050
    %v1052 = vlaneseq
    %v1053 = vshrl.u32 %v1052, 7
    %v1054 = vsub.s32 %v1051, %v1053
    %v1055 = vrot.slane %v1047, %v1054
    %v1057 = vunpack.c.l.s4 1934713408
    %v1058 = vunpack.c.0.s8 %v1057
    %v1059 = vlaneseq
    %v1060 = vshrl.u32 %v1059, 7
    %v1061 = vsub.s32 %v1058, %v1060
    %v1062 = vrot.slane %v1048, %v1061
    %v1063 = vcombine.low %v1038, %v1046
    %v1064 = vcombine.high %v1038, %v1046
    %v1066 = vunpack.c.l.s4 1934713408
    %v1067 = vunpack.c.0.s8 %v1066
    %v1068 = vlaneseq
    %v1069 = vshrl.u32 %v1068, 7
    %v1070 = vsub.s32 %v1067, %v1069
    %v1071 = vrot.slane %v1063, %v1070
    %v1073 = vunpack.c.l.s4 1934713408
    %v1074 = vunpack.c.0.s8 %v1073
    %v1075 = vlaneseq
    %v1076 = vshrl.u32 %v1075, 7
    %v1077 = vsub.s32 %v1074, %v1076
    %v1078 = vrot.slane %v1064, %v1077
    %v1079 = vcombine.low %v1055, %v1071
    %v1080 = vcombine.high %v1055, %v1071
    %v1081 = vcombine.low %v1062, %v1078
    %v1082 = vcombine.high %v1062, %v1078
    %v1083 = vcombine.low %v715, %v722
    %v1085 = vunpack.c.l.s4 1983009808
    %v1086 = vunpack.c.0.s8 %v1085
    %v1087 = vlaneseq
    %v1088 = vshrl.u32 %v1087, 7
    %v1089 = vsub.s32 %v1086, %v1088
    %v1090 = vrot.slane %v1083, %v1089
    %v1091 = vcombine.low %v739, %v740
    %v1093 = vunpack.c.l.s4 1983009808
    %v1094 = vunpack.c.0.s8 %v1093
    %v1095 = vlaneseq
    %v1096 = vshrl.u32 %v1095, 7
    %v1097 = vsub.s32 %v1094, %v1096
    %v1098 = vrot.slane %v1091, %v1097
    %v1099 = vcombine.low %v731, %v738
    %v1101 = vunpack.c.l.s4 1983009808
    %v1102 = vunpack.c.0.s8 %v1101
    %v1103 = vlaneseq
    %v1104 = vshrl.u32 %v1103, 7
    %v1105 = vsub.s32 %v1102, %v1104
    %v1106 = vrot.slane %v1099, %v1105
    %v1107 = vcombine.low %v741, %v742
    %v1109 = vunpack.c.l.s4 1983009808
    %v1110 = vunpack.c.0.s8 %v1109
    %v1111 = vlaneseq
    %v1112 = vshrl.u32 %v1111, 7
    %v1113 = vsub.s32 %v1110, %v1112
    %v1114 = vrot.slane %v1107, %v1113
    %v1115 = vcombine.low %v1090, %v1098
    %v1116 = vcombine.high %v1090, %v1098
    %v1118 = vunpack.c.l.s4 1934713408
    %v1119 = vunpack.c.0.s8 %v1118
    %v1120 = vlaneseq
    %v1121 = vshrl.u32 %v1120, 7
    %v1122 = vsub.s32 %v1119, %v1121
    %v1123 = vrot.slane %v1115, %v1122
    %v1125 = vunpack.c.l.s4 1934713408
    %v1126 = vunpack.c.0.s8 %v1125
    %v1127 = vlaneseq
    %v1128 = vshrl.u32 %v1127, 7
    %v1129 = vsub.s32 %v1126, %v1128
    %v1130 = vrot.slane %v1116, %v1129
    %v1131 = vcombine.low %v1106, %v1114
    %v1132 = vcombine.high %v1106, %v1114
    %v1134 = vunpack.c.l.s4 1934713408
    %v1135 = vunpack.c.0.s8 %v1134
    %v1136 = vlaneseq
    %v1137 = vshrl.u32 %v1136, 7
    %v1138 = vsub.s32 %v1135, %v1137
    %v1139 = vrot.slane %v1131, %v1138
    %v1141 = vunpack.c.l.s4 1934713408
    %v1142 = vunpack.c.0.s8 %v1141
    %v1143 = vlaneseq
    %v1144 = vshrl.u32 %v1143, 7
    %v1145 = vsub.s32 %v1142, %v1144
    %v1146 = vrot.slane %v1132, %v1145
    %v1147 = vcombine.low %v1123, %v1139
    %v1148 = vcombine.high %v1123, %v1139
    %v1149 = vcombine.low %v1130, %v1146
    %v1150 = vcombine.high %v1130, %v1146
    %v1153 = vpack.i.b16 %v1007, %v871
    %v1154 = vshrl.u32 %v871, 16
    %v1155 = vshrl.u32 %v1007, 16
    %v1156 = vpack.i.b16 %v1155, %v1154
    %v1159 = vpack.i.b16 %v1008, %v872
    %v1160 = vshrl.u32 %v872, 16
    %v1161 = vshrl.u32 %v1008, 16
    %v1162 = vpack.i.b16 %v1161, %v1160
    %v1165 = vpack.i.b16 %v1009, %v873
    %v1166 = vshrl.u32 %v873, 16
    %v1167 = vshrl.u32 %v1009, 16
    %v1168 = vpack.i.b16 %v1167, %v1166
    %v1171 = vpack.i.b16 %v1010, %v874
    %v1172 = vshrl.u32 %v874, 16
    %v1173 = vshrl.u32 %v1010, 16
    %v1174 = vpack.i.b16 %v1173, %v1172
    %v1177 = vpack.i.b16 %v1011, %v875
    %v1178 = vshrl.u32 %v875, 16
    %v1179 = vshrl.u32 %v1011, 16
    %v1180 = vpack.i.b16 %v1179, %v1178
    %v1183 = vpack.i.b16 %v1012, %v876
    %v1184 = vshrl.u32 %v876, 16
    %v1185 = vshrl.u32 %v1012, 16
    %v1186 = vpack.i.b16 %v1185, %v1184
    %v1189 = vpack.i.b16 %v1013, %v877
    %v1190 = vshrl.u32 %v877, 16
    %v1191 = vshrl.u32 %v1013, 16
    %v1192 = vpack.i.b16 %v1191, %v1190
    %v1195 = vpack.i.b16 %v1014, %v878
    %v1196 = vshrl.u32 %v878, 16
    %v1197 = vshrl.u32 %v1014, 16
    %v1198 = vpack.i.b16 %v1197, %v1196
    %v1201 = vpack.i.b16 %v1147, %v1079
    %v1202 = vshrl.u32 %v1079, 16
    %v1203 = vshrl.u32 %v1147, 16
    %v1204 = vpack.i.b16 %v1203, %v1202
    %v1207 = vpack.i.b16 %v1148, %v1080
    %v1208 = vshrl.u32 %v1080, 16
    %v1209 = vshrl.u32 %v1148, 16
    %v1210 = vpack.i.b16 %v1209, %v1208
    %v1213 = vpack.i.b16 %v1149, %v1081
    %v1214 = vshrl.u32 %v1081, 16
    %v1215 = vshrl.u32 %v1149, 16
    %v1216 = vpack.i.b16 %v1215, %v1214
    %v1219 = vpack.i.b16 %v1150, %v1082
    %v1220 = vshrl.u32 %v1082, 16
    %v1221 = vshrl.u32 %v1150, 16
    %v1222 = vpack.i.b16 %v1221, %v1220
    %v1223 = vunpack.c.l.b16 %v1153
    %v1224 = vunpack.c.h.b16 %v1153
    %v1225 = vunpack.c.l.b16 %v1156
    %v1226 = vunpack.c.h.b16 %v1156
    %v1227 = vunpack.c.l.b16 %v1159
    %v1228 = vunpack.c.h.b16 %v1159
    %v1229 = vunpack.c.l.b16 %v1162
    %v1230 = vunpack.c.h.b16 %v1162
    %v1231 = vunpack.c.l.b16 %v1165
    %v1232 = vunpack.c.h.b16 %v1165
    %v1233 = vunpack.c.l.b16 %v1168
    %v1234 = vunpack.c.h.b16 %v1168
    %v1235 = vunpack.c.l.b16 %v1171
    %v1236 = vunpack.c.h.b16 %v1171
    %v1237 = vunpack.c.l.b16 %v1174
    %v1238 = vunpack.c.h.b16 %v1174
    %v1239 = vunpack.c.l.b16 %v1177
    %v1240 = vunpack.c.h.b16 %v1177
    %v1241 = vunpack.c.l.b16 %v1180
    %v1242 = vunpack.c.h.b16 %v1180
    %v1243 = vunpack.c.l.b16 %v1183
    %v1244 = vunpack.c.h.b16 %v1183
    %v1245 = vunpack.c.l.b16 %v1186
    %v1246 = vunpack.c.h.b16 %v1186
    %v1247 = vunpack.c.l.b16 %v1189
    %v1248 = vunpack.c.h.b16 %v1189
    %v1249 = vunpack.c.l.b16 %v1192
    %v1250 = vunpack.c.h.b16 %v1192
    %v1251 = vunpack.c.l.b16 %v1195
    %v1252 = vunpack.c.h.b16 %v1195
    %v1253 = vunpack.c.l.b16 %v1198
    %v1254 = vunpack.c.h.b16 %v1198
    %v1255 = vunpack.c.l.b16 %v1201
    %v1256 = vunpack.c.h.b16 %v1201
    %v1257 = vunpack.c.l.b16 %v1204
    %v1258 = vunpack.c.h.b16 %v1204
    %v1259 = vunpack.c.l.b16 %v1207
    %v1260 = vunpack.c.h.b16 %v1207
    %v1261 = vunpack.c.l.b16 %v1210
    %v1262 = vunpack.c.h.b16 %v1210
    %v1263 = vunpack.c.l.b16 %v1213
    %v1264 = vunpack.c.h.b16 %v1213
    %v1265 = vunpack.c.l.b16 %v1216
    %v1266 = vunpack.c.h.b16 %v1216
    %v1267 = vunpack.c.l.b16 %v1219
    %v1268 = vunpack.c.h.b16 %v1219
    %v1269 = vunpack.c.l.b16 %v1222
    %v1270 = vunpack.c.h.b16 %v1222
    %v1271 = vpack.c.b16 %v1223, %v1223
    %v1272 = vpack.c.b16 %v1224, %v1224
    %v1273 = vpack.c.b16 %v1225, %v1225
    %v1274 = vpack.c.b16 %v1226, %v1226
    %v1275 = vpack.c.b16 %v1227, %v1227
    %v1276 = vpack.c.b16 %v1228, %v1228
    %v1277 = vpack.c.b16 %v1229, %v1229
    %v1278 = vpack.c.b16 %v1230, %v1230
    %v1279 = vpack.c.b16 %v1231, %v1231
    %v1280 = vpack.c.b16 %v1232, %v1232
    %v1281 = vpack.c.b16 %v1233, %v1233
    %v1282 = vpack.c.b16 %v1234, %v1234
    %v1283 = vpack.c.b16 %v1235, %v1235
    %v1284 = vpack.c.b16 %v1236, %v1236
    %v1285 = vpack.c.b16 %v1237, %v1237
    %v1286 = vpack.c.b16 %v1238, %v1238
    %v1287 = vpack.c.b16 %v1239, %v1239
    %v1288 = vpack.c.b16 %v1240, %v1240
    %v1289 = vpack.c.b16 %v1241, %v1241
    %v1290 = vpack.c.b16 %v1242, %v1242
    %v1291 = vpack.c.b16 %v1243, %v1243
    %v1292 = vpack.c.b16 %v1244, %v1244
    %v1293 = vpack.c.b16 %v1245, %v1245
    %v1294 = vpack.c.b16 %v1246, %v1246
    %v1295 = vpack.c.b16 %v1247, %v1247
    %v1296 = vpack.c.b16 %v1248, %v1248
    %v1297 = vpack.c.b16 %v1249, %v1249
    %v1298 = vpack.c.b16 %v1250, %v1250
    %v1299 = vpack.c.b16 %v1251, %v1251
    %v1300 = vpack.c.b16 %v1252, %v1252
    %v1301 = vpack.c.b16 %v1253, %v1253
    %v1302 = vpack.c.b16 %v1254, %v1254
    %v1303 = vpack.c.b16 %v1255, %v1255
    %v1304 = vpack.c.b16 %v1256, %v1256
    %v1305 = vpack.c.b16 %v1257, %v1257
    %v1306 = vpack.c.b16 %v1258, %v1258
    %v1307 = vpack.c.b16 %v1259, %v1259
    %v1308 = vpack.c.b16 %v1260, %v1260
    %v1309 = vpack.c.b16 %v1261, %v1261
    %v1310 = vpack.c.b16 %v1262, %v1262
    %v1311 = vpack.c.b16 %v1263, %v1263
    %v1312 = vpack.c.b16 %v1264, %v1264
    %v1313 = vpack.c.b16 %v1265, %v1265
    %v1314 = vpack.c.b16 %v1266, %v1266
    %v1315 = vpack.c.b16 %v1267, %v1267
    %v1316 = vpack.c.b16 %v1268, %v1268
    %v1317 = vpack.c.b16 %v1269, %v1269
    %v1318 = vpack.c.b16 %v1270, %v1270
    %vm1319 = vcmask 130048
    %v1321 = vsel %vm1319, %v1271, 0
    %v1324 = vsel %vm1319, %v1287, 0
    %1326 = vmatprep.subr.bf16.mxu0 0
    %1327 = vmatpush1.bf16.xpose.msra.mxu0 %v1324
    %1328 = vmatprep.subr.bf16.mxu0 0
    %1329 = vmatpush1.bf16.xpose.msra.mxu0 0
    %1330 = vmatprep.subr.bf16.mxu0 0
    %1331 = vmatpush1.bf16.xpose.msra.mxu0 0
    %1332 = vmatprep.subr.bf16.mxu0 0
    %1333 = vmatpush1.bf16.xpose.msra.mxu0 0
    %1334 = vmatprep.subr.bf16.mxu0 0
    %1335 = vmatpush1.bf16.xpose.msra.mxu0 0
    %1336 = vmatprep.subr.bf16.mxu0 0
    %1337 = vmatpush1.bf16.xpose.msra.mxu0 0
    %1338 = vmatprep.subr.bf16.mxu0 0
    %1339 = vmatpush1.bf16.xpose.msra.mxu0 0
    %1340 = vmatprep.subr.bf16.mxu0 0
    %1341 = vmatpush1.bf16.xpose.msra.mxu0 0
    %1342 = vmatprep.subr.bf16.mxu0 0
    %1343 = vmatpush1.bf16.xpose.msra.mxu0 0
    %1344 = vmatprep.subr.bf16.mxu0 0
    %1345 = vmatpush1.bf16.xpose.msra.mxu0 0
    %1346 = vmatprep.subr.bf16.mxu0 0
    %1347 = vmatpush1.bf16.xpose.msra.mxu0 0
    %1348 = vmatprep.subr.bf16.mxu0 0
    %1349 = vmatpush1.bf16.xpose.msra.mxu0 0
    %1350 = vmatprep.subr.bf16.mxu0 0
    %1351 = vmatpush1.bf16.xpose.msra.mxu0 0
    %1352 = vmatprep.subr.bf16.mxu0 0
    %1353 = vmatpush1.bf16.xpose.msra.mxu0 0
    %1354 = vmatprep.subr.bf16.mxu0 0
    %1355 = vmatpush1.bf16.xpose.msra.mxu0 0
    %1356 = vmatprep.subr.bf16.mxu0 0
    %1357 = vmatpush1.bf16.xpose.msra.mxu0 0
    %1358 = vmatprep.mubr.bf16.mxu0 0
    %1359 = vmatmul.mubr.bf16.gmra.mrb[0].mxu0 %v1321
    %v1360 = vpop.f32.mrb[0].mxu0
    %v1361 = vadd.f32 0.0, %v1360
    %v1362 = vpop.f32.mrb[0].mxu0
    %v1363 = vpop.f32.mrb[0].mxu0
    %v1364 = vpop.f32.mrb[0].mxu0
    %1365 = vdwg.mxu0
    %v1367 = vsel %vm1319, %v1272, 0
    %v1370 = vsel %vm1319, %v1288, 0
    %1372 = vmatprep.subr.bf16.mxu0 0
    %1373 = vmatpush1.bf16.xpose.msra.mxu0 %v1370
    %1374 = vmatprep.subr.bf16.mxu0 0
    %1375 = vmatpush1.bf16.xpose.msra.mxu0 0
    %1376 = vmatprep.subr.bf16.mxu0 0
    %1377 = vmatpush1.bf16.xpose.msra.mxu0 0
    %1378 = vmatprep.subr.bf16.mxu0 0
    %1379 = vmatpush1.bf16.xpose.msra.mxu0 0
    %1380 = vmatprep.subr.bf16.mxu0 0
    %1381 = vmatpush1.bf16.xpose.msra.mxu0 0
    %1382 = vmatprep.subr.bf16.mxu0 0
    %1383 = vmatpush1.bf16.xpose.msra.mxu0 0
    %1384 = vmatprep.subr.bf16.mxu0 0
    %1385 = vmatpush1.bf16.xpose.msra.mxu0 0
    %1386 = vmatprep.subr.bf16.mxu0 0
    %1387 = vmatpush1.bf16.xpose.msra.mxu0 0
    %1388 = vmatprep.subr.bf16.mxu0 0
    %1389 = vmatpush1.bf16.xpose.msra.mxu0 0
    %1390 = vmatprep.subr.bf16.mxu0 0
    %1391 = vmatpush1.bf16.xpose.msra.mxu0 0
    %1392 = vmatprep.subr.bf16.mxu0 0
    %1393 = vmatpush1.bf16.xpose.msra.mxu0 0
    %1394 = vmatprep.subr.bf16.mxu0 0
    %1395 = vmatpush1.bf16.xpose.msra.mxu0 0
    %1396 = vmatprep.subr.bf16.mxu0 0
    %1397 = vmatpush1.bf16.xpose.msra.mxu0 0
    %1398 = vmatprep.subr.bf16.mxu0 0
    %1399 = vmatpush1.bf16.xpose.msra.mxu0 0
    %1400 = vmatprep.subr.bf16.mxu0 0
    %1401 = vmatpush1.bf16.xpose.msra.mxu0 0
    %1402 = vmatprep.subr.bf16.mxu0 0
    %1403 = vmatpush1.bf16.xpose.msra.mxu0 0
    %1404 = vmatprep.mubr.bf16.mxu0 0
    %1405 = vmatmul.mubr.bf16.gmra.mrb[0].mxu0 %v1367
    %v1406 = vpop.f32.mrb[0].mxu0
    %v1407 = vadd.f32 0.0, %v1406
    %v1408 = vpop.f32.mrb[0].mxu0
    %v1409 = vpop.f32.mrb[0].mxu0
    %v1410 = vpop.f32.mrb[0].mxu0
    %1411 = vdwg.mxu0
    %v1413 = vsel %vm1319, %v1273, 0
    %v1416 = vsel %vm1319, %v1289, 0
    %1418 = vmatprep.subr.bf16.mxu0 0
    %1419 = vmatpush1.bf16.xpose.msra.mxu0 %v1416
    %1420 = vmatprep.subr.bf16.mxu0 0
    %1421 = vmatpush1.bf16.xpose.msra.mxu0 0
    %1422 = vmatprep.subr.bf16.mxu0 0
    %1423 = vmatpush1.bf16.xpose.msra.mxu0 0
    %1424 = vmatprep.subr.bf16.mxu0 0
    %1425 = vmatpush1.bf16.xpose.msra.mxu0 0
    %1426 = vmatprep.subr.bf16.mxu0 0
    %1427 = vmatpush1.bf16.xpose.msra.mxu0 0
    %1428 = vmatprep.subr.bf16.mxu0 0
    %1429 = vmatpush1.bf16.xpose.msra.mxu0 0
    %1430 = vmatprep.subr.bf16.mxu0 0
    %1431 = vmatpush1.bf16.xpose.msra.mxu0 0
    %1432 = vmatprep.subr.bf16.mxu0 0
    %1433 = vmatpush1.bf16.xpose.msra.mxu0 0
    %1434 = vmatprep.subr.bf16.mxu0 0
    %1435 = vmatpush1.bf16.xpose.msra.mxu0 0
    %1436 = vmatprep.subr.bf16.mxu0 0
    %1437 = vmatpush1.bf16.xpose.msra.mxu0 0
    %1438 = vmatprep.subr.bf16.mxu0 0
    %1439 = vmatpush1.bf16.xpose.msra.mxu0 0
    %1440 = vmatprep.subr.bf16.mxu0 0
    %1441 = vmatpush1.bf16.xpose.msra.mxu0 0
    %1442 = vmatprep.subr.bf16.mxu0 0
    %1443 = vmatpush1.bf16.xpose.msra.mxu0 0
    %1444 = vmatprep.subr.bf16.mxu0 0
    %1445 = vmatpush1.bf16.xpose.msra.mxu0 0
    %1446 = vmatprep.subr.bf16.mxu0 0
    %1447 = vmatpush1.bf16.xpose.msra.mxu0 0
    %1448 = vmatprep.subr.bf16.mxu0 0
    %1449 = vmatpush1.bf16.xpose.msra.mxu0 0
    %1450 = vmatprep.mubr.bf16.mxu0 0
    %1451 = vmatmul.mubr.bf16.gmra.mrb[0].mxu0 %v1413
    %v1452 = vpop.f32.mrb[0].mxu0
    %v1453 = vadd.f32 0.0, %v1452
    %v1454 = vpop.f32.mrb[0].mxu0
    %v1455 = vpop.f32.mrb[0].mxu0
    %v1456 = vpop.f32.mrb[0].mxu0
    %1457 = vdwg.mxu0
    %v1459 = vsel %vm1319, %v1274, 0
    %v1462 = vsel %vm1319, %v1290, 0
    %1464 = vmatprep.subr.bf16.mxu0 0
    %1465 = vmatpush1.bf16.xpose.msra.mxu0 %v1462
    %1466 = vmatprep.subr.bf16.mxu0 0
    %1467 = vmatpush1.bf16.xpose.msra.mxu0 0
    %1468 = vmatprep.subr.bf16.mxu0 0
    %1469 = vmatpush1.bf16.xpose.msra.mxu0 0
    %1470 = vmatprep.subr.bf16.mxu0 0
    %1471 = vmatpush1.bf16.xpose.msra.mxu0 0
    %1472 = vmatprep.subr.bf16.mxu0 0
    %1473 = vmatpush1.bf16.xpose.msra.mxu0 0
    %1474 = vmatprep.subr.bf16.mxu0 0
    %1475 = vmatpush1.bf16.xpose.msra.mxu0 0
    %1476 = vmatprep.subr.bf16.mxu0 0
    %1477 = vmatpush1.bf16.xpose.msra.mxu0 0
    %1478 = vmatprep.subr.bf16.mxu0 0
    %1479 = vmatpush1.bf16.xpose.msra.mxu0 0
    %1480 = vmatprep.subr.bf16.mxu0 0
    %1481 = vmatpush1.bf16.xpose.msra.mxu0 0
    %1482 = vmatprep.subr.bf16.mxu0 0
    %1483 = vmatpush1.bf16.xpose.msra.mxu0 0
    %1484 = vmatprep.subr.bf16.mxu0 0
    %1485 = vmatpush1.bf16.xpose.msra.mxu0 0
    %1486 = vmatprep.subr.bf16.mxu0 0
    %1487 = vmatpush1.bf16.xpose.msra.mxu0 0
    %1488 = vmatprep.subr.bf16.mxu0 0
    %1489 = vmatpush1.bf16.xpose.msra.mxu0 0
    %1490 = vmatprep.subr.bf16.mxu0 0
    %1491 = vmatpush1.bf16.xpose.msra.mxu0 0
    %1492 = vmatprep.subr.bf16.mxu0 0
    %1493 = vmatpush1.bf16.xpose.msra.mxu0 0
    %1494 = vmatprep.subr.bf16.mxu0 0
    %1495 = vmatpush1.bf16.xpose.msra.mxu0 0
    %1496 = vmatprep.mubr.bf16.mxu0 0
    %1497 = vmatmul.mubr.bf16.gmra.mrb[0].mxu0 %v1459
    %v1498 = vpop.f32.mrb[0].mxu0
    %v1499 = vadd.f32 0.0, %v1498
    %v1500 = vpop.f32.mrb[0].mxu0
    %v1501 = vpop.f32.mrb[0].mxu0
    %v1502 = vpop.f32.mrb[0].mxu0
    %1503 = vdwg.mxu0
    %v1505 = vsel %vm1319, %v1275, 0
    %v1508 = vsel %vm1319, %v1291, 0
    %1510 = vmatprep.subr.bf16.mxu0 0
    %1511 = vmatpush1.bf16.xpose.msra.mxu0 %v1508
    %1512 = vmatprep.subr.bf16.mxu0 0
    %1513 = vmatpush1.bf16.xpose.msra.mxu0 0
    %1514 = vmatprep.subr.bf16.mxu0 0
    %1515 = vmatpush1.bf16.xpose.msra.mxu0 0
    %1516 = vmatprep.subr.bf16.mxu0 0
    %1517 = vmatpush1.bf16.xpose.msra.mxu0 0
    %1518 = vmatprep.subr.bf16.mxu0 0
    %1519 = vmatpush1.bf16.xpose.msra.mxu0 0
    %1520 = vmatprep.subr.bf16.mxu0 0
    %1521 = vmatpush1.bf16.xpose.msra.mxu0 0
    %1522 = vmatprep.subr.bf16.mxu0 0
    %1523 = vmatpush1.bf16.xpose.msra.mxu0 0
    %1524 = vmatprep.subr.bf16.mxu0 0
    %1525 = vmatpush1.bf16.xpose.msra.mxu0 0
    %1526 = vmatprep.subr.bf16.mxu0 0
    %1527 = vmatpush1.bf16.xpose.msra.mxu0 0
    %1528 = vmatprep.subr.bf16.mxu0 0
    %1529 = vmatpush1.bf16.xpose.msra.mxu0 0
    %1530 = vmatprep.subr.bf16.mxu0 0
    %1531 = vmatpush1.bf16.xpose.msra.mxu0 0
    %1532 = vmatprep.subr.bf16.mxu0 0
    %1533 = vmatpush1.bf16.xpose.msra.mxu0 0
    %1534 = vmatprep.subr.bf16.mxu0 0
    %1535 = vmatpush1.bf16.xpose.msra.mxu0 0
    %1536 = vmatprep.subr.bf16.mxu0 0
    %1537 = vmatpush1.bf16.xpose.msra.mxu0 0
    %1538 = vmatprep.subr.bf16.mxu0 0
    %1539 = vmatpush1.bf16.xpose.msra.mxu0 0
    %1540 = vmatprep.subr.bf16.mxu0 0
    %1541 = vmatpush1.bf16.xpose.msra.mxu0 0
    %1542 = vmatprep.mubr.bf16.mxu0 0
    %1543 = vmatmul.mubr.bf16.gmra.mrb[0].mxu0 %v1505
    %v1544 = vpop.f32.mrb[0].mxu0
    %v1545 = vadd.f32 0.0, %v1544
    %v1546 = vpop.f32.mrb[0].mxu0
    %v1547 = vpop.f32.mrb[0].mxu0
    %v1548 = vpop.f32.mrb[0].mxu0
    %1549 = vdwg.mxu0
    %v1551 = vsel %vm1319, %v1276, 0
    %v1554 = vsel %vm1319, %v1292, 0
    %1556 = vmatprep.subr.bf16.mxu0 0
    %1557 = vmatpush1.bf16.xpose.msra.mxu0 %v1554
    %1558 = vmatprep.subr.bf16.mxu0 0
    %1559 = vmatpush1.bf16.xpose.msra.mxu0 0
    %1560 = vmatprep.subr.bf16.mxu0 0
    %1561 = vmatpush1.bf16.xpose.msra.mxu0 0
    %1562 = vmatprep.subr.bf16.mxu0 0
    %1563 = vmatpush1.bf16.xpose.msra.mxu0 0
    %1564 = vmatprep.subr.bf16.mxu0 0
    %1565 = vmatpush1.bf16.xpose.msra.mxu0 0
    %1566 = vmatprep.subr.bf16.mxu0 0
    %1567 = vmatpush1.bf16.xpose.msra.mxu0 0
    %1568 = vmatprep.subr.bf16.mxu0 0
    %1569 = vmatpush1.bf16.xpose.msra.mxu0 0
    %1570 = vmatprep.subr.bf16.mxu0 0
    %1571 = vmatpush1.bf16.xpose.msra.mxu0 0
    %1572 = vmatprep.subr.bf16.mxu0 0
    %1573 = vmatpush1.bf16.xpose.msra.mxu0 0
    %1574 = vmatprep.subr.bf16.mxu0 0
    %1575 = vmatpush1.bf16.xpose.msra.mxu0 0
    %1576 = vmatprep.subr.bf16.mxu0 0
    %1577 = vmatpush1.bf16.xpose.msra.mxu0 0
    %1578 = vmatprep.subr.bf16.mxu0 0
    %1579 = vmatpush1.bf16.xpose.msra.mxu0 0
    %1580 = vmatprep.subr.bf16.mxu0 0
    %1581 = vmatpush1.bf16.xpose.msra.mxu0 0
    %1582 = vmatprep.subr.bf16.mxu0 0
    %1583 = vmatpush1.bf16.xpose.msra.mxu0 0
    %1584 = vmatprep.subr.bf16.mxu0 0
    %1585 = vmatpush1.bf16.xpose.msra.mxu0 0
    %1586 = vmatprep.subr.bf16.mxu0 0
    %1587 = vmatpush1.bf16.xpose.msra.mxu0 0
    %1588 = vmatprep.mubr.bf16.mxu0 0
    %1589 = vmatmul.mubr.bf16.gmra.mrb[0].mxu0 %v1551
    %v1590 = vpop.f32.mrb[0].mxu0
    %v1591 = vadd.f32 0.0, %v1590
    %v1592 = vpop.f32.mrb[0].mxu0
    %v1593 = vpop.f32.mrb[0].mxu0
    %v1594 = vpop.f32.mrb[0].mxu0
    %1595 = vdwg.mxu0
    %v1597 = vsel %vm1319, %v1277, 0
    %v1600 = vsel %vm1319, %v1293, 0
    %1602 = vmatprep.subr.bf16.mxu0 0
    %1603 = vmatpush1.bf16.xpose.msra.mxu0 %v1600
    %1604 = vmatprep.subr.bf16.mxu0 0
    %1605 = vmatpush1.bf16.xpose.msra.mxu0 0
    %1606 = vmatprep.subr.bf16.mxu0 0
    %1607 = vmatpush1.bf16.xpose.msra.mxu0 0
    %1608 = vmatprep.subr.bf16.mxu0 0
    %1609 = vmatpush1.bf16.xpose.msra.mxu0 0
    %1610 = vmatprep.subr.bf16.mxu0 0
    %1611 = vmatpush1.bf16.xpose.msra.mxu0 0
    %1612 = vmatprep.subr.bf16.mxu0 0
    %1613 = vmatpush1.bf16.xpose.msra.mxu0 0
    %1614 = vmatprep.subr.bf16.mxu0 0
    %1615 = vmatpush1.bf16.xpose.msra.mxu0 0
    %1616 = vmatprep.subr.bf16.mxu0 0
    %1617 = vmatpush1.bf16.xpose.msra.mxu0 0
    %1618 = vmatprep.subr.bf16.mxu0 0
    %1619 = vmatpush1.bf16.xpose.msra.mxu0 0
    %1620 = vmatprep.subr.bf16.mxu0 0
    %1621 = vmatpush1.bf16.xpose.msra.mxu0 0
    %1622 = vmatprep.subr.bf16.mxu0 0
    %1623 = vmatpush1.bf16.xpose.msra.mxu0 0
    %1624 = vmatprep.subr.bf16.mxu0 0
    %1625 = vmatpush1.bf16.xpose.msra.mxu0 0
    %1626 = vmatprep.subr.bf16.mxu0 0
    %1627 = vmatpush1.bf16.xpose.msra.mxu0 0
    %1628 = vmatprep.subr.bf16.mxu0 0
    %1629 = vmatpush1.bf16.xpose.msra.mxu0 0
    %1630 = vmatprep.subr.bf16.mxu0 0
    %1631 = vmatpush1.bf16.xpose.msra.mxu0 0
    %1632 = vmatprep.subr.bf16.mxu0 0
    %1633 = vmatpush1.bf16.xpose.msra.mxu0 0
    %1634 = vmatprep.mubr.bf16.mxu0 0
    %1635 = vmatmul.mubr.bf16.gmra.mrb[0].mxu0 %v1597
    %v1636 = vpop.f32.mrb[0].mxu0
    %v1637 = vadd.f32 0.0, %v1636
    %v1638 = vpop.f32.mrb[0].mxu0
    %v1639 = vpop.f32.mrb[0].mxu0
    %v1640 = vpop.f32.mrb[0].mxu0
    %1641 = vdwg.mxu0
    %v1643 = vsel %vm1319, %v1278, 0
    %v1646 = vsel %vm1319, %v1294, 0
    %1648 = vmatprep.subr.bf16.mxu0 0
    %1649 = vmatpush1.bf16.xpose.msra.mxu0 %v1646
    %1650 = vmatprep.subr.bf16.mxu0 0
    %1651 = vmatpush1.bf16.xpose.msra.mxu0 0
    %1652 = vmatprep.subr.bf16.mxu0 0
    %1653 = vmatpush1.bf16.xpose.msra.mxu0 0
    %1654 = vmatprep.subr.bf16.mxu0 0
    %1655 = vmatpush1.bf16.xpose.msra.mxu0 0
    %1656 = vmatprep.subr.bf16.mxu0 0
    %1657 = vmatpush1.bf16.xpose.msra.mxu0 0
    %1658 = vmatprep.subr.bf16.mxu0 0
    %1659 = vmatpush1.bf16.xpose.msra.mxu0 0
    %1660 = vmatprep.subr.bf16.mxu0 0
    %1661 = vmatpush1.bf16.xpose.msra.mxu0 0
    %1662 = vmatprep.subr.bf16.mxu0 0
    %1663 = vmatpush1.bf16.xpose.msra.mxu0 0
    %1664 = vmatprep.subr.bf16.mxu0 0
    %1665 = vmatpush1.bf16.xpose.msra.mxu0 0
    %1666 = vmatprep.subr.bf16.mxu0 0
    %1667 = vmatpush1.bf16.xpose.msra.mxu0 0
    %1668 = vmatprep.subr.bf16.mxu0 0
    %1669 = vmatpush1.bf16.xpose.msra.mxu0 0
    %1670 = vmatprep.subr.bf16.mxu0 0
    %1671 = vmatpush1.bf16.xpose.msra.mxu0 0
    %1672 = vmatprep.subr.bf16.mxu0 0
    %1673 = vmatpush1.bf16.xpose.msra.mxu0 0
    %1674 = vmatprep.subr.bf16.mxu0 0
    %1675 = vmatpush1.bf16.xpose.msra.mxu0 0
    %1676 = vmatprep.subr.bf16.mxu0 0
    %1677 = vmatpush1.bf16.xpose.msra.mxu0 0
    %1678 = vmatprep.subr.bf16.mxu0 0
    %1679 = vmatpush1.bf16.xpose.msra.mxu0 0
    %1680 = vmatprep.mubr.bf16.mxu0 0
    %1681 = vmatmul.mubr.bf16.gmra.mrb[0].mxu0 %v1643
    %v1682 = vpop.f32.mrb[0].mxu0
    %v1683 = vadd.f32 0.0, %v1682
    %v1684 = vpop.f32.mrb[0].mxu0
    %v1685 = vpop.f32.mrb[0].mxu0
    %v1686 = vpop.f32.mrb[0].mxu0
    %1687 = vdwg.mxu0
    %v1689 = vsel %vm1319, %v1279, 0
    %v1692 = vsel %vm1319, %v1295, 0
    %1694 = vmatprep.subr.bf16.mxu0 0
    %1695 = vmatpush1.bf16.xpose.msra.mxu0 %v1692
    %1696 = vmatprep.subr.bf16.mxu0 0
    %1697 = vmatpush1.bf16.xpose.msra.mxu0 0
    %1698 = vmatprep.subr.bf16.mxu0 0
    %1699 = vmatpush1.bf16.xpose.msra.mxu0 0
    %1700 = vmatprep.subr.bf16.mxu0 0
    %1701 = vmatpush1.bf16.xpose.msra.mxu0 0
    %1702 = vmatprep.subr.bf16.mxu0 0
    %1703 = vmatpush1.bf16.xpose.msra.mxu0 0
    %1704 = vmatprep.subr.bf16.mxu0 0
    %1705 = vmatpush1.bf16.xpose.msra.mxu0 0
    %1706 = vmatprep.subr.bf16.mxu0 0
    %1707 = vmatpush1.bf16.xpose.msra.mxu0 0
    %1708 = vmatprep.subr.bf16.mxu0 0
    %1709 = vmatpush1.bf16.xpose.msra.mxu0 0
    %1710 = vmatprep.subr.bf16.mxu0 0
    %1711 = vmatpush1.bf16.xpose.msra.mxu0 0
    %1712 = vmatprep.subr.bf16.mxu0 0
    %1713 = vmatpush1.bf16.xpose.msra.mxu0 0
    %1714 = vmatprep.subr.bf16.mxu0 0
    %1715 = vmatpush1.bf16.xpose.msra.mxu0 0
    %1716 = vmatprep.subr.bf16.mxu0 0
    %1717 = vmatpush1.bf16.xpose.msra.mxu0 0
    %1718 = vmatprep.subr.bf16.mxu0 0
    %1719 = vmatpush1.bf16.xpose.msra.mxu0 0
    %1720 = vmatprep.subr.bf16.mxu0 0
    %1721 = vmatpush1.bf16.xpose.msra.mxu0 0
    %1722 = vmatprep.subr.bf16.mxu0 0
    %1723 = vmatpush1.bf16.xpose.msra.mxu0 0
    %1724 = vmatprep.subr.bf16.mxu0 0
    %1725 = vmatpush1.bf16.xpose.msra.mxu0 0
    %1726 = vmatprep.mubr.bf16.mxu0 0
    %1727 = vmatmul.mubr.bf16.gmra.mrb[0].mxu0 %v1689
    %v1728 = vpop.f32.mrb[0].mxu0
    %v1729 = vadd.f32 0.0, %v1728
    %v1730 = vpop.f32.mrb[0].mxu0
    %v1731 = vpop.f32.mrb[0].mxu0
    %v1732 = vpop.f32.mrb[0].mxu0
    %1733 = vdwg.mxu0
    %v1735 = vsel %vm1319, %v1280, 0
    %v1738 = vsel %vm1319, %v1296, 0
    %1740 = vmatprep.subr.bf16.mxu0 0
    %1741 = vmatpush1.bf16.xpose.msra.mxu0 %v1738
    %1742 = vmatprep.subr.bf16.mxu0 0
    %1743 = vmatpush1.bf16.xpose.msra.mxu0 0
    %1744 = vmatprep.subr.bf16.mxu0 0
    %1745 = vmatpush1.bf16.xpose.msra.mxu0 0
    %1746 = vmatprep.subr.bf16.mxu0 0
    %1747 = vmatpush1.bf16.xpose.msra.mxu0 0
    %1748 = vmatprep.subr.bf16.mxu0 0
    %1749 = vmatpush1.bf16.xpose.msra.mxu0 0
    %1750 = vmatprep.subr.bf16.mxu0 0
    %1751 = vmatpush1.bf16.xpose.msra.mxu0 0
    %1752 = vmatprep.subr.bf16.mxu0 0
    %1753 = vmatpush1.bf16.xpose.msra.mxu0 0
    %1754 = vmatprep.subr.bf16.mxu0 0
    %1755 = vmatpush1.bf16.xpose.msra.mxu0 0
    %1756 = vmatprep.subr.bf16.mxu0 0
    %1757 = vmatpush1.bf16.xpose.msra.mxu0 0
    %1758 = vmatprep.subr.bf16.mxu0 0
    %1759 = vmatpush1.bf16.xpose.msra.mxu0 0
    %1760 = vmatprep.subr.bf16.mxu0 0
    %1761 = vmatpush1.bf16.xpose.msra.mxu0 0
    %1762 = vmatprep.subr.bf16.mxu0 0
    %1763 = vmatpush1.bf16.xpose.msra.mxu0 0
    %1764 = vmatprep.subr.bf16.mxu0 0
    %1765 = vmatpush1.bf16.xpose.msra.mxu0 0
    %1766 = vmatprep.subr.bf16.mxu0 0
    %1767 = vmatpush1.bf16.xpose.msra.mxu0 0
    %1768 = vmatprep.subr.bf16.mxu0 0
    %1769 = vmatpush1.bf16.xpose.msra.mxu0 0
    %1770 = vmatprep.subr.bf16.mxu0 0
    %1771 = vmatpush1.bf16.xpose.msra.mxu0 0
    %1772 = vmatprep.mubr.bf16.mxu0 0
    %1773 = vmatmul.mubr.bf16.gmra.mrb[0].mxu0 %v1735
    %v1774 = vpop.f32.mrb[0].mxu0
    %v1775 = vadd.f32 0.0, %v1774
    %v1776 = vpop.f32.mrb[0].mxu0
    %v1777 = vpop.f32.mrb[0].mxu0
    %v1778 = vpop.f32.mrb[0].mxu0
    %1779 = vdwg.mxu0
    %v1781 = vsel %vm1319, %v1281, 0
    %v1784 = vsel %vm1319, %v1297, 0
    %1786 = vmatprep.subr.bf16.mxu0 0
    %1787 = vmatpush1.bf16.xpose.msra.mxu0 %v1784
    %1788 = vmatprep.subr.bf16.mxu0 0
    %1789 = vmatpush1.bf16.xpose.msra.mxu0 0
    %1790 = vmatprep.subr.bf16.mxu0 0
    %1791 = vmatpush1.bf16.xpose.msra.mxu0 0
    %1792 = vmatprep.subr.bf16.mxu0 0
    %1793 = vmatpush1.bf16.xpose.msra.mxu0 0
    %1794 = vmatprep.subr.bf16.mxu0 0
    %1795 = vmatpush1.bf16.xpose.msra.mxu0 0
    %1796 = vmatprep.subr.bf16.mxu0 0
    %1797 = vmatpush1.bf16.xpose.msra.mxu0 0
    %1798 = vmatprep.subr.bf16.mxu0 0
    %1799 = vmatpush1.bf16.xpose.msra.mxu0 0
    %1800 = vmatprep.subr.bf16.mxu0 0
    %1801 = vmatpush1.bf16.xpose.msra.mxu0 0
    %1802 = vmatprep.subr.bf16.mxu0 0
    %1803 = vmatpush1.bf16.xpose.msra.mxu0 0
    %1804 = vmatprep.subr.bf16.mxu0 0
    %1805 = vmatpush1.bf16.xpose.msra.mxu0 0
    %1806 = vmatprep.subr.bf16.mxu0 0
    %1807 = vmatpush1.bf16.xpose.msra.mxu0 0
    %1808 = vmatprep.subr.bf16.mxu0 0
    %1809 = vmatpush1.bf16.xpose.msra.mxu0 0
    %1810 = vmatprep.subr.bf16.mxu0 0
    %1811 = vmatpush1.bf16.xpose.msra.mxu0 0
    %1812 = vmatprep.subr.bf16.mxu0 0
    %1813 = vmatpush1.bf16.xpose.msra.mxu0 0
    %1814 = vmatprep.subr.bf16.mxu0 0
    %1815 = vmatpush1.bf16.xpose.msra.mxu0 0
    %1816 = vmatprep.subr.bf16.mxu0 0
    %1817 = vmatpush1.bf16.xpose.msra.mxu0 0
    %1818 = vmatprep.mubr.bf16.mxu0 0
    %1819 = vmatmul.mubr.bf16.gmra.mrb[0].mxu0 %v1781
    %v1820 = vpop.f32.mrb[0].mxu0
    %v1821 = vadd.f32 0.0, %v1820
    %v1822 = vpop.f32.mrb[0].mxu0
    %v1823 = vpop.f32.mrb[0].mxu0
    %v1824 = vpop.f32.mrb[0].mxu0
    %1825 = vdwg.mxu0
    %v1827 = vsel %vm1319, %v1282, 0
    %v1830 = vsel %vm1319, %v1298, 0
    %1832 = vmatprep.subr.bf16.mxu0 0
    %1833 = vmatpush1.bf16.xpose.msra.mxu0 %v1830
    %1834 = vmatprep.subr.bf16.mxu0 0
    %1835 = vmatpush1.bf16.xpose.msra.mxu0 0
    %1836 = vmatprep.subr.bf16.mxu0 0
    %1837 = vmatpush1.bf16.xpose.msra.mxu0 0
    %1838 = vmatprep.subr.bf16.mxu0 0
    %1839 = vmatpush1.bf16.xpose.msra.mxu0 0
    %1840 = vmatprep.subr.bf16.mxu0 0
    %1841 = vmatpush1.bf16.xpose.msra.mxu0 0
    %1842 = vmatprep.subr.bf16.mxu0 0
    %1843 = vmatpush1.bf16.xpose.msra.mxu0 0
    %1844 = vmatprep.subr.bf16.mxu0 0
    %1845 = vmatpush1.bf16.xpose.msra.mxu0 0
    %1846 = vmatprep.subr.bf16.mxu0 0
    %1847 = vmatpush1.bf16.xpose.msra.mxu0 0
    %1848 = vmatprep.subr.bf16.mxu0 0
    %1849 = vmatpush1.bf16.xpose.msra.mxu0 0
    %1850 = vmatprep.subr.bf16.mxu0 0
    %1851 = vmatpush1.bf16.xpose.msra.mxu0 0
    %1852 = vmatprep.subr.bf16.mxu0 0
    %1853 = vmatpush1.bf16.xpose.msra.mxu0 0
    %1854 = vmatprep.subr.bf16.mxu0 0
    %1855 = vmatpush1.bf16.xpose.msra.mxu0 0
    %1856 = vmatprep.subr.bf16.mxu0 0
    %1857 = vmatpush1.bf16.xpose.msra.mxu0 0
    %1858 = vmatprep.subr.bf16.mxu0 0
    %1859 = vmatpush1.bf16.xpose.msra.mxu0 0
    %1860 = vmatprep.subr.bf16.mxu0 0
    %1861 = vmatpush1.bf16.xpose.msra.mxu0 0
    %1862 = vmatprep.subr.bf16.mxu0 0
    %1863 = vmatpush1.bf16.xpose.msra.mxu0 0
    %1864 = vmatprep.mubr.bf16.mxu0 0
    %1865 = vmatmul.mubr.bf16.gmra.mrb[0].mxu0 %v1827
    %v1866 = vpop.f32.mrb[0].mxu0
    %v1867 = vadd.f32 0.0, %v1866
    %v1868 = vpop.f32.mrb[0].mxu0
    %v1869 = vpop.f32.mrb[0].mxu0
    %v1870 = vpop.f32.mrb[0].mxu0
    %1871 = vdwg.mxu0
    %v1873 = vsel %vm1319, %v1283, 0
    %v1876 = vsel %vm1319, %v1299, 0
    %1878 = vmatprep.subr.bf16.mxu0 0
    %1879 = vmatpush1.bf16.xpose.msra.mxu0 %v1876
    %1880 = vmatprep.subr.bf16.mxu0 0
    %1881 = vmatpush1.bf16.xpose.msra.mxu0 0
    %1882 = vmatprep.subr.bf16.mxu0 0
    %1883 = vmatpush1.bf16.xpose.msra.mxu0 0
    %1884 = vmatprep.subr.bf16.mxu0 0
    %1885 = vmatpush1.bf16.xpose.msra.mxu0 0
    %1886 = vmatprep.subr.bf16.mxu0 0
    %1887 = vmatpush1.bf16.xpose.msra.mxu0 0
    %1888 = vmatprep.subr.bf16.mxu0 0
    %1889 = vmatpush1.bf16.xpose.msra.mxu0 0
    %1890 = vmatprep.subr.bf16.mxu0 0
    %1891 = vmatpush1.bf16.xpose.msra.mxu0 0
    %1892 = vmatprep.subr.bf16.mxu0 0
    %1893 = vmatpush1.bf16.xpose.msra.mxu0 0
    %1894 = vmatprep.subr.bf16.mxu0 0
    %1895 = vmatpush1.bf16.xpose.msra.mxu0 0
    %1896 = vmatprep.subr.bf16.mxu0 0
    %1897 = vmatpush1.bf16.xpose.msra.mxu0 0
    %1898 = vmatprep.subr.bf16.mxu0 0
    %1899 = vmatpush1.bf16.xpose.msra.mxu0 0
    %1900 = vmatprep.subr.bf16.mxu0 0
    %1901 = vmatpush1.bf16.xpose.msra.mxu0 0
    %1902 = vmatprep.subr.bf16.mxu0 0
    %1903 = vmatpush1.bf16.xpose.msra.mxu0 0
    %1904 = vmatprep.subr.bf16.mxu0 0
    %1905 = vmatpush1.bf16.xpose.msra.mxu0 0
    %1906 = vmatprep.subr.bf16.mxu0 0
    %1907 = vmatpush1.bf16.xpose.msra.mxu0 0
    %1908 = vmatprep.subr.bf16.mxu0 0
    %1909 = vmatpush1.bf16.xpose.msra.mxu0 0
    %1910 = vmatprep.mubr.bf16.mxu0 0
    %1911 = vmatmul.mubr.bf16.gmra.mrb[0].mxu0 %v1873
    %v1912 = vpop.f32.mrb[0].mxu0
    %v1913 = vadd.f32 0.0, %v1912
    %v1914 = vpop.f32.mrb[0].mxu0
    %v1915 = vpop.f32.mrb[0].mxu0
    %v1916 = vpop.f32.mrb[0].mxu0
    %1917 = vdwg.mxu0
    %v1919 = vsel %vm1319, %v1284, 0
    %v1922 = vsel %vm1319, %v1300, 0
    %1924 = vmatprep.subr.bf16.mxu0 0
    %1925 = vmatpush1.bf16.xpose.msra.mxu0 %v1922
    %1926 = vmatprep.subr.bf16.mxu0 0
    %1927 = vmatpush1.bf16.xpose.msra.mxu0 0
    %1928 = vmatprep.subr.bf16.mxu0 0
    %1929 = vmatpush1.bf16.xpose.msra.mxu0 0
    %1930 = vmatprep.subr.bf16.mxu0 0
    %1931 = vmatpush1.bf16.xpose.msra.mxu0 0
    %1932 = vmatprep.subr.bf16.mxu0 0
    %1933 = vmatpush1.bf16.xpose.msra.mxu0 0
    %1934 = vmatprep.subr.bf16.mxu0 0
    %1935 = vmatpush1.bf16.xpose.msra.mxu0 0
    %1936 = vmatprep.subr.bf16.mxu0 0
    %1937 = vmatpush1.bf16.xpose.msra.mxu0 0
    %1938 = vmatprep.subr.bf16.mxu0 0
    %1939 = vmatpush1.bf16.xpose.msra.mxu0 0
    %1940 = vmatprep.subr.bf16.mxu0 0
    %1941 = vmatpush1.bf16.xpose.msra.mxu0 0
    %1942 = vmatprep.subr.bf16.mxu0 0
    %1943 = vmatpush1.bf16.xpose.msra.mxu0 0
    %1944 = vmatprep.subr.bf16.mxu0 0
    %1945 = vmatpush1.bf16.xpose.msra.mxu0 0
    %1946 = vmatprep.subr.bf16.mxu0 0
    %1947 = vmatpush1.bf16.xpose.msra.mxu0 0
    %1948 = vmatprep.subr.bf16.mxu0 0
    %1949 = vmatpush1.bf16.xpose.msra.mxu0 0
    %1950 = vmatprep.subr.bf16.mxu0 0
    %1951 = vmatpush1.bf16.xpose.msra.mxu0 0
    %1952 = vmatprep.subr.bf16.mxu0 0
    %1953 = vmatpush1.bf16.xpose.msra.mxu0 0
    %1954 = vmatprep.subr.bf16.mxu0 0
    %1955 = vmatpush1.bf16.xpose.msra.mxu0 0
    %1956 = vmatprep.mubr.bf16.mxu0 0
    %1957 = vmatmul.mubr.bf16.gmra.mrb[0].mxu0 %v1919
    %v1958 = vpop.f32.mrb[0].mxu0
    %v1959 = vadd.f32 0.0, %v1958
    %v1960 = vpop.f32.mrb[0].mxu0
    %v1961 = vpop.f32.mrb[0].mxu0
    %v1962 = vpop.f32.mrb[0].mxu0
    %1963 = vdwg.mxu0
    %v1965 = vsel %vm1319, %v1285, 0
    %v1968 = vsel %vm1319, %v1301, 0
    %1970 = vmatprep.subr.bf16.mxu0 0
    %1971 = vmatpush1.bf16.xpose.msra.mxu0 %v1968
    %1972 = vmatprep.subr.bf16.mxu0 0
    %1973 = vmatpush1.bf16.xpose.msra.mxu0 0
    %1974 = vmatprep.subr.bf16.mxu0 0
    %1975 = vmatpush1.bf16.xpose.msra.mxu0 0
    %1976 = vmatprep.subr.bf16.mxu0 0
    %1977 = vmatpush1.bf16.xpose.msra.mxu0 0
    %1978 = vmatprep.subr.bf16.mxu0 0
    %1979 = vmatpush1.bf16.xpose.msra.mxu0 0
    %1980 = vmatprep.subr.bf16.mxu0 0
    %1981 = vmatpush1.bf16.xpose.msra.mxu0 0
    %1982 = vmatprep.subr.bf16.mxu0 0
    %1983 = vmatpush1.bf16.xpose.msra.mxu0 0
    %1984 = vmatprep.subr.bf16.mxu0 0
    %1985 = vmatpush1.bf16.xpose.msra.mxu0 0
    %1986 = vmatprep.subr.bf16.mxu0 0
    %1987 = vmatpush1.bf16.xpose.msra.mxu0 0
    %1988 = vmatprep.subr.bf16.mxu0 0
    %1989 = vmatpush1.bf16.xpose.msra.mxu0 0
    %1990 = vmatprep.subr.bf16.mxu0 0
    %1991 = vmatpush1.bf16.xpose.msra.mxu0 0
    %1992 = vmatprep.subr.bf16.mxu0 0
    %1993 = vmatpush1.bf16.xpose.msra.mxu0 0
    %1994 = vmatprep.subr.bf16.mxu0 0
    %1995 = vmatpush1.bf16.xpose.msra.mxu0 0
    %1996 = vmatprep.subr.bf16.mxu0 0
    %1997 = vmatpush1.bf16.xpose.msra.mxu0 0
    %1998 = vmatprep.subr.bf16.mxu0 0
    %1999 = vmatpush1.bf16.xpose.msra.mxu0 0
    %2000 = vmatprep.subr.bf16.mxu0 0
    %2001 = vmatpush1.bf16.xpose.msra.mxu0 0
    %2002 = vmatprep.mubr.bf16.mxu0 0
    %2003 = vmatmul.mubr.bf16.gmra.mrb[0].mxu0 %v1965
    %v2004 = vpop.f32.mrb[0].mxu0
    %v2005 = vadd.f32 0.0, %v2004
    %v2006 = vpop.f32.mrb[0].mxu0
    %v2007 = vpop.f32.mrb[0].mxu0
    %v2008 = vpop.f32.mrb[0].mxu0
    %2009 = vdwg.mxu0
    %v2011 = vsel %vm1319, %v1286, 0
    %v2014 = vsel %vm1319, %v1302, 0
    %2016 = vmatprep.subr.bf16.mxu0 0
    %2017 = vmatpush1.bf16.xpose.msra.mxu0 %v2014
    %2018 = vmatprep.subr.bf16.mxu0 0
    %2019 = vmatpush1.bf16.xpose.msra.mxu0 0
    %2020 = vmatprep.subr.bf16.mxu0 0
    %2021 = vmatpush1.bf16.xpose.msra.mxu0 0
    %2022 = vmatprep.subr.bf16.mxu0 0
    %2023 = vmatpush1.bf16.xpose.msra.mxu0 0
    %2024 = vmatprep.subr.bf16.mxu0 0
    %2025 = vmatpush1.bf16.xpose.msra.mxu0 0
    %2026 = vmatprep.subr.bf16.mxu0 0
    %2027 = vmatpush1.bf16.xpose.msra.mxu0 0
    %2028 = vmatprep.subr.bf16.mxu0 0
    %2029 = vmatpush1.bf16.xpose.msra.mxu0 0
    %2030 = vmatprep.subr.bf16.mxu0 0
    %2031 = vmatpush1.bf16.xpose.msra.mxu0 0
    %2032 = vmatprep.subr.bf16.mxu0 0
    %2033 = vmatpush1.bf16.xpose.msra.mxu0 0
    %2034 = vmatprep.subr.bf16.mxu0 0
    %2035 = vmatpush1.bf16.xpose.msra.mxu0 0
    %2036 = vmatprep.subr.bf16.mxu0 0
    %2037 = vmatpush1.bf16.xpose.msra.mxu0 0
    %2038 = vmatprep.subr.bf16.mxu0 0
    %2039 = vmatpush1.bf16.xpose.msra.mxu0 0
    %2040 = vmatprep.subr.bf16.mxu0 0
    %2041 = vmatpush1.bf16.xpose.msra.mxu0 0
    %2042 = vmatprep.subr.bf16.mxu0 0
    %2043 = vmatpush1.bf16.xpose.msra.mxu0 0
    %2044 = vmatprep.subr.bf16.mxu0 0
    %2045 = vmatpush1.bf16.xpose.msra.mxu0 0
    %2046 = vmatprep.subr.bf16.mxu0 0
    %2047 = vmatpush1.bf16.xpose.msra.mxu0 0
    %2048 = vmatprep.mubr.bf16.mxu0 0
    %2049 = vmatmul.mubr.bf16.gmra.mrb[0].mxu0 %v2011
    %v2050 = vpop.f32.mrb[0].mxu0
    %v2051 = vadd.f32 0.0, %v2050
    %v2052 = vpop.f32.mrb[0].mxu0
    %v2053 = vpop.f32.mrb[0].mxu0
    %v2054 = vpop.f32.mrb[0].mxu0
    %2055 = vdwg.mxu0
    %vm2056 = vcmask 64512
    %v2057 = vsel %vm2056, %v1361, -inf
    %2058 = vmax.xlane.f32.xlu0 %v2057
    %v2059 = vpop.xlane.xlu0 %2058
    %v2060 = vsel %vm2056, %v1407, -inf
    %2061 = vmax.xlane.f32.xlu0 %v2060
    %v2062 = vpop.xlane.xlu0 %2061
    %v2063 = vsel %vm2056, %v1453, -inf
    %2064 = vmax.xlane.f32.xlu0 %v2063
    %v2065 = vpop.xlane.xlu0 %2064
    %v2066 = vsel %vm2056, %v1499, -inf
    %2067 = vmax.xlane.f32.xlu0 %v2066
    %v2068 = vpop.xlane.xlu0 %2067
    %v2069 = vsel %vm2056, %v1545, -inf
    %2070 = vmax.xlane.f32.xlu0 %v2069
    %v2071 = vpop.xlane.xlu0 %2070
    %v2072 = vsel %vm2056, %v1591, -inf
    %2073 = vmax.xlane.f32.xlu0 %v2072
    %v2074 = vpop.xlane.xlu0 %2073
    %v2075 = vsel %vm2056, %v1637, -inf
    %2076 = vmax.xlane.f32.xlu0 %v2075
    %v2077 = vpop.xlane.xlu0 %2076
    %v2078 = vsel %vm2056, %v1683, -inf
    %2079 = vmax.xlane.f32.xlu0 %v2078
    %v2080 = vpop.xlane.xlu0 %2079
    %v2081 = vsel %vm2056, %v1729, -inf
    %2082 = vmax.xlane.f32.xlu0 %v2081
    %v2083 = vpop.xlane.xlu0 %2082
    %v2084 = vsel %vm2056, %v1775, -inf
    %2085 = vmax.xlane.f32.xlu0 %v2084
    %v2086 = vpop.xlane.xlu0 %2085
    %v2087 = vsel %vm2056, %v1821, -inf
    %2088 = vmax.xlane.f32.xlu0 %v2087
    %v2089 = vpop.xlane.xlu0 %2088
    %v2090 = vsel %vm2056, %v1867, -inf
    %2091 = vmax.xlane.f32.xlu0 %v2090
    %v2092 = vpop.xlane.xlu0 %2091
    %v2093 = vsel %vm2056, %v1913, -inf
    %2094 = vmax.xlane.f32.xlu0 %v2093
    %v2095 = vpop.xlane.xlu0 %2094
    %v2096 = vsel %vm2056, %v1959, -inf
    %2097 = vmax.xlane.f32.xlu0 %v2096
    %v2098 = vpop.xlane.xlu0 %2097
    %v2099 = vsel %vm2056, %v2005, -inf
    %2100 = vmax.xlane.f32.xlu0 %v2099
    %v2101 = vpop.xlane.xlu0 %2100
    %v2102 = vsel %vm2056, %v2051, -inf
    %2103 = vmax.xlane.f32.xlu0 %v2102
    %v2104 = vpop.xlane.xlu0 %2103
    %v2105 = vsub.f32 %v1361, %v2059
    %v2106 = vsub.f32 %v1407, %v2062
    %v2107 = vsub.f32 %v1453, %v2065
    %v2108 = vsub.f32 %v1499, %v2068
    %v2109 = vsub.f32 %v1545, %v2071
    %v2110 = vsub.f32 %v1591, %v2074
    %v2111 = vsub.f32 %v1637, %v2077
    %v2112 = vsub.f32 %v1683, %v2080
    %v2113 = vsub.f32 %v1729, %v2083
    %v2114 = vsub.f32 %v1775, %v2086
    %v2115 = vsub.f32 %v1821, %v2089
    %v2116 = vsub.f32 %v1867, %v2092
    %v2117 = vsub.f32 %v1913, %v2095
    %v2118 = vsub.f32 %v1959, %v2098
    %v2119 = vsub.f32 %v2005, %v2101
    %v2120 = vsub.f32 %v2051, %v2104
    %v2121 = vmul.f32 %v2105, 1.442695
    %v2122 = vpow.pop %v2121
    %v2123 = vmul.f32 %v2106, 1.442695
    %v2124 = vpow.pop %v2123
    %v2125 = vmul.f32 %v2107, 1.442695
    %v2126 = vpow.pop %v2125
    %v2127 = vmul.f32 %v2108, 1.442695
    %v2128 = vpow.pop %v2127
    %v2129 = vmul.f32 %v2109, 1.442695
    %v2130 = vpow.pop %v2129
    %v2131 = vmul.f32 %v2110, 1.442695
    %v2132 = vpow.pop %v2131
    %v2133 = vmul.f32 %v2111, 1.442695
    %v2134 = vpow.pop %v2133
    %v2135 = vmul.f32 %v2112, 1.442695
    %v2136 = vpow.pop %v2135
    %v2137 = vmul.f32 %v2113, 1.442695
    %v2138 = vpow.pop %v2137
    %v2139 = vmul.f32 %v2114, 1.442695
    %v2140 = vpow.pop %v2139
    %v2141 = vmul.f32 %v2115, 1.442695
    %v2142 = vpow.pop %v2141
    %v2143 = vmul.f32 %v2116, 1.442695
    %v2144 = vpow.pop %v2143
    %v2145 = vmul.f32 %v2117, 1.442695
    %v2146 = vpow.pop %v2145
    %v2147 = vmul.f32 %v2118, 1.442695
    %v2148 = vpow.pop %v2147
    %v2149 = vmul.f32 %v2119, 1.442695
    %v2150 = vpow.pop %v2149
    %v2151 = vmul.f32 %v2120, 1.442695
    %v2152 = vpow.pop %v2151
    %v2153 = vsel %vm2056, %v2122, 0.0
    %2154 = vadd.xlane.f32.xlu0 %v2153
    %v2155 = vpop.xlane.xlu0 %2154
    %v2156 = vsel %vm2056, %v2124, 0.0
    %2157 = vadd.xlane.f32.xlu0 %v2156
    %v2158 = vpop.xlane.xlu0 %2157
    %v2159 = vsel %vm2056, %v2126, 0.0
    %2160 = vadd.xlane.f32.xlu0 %v2159
    %v2161 = vpop.xlane.xlu0 %2160
    %v2162 = vsel %vm2056, %v2128, 0.0
    %2163 = vadd.xlane.f32.xlu0 %v2162
    %v2164 = vpop.xlane.xlu0 %2163
    %v2165 = vsel %vm2056, %v2130, 0.0
    %2166 = vadd.xlane.f32.xlu0 %v2165
    %v2167 = vpop.xlane.xlu0 %2166
    %v2168 = vsel %vm2056, %v2132, 0.0
    %2169 = vadd.xlane.f32.xlu0 %v2168
    %v2170 = vpop.xlane.xlu0 %2169
    %v2171 = vsel %vm2056, %v2134, 0.0
    %2172 = vadd.xlane.f32.xlu0 %v2171
    %v2173 = vpop.xlane.xlu0 %2172
    %v2174 = vsel %vm2056, %v2136, 0.0
    %2175 = vadd.xlane.f32.xlu0 %v2174
    %v2176 = vpop.xlane.xlu0 %2175
    %v2177 = vsel %vm2056, %v2138, 0.0
    %2178 = vadd.xlane.f32.xlu0 %v2177
    %v2179 = vpop.xlane.xlu0 %2178
    %v2180 = vsel %vm2056, %v2140, 0.0
    %2181 = vadd.xlane.f32.xlu0 %v2180
    %v2182 = vpop.xlane.xlu0 %2181
    %v2183 = vsel %vm2056, %v2142, 0.0
    %2184 = vadd.xlane.f32.xlu0 %v2183
    %v2185 = vpop.xlane.xlu0 %2184
    %v2186 = vsel %vm2056, %v2144, 0.0
    %2187 = vadd.xlane.f32.xlu0 %v2186
    %v2188 = vpop.xlane.xlu0 %2187
    %v2189 = vsel %vm2056, %v2146, 0.0
    %2190 = vadd.xlane.f32.xlu0 %v2189
    %v2191 = vpop.xlane.xlu0 %2190
    %v2192 = vsel %vm2056, %v2148, 0.0
    %2193 = vadd.xlane.f32.xlu0 %v2192
    %v2194 = vpop.xlane.xlu0 %2193
    %v2195 = vsel %vm2056, %v2150, 0.0
    %2196 = vadd.xlane.f32.xlu0 %v2195
    %v2197 = vpop.xlane.xlu0 %2196
    %v2198 = vsel %vm2056, %v2152, 0.0
    %2199 = vadd.xlane.f32.xlu0 %v2198
    %v2200 = vpop.xlane.xlu0 %2199
    %v2201 = vrcp.pop %v2155
    %v2202 = vrcp.pop %v2158
    %v2203 = vrcp.pop %v2161
    %v2204 = vrcp.pop %v2164
    %v2205 = vrcp.pop %v2167
    %v2206 = vrcp.pop %v2170
    %v2207 = vrcp.pop %v2173
    %v2208 = vrcp.pop %v2176
    %v2209 = vrcp.pop %v2179
    %v2210 = vrcp.pop %v2182
    %v2211 = vrcp.pop %v2185
    %v2212 = vrcp.pop %v2188
    %v2213 = vrcp.pop %v2191
    %v2214 = vrcp.pop %v2194
    %v2215 = vrcp.pop %v2197
    %v2216 = vrcp.pop %v2200
    %v2217 = vmul.f32 %v2122, %v2201
    %v2218 = vmul.f32 %v2124, %v2202
    %v2219 = vmul.f32 %v2126, %v2203
    %v2220 = vmul.f32 %v2128, %v2204
    %v2221 = vmul.f32 %v2130, %v2205
    %v2222 = vmul.f32 %v2132, %v2206
    %v2223 = vmul.f32 %v2134, %v2207
    %v2224 = vmul.f32 %v2136, %v2208
    %v2225 = vmul.f32 %v2138, %v2209
    %v2226 = vmul.f32 %v2140, %v2210
    %v2227 = vmul.f32 %v2142, %v2211
    %v2228 = vmul.f32 %v2144, %v2212
    %v2229 = vmul.f32 %v2146, %v2213
    %v2230 = vmul.f32 %v2148, %v2214
    %v2231 = vmul.f32 %v2150, %v2215
    %v2232 = vmul.f32 %v2152, %v2216
    %v2233 = vpack.c.bf16 %v2217, %v2217
    %v2234 = vpack.c.bf16 %v2218, %v2218
    %v2235 = vpack.c.bf16 %v2219, %v2219
    %v2236 = vpack.c.bf16 %v2220, %v2220
    %v2237 = vpack.c.bf16 %v2221, %v2221
    %v2238 = vpack.c.bf16 %v2222, %v2222
    %v2239 = vpack.c.bf16 %v2223, %v2223
    %v2240 = vpack.c.bf16 %v2224, %v2224
    %v2241 = vpack.c.bf16 %v2225, %v2225
    %v2242 = vpack.c.bf16 %v2226, %v2226
    %v2243 = vpack.c.bf16 %v2227, %v2227
    %v2244 = vpack.c.bf16 %v2228, %v2228
    %v2245 = vpack.c.bf16 %v2229, %v2229
    %v2246 = vpack.c.bf16 %v2230, %v2230
    %v2247 = vpack.c.bf16 %v2231, %v2231
    %v2248 = vpack.c.bf16 %v2232, %v2232
    %v2250 = vsel %vm2056, %v2233, 0
    %vm2252 = vcmask 1043456
    %v2254 = vsel %vm2252, %v1303, 0
    %2256 = vmatprep.subr.bf16.mxu0 0
    %2257 = vmatpush1.bf16.msra.mxu0 %v2254
    %2258 = vmatprep.subr.bf16.mxu0 0
    %2259 = vmatpush1.bf16.msra.mxu0 0
    %2260 = vmatprep.subr.bf16.mxu0 0
    %2261 = vmatpush1.bf16.msra.mxu0 0
    %2262 = vmatprep.subr.bf16.mxu0 0
    %2263 = vmatpush1.bf16.msra.mxu0 0
    %2264 = vmatprep.subr.bf16.mxu0 0
    %2265 = vmatpush1.bf16.msra.mxu0 0
    %2266 = vmatprep.subr.bf16.mxu0 0
    %2267 = vmatpush1.bf16.msra.mxu0 0
    %2268 = vmatprep.subr.bf16.mxu0 0
    %2269 = vmatpush1.bf16.msra.mxu0 0
    %2270 = vmatprep.subr.bf16.mxu0 0
    %2271 = vmatpush1.bf16.msra.mxu0 0
    %2272 = vmatprep.subr.bf16.mxu0 0
    %2273 = vmatpush1.bf16.msra.mxu0 0
    %2274 = vmatprep.subr.bf16.mxu0 0
    %2275 = vmatpush1.bf16.msra.mxu0 0
    %2276 = vmatprep.subr.bf16.mxu0 0
    %2277 = vmatpush1.bf16.msra.mxu0 0
    %2278 = vmatprep.subr.bf16.mxu0 0
    %2279 = vmatpush1.bf16.msra.mxu0 0
    %2280 = vmatprep.subr.bf16.mxu0 0
    %2281 = vmatpush1.bf16.msra.mxu0 0
    %2282 = vmatprep.subr.bf16.mxu0 0
    %2283 = vmatpush1.bf16.msra.mxu0 0
    %2284 = vmatprep.subr.bf16.mxu0 0
    %2285 = vmatpush1.bf16.msra.mxu0 0
    %2286 = vmatprep.subr.bf16.mxu0 0
    %2287 = vmatpush1.bf16.msra.mxu0 0
    %2288 = vmatprep.mubr.bf16.mxu0 0
    %2289 = vmatmul.mubr.bf16.gmra.mrb[0].mxu0 %v2250
    %v2290 = vpop.f32.mrb[0].mxu0
    %v2291 = vadd.f32 0.0, %v2290
    %v2292 = vpop.f32.mrb[0].mxu0
    %v2293 = vpop.f32.mrb[0].mxu0
    %v2294 = vpop.f32.mrb[0].mxu0
    %2295 = vdwg.mxu0
    %v2297 = vsel %vm2056, %v2234, 0
    %v2300 = vsel %vm2252, %v1304, 0
    %2302 = vmatprep.subr.bf16.mxu0 0
    %2303 = vmatpush1.bf16.msra.mxu0 %v2300
    %2304 = vmatprep.subr.bf16.mxu0 0
    %2305 = vmatpush1.bf16.msra.mxu0 0
    %2306 = vmatprep.subr.bf16.mxu0 0
    %2307 = vmatpush1.bf16.msra.mxu0 0
    %2308 = vmatprep.subr.bf16.mxu0 0
    %2309 = vmatpush1.bf16.msra.mxu0 0
    %2310 = vmatprep.subr.bf16.mxu0 0
    %2311 = vmatpush1.bf16.msra.mxu0 0
    %2312 = vmatprep.subr.bf16.mxu0 0
    %2313 = vmatpush1.bf16.msra.mxu0 0
    %2314 = vmatprep.subr.bf16.mxu0 0
    %2315 = vmatpush1.bf16.msra.mxu0 0
    %2316 = vmatprep.subr.bf16.mxu0 0
    %2317 = vmatpush1.bf16.msra.mxu0 0
    %2318 = vmatprep.subr.bf16.mxu0 0
    %2319 = vmatpush1.bf16.msra.mxu0 0
    %2320 = vmatprep.subr.bf16.mxu0 0
    %2321 = vmatpush1.bf16.msra.mxu0 0
    %2322 = vmatprep.subr.bf16.mxu0 0
    %2323 = vmatpush1.bf16.msra.mxu0 0
    %2324 = vmatprep.subr.bf16.mxu0 0
    %2325 = vmatpush1.bf16.msra.mxu0 0
    %2326 = vmatprep.subr.bf16.mxu0 0
    %2327 = vmatpush1.bf16.msra.mxu0 0
    %2328 = vmatprep.subr.bf16.mxu0 0
    %2329 = vmatpush1.bf16.msra.mxu0 0
    %2330 = vmatprep.subr.bf16.mxu0 0
    %2331 = vmatpush1.bf16.msra.mxu0 0
    %2332 = vmatprep.subr.bf16.mxu0 0
    %2333 = vmatpush1.bf16.msra.mxu0 0
    %2334 = vmatprep.mubr.bf16.mxu0 0
    %2335 = vmatmul.mubr.bf16.gmra.mrb[0].mxu0 %v2297
    %v2336 = vpop.f32.mrb[0].mxu0
    %v2337 = vadd.f32 0.0, %v2336
    %v2338 = vpop.f32.mrb[0].mxu0
    %v2339 = vpop.f32.mrb[0].mxu0
    %v2340 = vpop.f32.mrb[0].mxu0
    %2341 = vdwg.mxu0
    %v2343 = vsel %vm2056, %v2235, 0
    %v2346 = vsel %vm2252, %v1305, 0
    %2348 = vmatprep.subr.bf16.mxu0 0
    %2349 = vmatpush1.bf16.msra.mxu0 %v2346
    %2350 = vmatprep.subr.bf16.mxu0 0
    %2351 = vmatpush1.bf16.msra.mxu0 0
    %2352 = vmatprep.subr.bf16.mxu0 0
    %2353 = vmatpush1.bf16.msra.mxu0 0
    %2354 = vmatprep.subr.bf16.mxu0 0
    %2355 = vmatpush1.bf16.msra.mxu0 0
    %2356 = vmatprep.subr.bf16.mxu0 0
    %2357 = vmatpush1.bf16.msra.mxu0 0
    %2358 = vmatprep.subr.bf16.mxu0 0
    %2359 = vmatpush1.bf16.msra.mxu0 0
    %2360 = vmatprep.subr.bf16.mxu0 0
    %2361 = vmatpush1.bf16.msra.mxu0 0
    %2362 = vmatprep.subr.bf16.mxu0 0
    %2363 = vmatpush1.bf16.msra.mxu0 0
    %2364 = vmatprep.subr.bf16.mxu0 0
    %2365 = vmatpush1.bf16.msra.mxu0 0
    %2366 = vmatprep.subr.bf16.mxu0 0
    %2367 = vmatpush1.bf16.msra.mxu0 0
    %2368 = vmatprep.subr.bf16.mxu0 0
    %2369 = vmatpush1.bf16.msra.mxu0 0
    %2370 = vmatprep.subr.bf16.mxu0 0
    %2371 = vmatpush1.bf16.msra.mxu0 0
    %2372 = vmatprep.subr.bf16.mxu0 0
    %2373 = vmatpush1.bf16.msra.mxu0 0
    %2374 = vmatprep.subr.bf16.mxu0 0
    %2375 = vmatpush1.bf16.msra.mxu0 0
    %2376 = vmatprep.subr.bf16.mxu0 0
    %2377 = vmatpush1.bf16.msra.mxu0 0
    %2378 = vmatprep.subr.bf16.mxu0 0
    %2379 = vmatpush1.bf16.msra.mxu0 0
    %2380 = vmatprep.mubr.bf16.mxu0 0
    %2381 = vmatmul.mubr.bf16.gmra.mrb[0].mxu0 %v2343
    %v2382 = vpop.f32.mrb[0].mxu0
    %v2383 = vadd.f32 0.0, %v2382
    %v2384 = vpop.f32.mrb[0].mxu0
    %v2385 = vpop.f32.mrb[0].mxu0
    %v2386 = vpop.f32.mrb[0].mxu0
    %2387 = vdwg.mxu0
    %v2389 = vsel %vm2056, %v2236, 0
    %v2392 = vsel %vm2252, %v1306, 0
    %2394 = vmatprep.subr.bf16.mxu0 0
    %2395 = vmatpush1.bf16.msra.mxu0 %v2392
    %2396 = vmatprep.subr.bf16.mxu0 0
    %2397 = vmatpush1.bf16.msra.mxu0 0
    %2398 = vmatprep.subr.bf16.mxu0 0
    %2399 = vmatpush1.bf16.msra.mxu0 0
    %2400 = vmatprep.subr.bf16.mxu0 0
    %2401 = vmatpush1.bf16.msra.mxu0 0
    %2402 = vmatprep.subr.bf16.mxu0 0
    %2403 = vmatpush1.bf16.msra.mxu0 0
    %2404 = vmatprep.subr.bf16.mxu0 0
    %2405 = vmatpush1.bf16.msra.mxu0 0
    %2406 = vmatprep.subr.bf16.mxu0 0
    %2407 = vmatpush1.bf16.msra.mxu0 0
    %2408 = vmatprep.subr.bf16.mxu0 0
    %2409 = vmatpush1.bf16.msra.mxu0 0
    %2410 = vmatprep.subr.bf16.mxu0 0
    %2411 = vmatpush1.bf16.msra.mxu0 0
    %2412 = vmatprep.subr.bf16.mxu0 0
    %2413 = vmatpush1.bf16.msra.mxu0 0
    %2414 = vmatprep.subr.bf16.mxu0 0
    %2415 = vmatpush1.bf16.msra.mxu0 0
    %2416 = vmatprep.subr.bf16.mxu0 0
    %2417 = vmatpush1.bf16.msra.mxu0 0
    %2418 = vmatprep.subr.bf16.mxu0 0
    %2419 = vmatpush1.bf16.msra.mxu0 0
    %2420 = vmatprep.subr.bf16.mxu0 0
    %2421 = vmatpush1.bf16.msra.mxu0 0
    %2422 = vmatprep.subr.bf16.mxu0 0
    %2423 = vmatpush1.bf16.msra.mxu0 0
    %2424 = vmatprep.subr.bf16.mxu0 0
    %2425 = vmatpush1.bf16.msra.mxu0 0
    %2426 = vmatprep.mubr.bf16.mxu0 0
    %2427 = vmatmul.mubr.bf16.gmra.mrb[0].mxu0 %v2389
    %v2428 = vpop.f32.mrb[0].mxu0
    %v2429 = vadd.f32 0.0, %v2428
    %v2430 = vpop.f32.mrb[0].mxu0
    %v2431 = vpop.f32.mrb[0].mxu0
    %v2432 = vpop.f32.mrb[0].mxu0
    %2433 = vdwg.mxu0
    %v2435 = vsel %vm2056, %v2237, 0
    %v2438 = vsel %vm2252, %v1307, 0
    %2440 = vmatprep.subr.bf16.mxu0 0
    %2441 = vmatpush1.bf16.msra.mxu0 %v2438
    %2442 = vmatprep.subr.bf16.mxu0 0
    %2443 = vmatpush1.bf16.msra.mxu0 0
    %2444 = vmatprep.subr.bf16.mxu0 0
    %2445 = vmatpush1.bf16.msra.mxu0 0
    %2446 = vmatprep.subr.bf16.mxu0 0
    %2447 = vmatpush1.bf16.msra.mxu0 0
    %2448 = vmatprep.subr.bf16.mxu0 0
    %2449 = vmatpush1.bf16.msra.mxu0 0
    %2450 = vmatprep.subr.bf16.mxu0 0
    %2451 = vmatpush1.bf16.msra.mxu0 0
    %2452 = vmatprep.subr.bf16.mxu0 0
    %2453 = vmatpush1.bf16.msra.mxu0 0
    %2454 = vmatprep.subr.bf16.mxu0 0
    %2455 = vmatpush1.bf16.msra.mxu0 0
    %2456 = vmatprep.subr.bf16.mxu0 0
    %2457 = vmatpush1.bf16.msra.mxu0 0
    %2458 = vmatprep.subr.bf16.mxu0 0
    %2459 = vmatpush1.bf16.msra.mxu0 0
    %2460 = vmatprep.subr.bf16.mxu0 0
    %2461 = vmatpush1.bf16.msra.mxu0 0
    %2462 = vmatprep.subr.bf16.mxu0 0
    %2463 = vmatpush1.bf16.msra.mxu0 0
    %2464 = vmatprep.subr.bf16.mxu0 0
    %2465 = vmatpush1.bf16.msra.mxu0 0
    %2466 = vmatprep.subr.bf16.mxu0 0
    %2467 = vmatpush1.bf16.msra.mxu0 0
    %2468 = vmatprep.subr.bf16.mxu0 0
    %2469 = vmatpush1.bf16.msra.mxu0 0
    %2470 = vmatprep.subr.bf16.mxu0 0
    %2471 = vmatpush1.bf16.msra.mxu0 0
    %2472 = vmatprep.mubr.bf16.mxu0 0
    %2473 = vmatmul.mubr.bf16.gmra.mrb[0].mxu0 %v2435
    %v2474 = vpop.f32.mrb[0].mxu0
    %v2475 = vadd.f32 0.0, %v2474
    %v2476 = vpop.f32.mrb[0].mxu0
    %v2477 = vpop.f32.mrb[0].mxu0
    %v2478 = vpop.f32.mrb[0].mxu0
    %2479 = vdwg.mxu0
    %v2481 = vsel %vm2056, %v2238, 0
    %v2484 = vsel %vm2252, %v1308, 0
    %2486 = vmatprep.subr.bf16.mxu0 0
    %2487 = vmatpush1.bf16.msra.mxu0 %v2484
    %2488 = vmatprep.subr.bf16.mxu0 0
    %2489 = vmatpush1.bf16.msra.mxu0 0
    %2490 = vmatprep.subr.bf16.mxu0 0
    %2491 = vmatpush1.bf16.msra.mxu0 0
    %2492 = vmatprep.subr.bf16.mxu0 0
    %2493 = vmatpush1.bf16.msra.mxu0 0
    %2494 = vmatprep.subr.bf16.mxu0 0
    %2495 = vmatpush1.bf16.msra.mxu0 0
    %2496 = vmatprep.subr.bf16.mxu0 0
    %2497 = vmatpush1.bf16.msra.mxu0 0
    %2498 = vmatprep.subr.bf16.mxu0 0
    %2499 = vmatpush1.bf16.msra.mxu0 0
    %2500 = vmatprep.subr.bf16.mxu0 0
    %2501 = vmatpush1.bf16.msra.mxu0 0
    %2502 = vmatprep.subr.bf16.mxu0 0
    %2503 = vmatpush1.bf16.msra.mxu0 0
    %2504 = vmatprep.subr.bf16.mxu0 0
    %2505 = vmatpush1.bf16.msra.mxu0 0
    %2506 = vmatprep.subr.bf16.mxu0 0
    %2507 = vmatpush1.bf16.msra.mxu0 0
    %2508 = vmatprep.subr.bf16.mxu0 0
    %2509 = vmatpush1.bf16.msra.mxu0 0
    %2510 = vmatprep.subr.bf16.mxu0 0
    %2511 = vmatpush1.bf16.msra.mxu0 0
    %2512 = vmatprep.subr.bf16.mxu0 0
    %2513 = vmatpush1.bf16.msra.mxu0 0
    %2514 = vmatprep.subr.bf16.mxu0 0
    %2515 = vmatpush1.bf16.msra.mxu0 0
    %2516 = vmatprep.subr.bf16.mxu0 0
    %2517 = vmatpush1.bf16.msra.mxu0 0
    %2518 = vmatprep.mubr.bf16.mxu0 0
    %2519 = vmatmul.mubr.bf16.gmra.mrb[0].mxu0 %v2481
    %v2520 = vpop.f32.mrb[0].mxu0
    %v2521 = vadd.f32 0.0, %v2520
    %v2522 = vpop.f32.mrb[0].mxu0
    %v2523 = vpop.f32.mrb[0].mxu0
    %v2524 = vpop.f32.mrb[0].mxu0
    %2525 = vdwg.mxu0
    %v2527 = vsel %vm2056, %v2239, 0
    %v2530 = vsel %vm2252, %v1309, 0
    %2532 = vmatprep.subr.bf16.mxu0 0
    %2533 = vmatpush1.bf16.msra.mxu0 %v2530
    %2534 = vmatprep.subr.bf16.mxu0 0
    %2535 = vmatpush1.bf16.msra.mxu0 0
    %2536 = vmatprep.subr.bf16.mxu0 0
    %2537 = vmatpush1.bf16.msra.mxu0 0
    %2538 = vmatprep.subr.bf16.mxu0 0
    %2539 = vmatpush1.bf16.msra.mxu0 0
    %2540 = vmatprep.subr.bf16.mxu0 0
    %2541 = vmatpush1.bf16.msra.mxu0 0
    %2542 = vmatprep.subr.bf16.mxu0 0
    %2543 = vmatpush1.bf16.msra.mxu0 0
    %2544 = vmatprep.subr.bf16.mxu0 0
    %2545 = vmatpush1.bf16.msra.mxu0 0
    %2546 = vmatprep.subr.bf16.mxu0 0
    %2547 = vmatpush1.bf16.msra.mxu0 0
    %2548 = vmatprep.subr.bf16.mxu0 0
    %2549 = vmatpush1.bf16.msra.mxu0 0
    %2550 = vmatprep.subr.bf16.mxu0 0
    %2551 = vmatpush1.bf16.msra.mxu0 0
    %2552 = vmatprep.subr.bf16.mxu0 0
    %2553 = vmatpush1.bf16.msra.mxu0 0
    %2554 = vmatprep.subr.bf16.mxu0 0
    %2555 = vmatpush1.bf16.msra.mxu0 0
    %2556 = vmatprep.subr.bf16.mxu0 0
    %2557 = vmatpush1.bf16.msra.mxu0 0
    %2558 = vmatprep.subr.bf16.mxu0 0
    %2559 = vmatpush1.bf16.msra.mxu0 0
    %2560 = vmatprep.subr.bf16.mxu0 0
    %2561 = vmatpush1.bf16.msra.mxu0 0
    %2562 = vmatprep.subr.bf16.mxu0 0
    %2563 = vmatpush1.bf16.msra.mxu0 0
    %2564 = vmatprep.mubr.bf16.mxu0 0
    %2565 = vmatmul.mubr.bf16.gmra.mrb[0].mxu0 %v2527
    %v2566 = vpop.f32.mrb[0].mxu0
    %v2567 = vadd.f32 0.0, %v2566
    %v2568 = vpop.f32.mrb[0].mxu0
    %v2569 = vpop.f32.mrb[0].mxu0
    %v2570 = vpop.f32.mrb[0].mxu0
    %2571 = vdwg.mxu0
    %v2573 = vsel %vm2056, %v2240, 0
    %v2576 = vsel %vm2252, %v1310, 0
    %2578 = vmatprep.subr.bf16.mxu0 0
    %2579 = vmatpush1.bf16.msra.mxu0 %v2576
    %2580 = vmatprep.subr.bf16.mxu0 0
    %2581 = vmatpush1.bf16.msra.mxu0 0
    %2582 = vmatprep.subr.bf16.mxu0 0
    %2583 = vmatpush1.bf16.msra.mxu0 0
    %2584 = vmatprep.subr.bf16.mxu0 0
    %2585 = vmatpush1.bf16.msra.mxu0 0
    %2586 = vmatprep.subr.bf16.mxu0 0
    %2587 = vmatpush1.bf16.msra.mxu0 0
    %2588 = vmatprep.subr.bf16.mxu0 0
    %2589 = vmatpush1.bf16.msra.mxu0 0
    %2590 = vmatprep.subr.bf16.mxu0 0
    %2591 = vmatpush1.bf16.msra.mxu0 0
    %2592 = vmatprep.subr.bf16.mxu0 0
    %2593 = vmatpush1.bf16.msra.mxu0 0
    %2594 = vmatprep.subr.bf16.mxu0 0
    %2595 = vmatpush1.bf16.msra.mxu0 0
    %2596 = vmatprep.subr.bf16.mxu0 0
    %2597 = vmatpush1.bf16.msra.mxu0 0
    %2598 = vmatprep.subr.bf16.mxu0 0
    %2599 = vmatpush1.bf16.msra.mxu0 0
    %2600 = vmatprep.subr.bf16.mxu0 0
    %2601 = vmatpush1.bf16.msra.mxu0 0
    %2602 = vmatprep.subr.bf16.mxu0 0
    %2603 = vmatpush1.bf16.msra.mxu0 0
    %2604 = vmatprep.subr.bf16.mxu0 0
    %2605 = vmatpush1.bf16.msra.mxu0 0
    %2606 = vmatprep.subr.bf16.mxu0 0
    %2607 = vmatpush1.bf16.msra.mxu0 0
    %2608 = vmatprep.subr.bf16.mxu0 0
    %2609 = vmatpush1.bf16.msra.mxu0 0
    %2610 = vmatprep.mubr.bf16.mxu0 0
    %2611 = vmatmul.mubr.bf16.gmra.mrb[0].mxu0 %v2573
    %v2612 = vpop.f32.mrb[0].mxu0
    %v2613 = vadd.f32 0.0, %v2612
    %v2614 = vpop.f32.mrb[0].mxu0
    %v2615 = vpop.f32.mrb[0].mxu0
    %v2616 = vpop.f32.mrb[0].mxu0
    %2617 = vdwg.mxu0
    %v2619 = vsel %vm2056, %v2241, 0
    %v2622 = vsel %vm2252, %v1311, 0
    %2624 = vmatprep.subr.bf16.mxu0 0
    %2625 = vmatpush1.bf16.msra.mxu0 %v2622
    %2626 = vmatprep.subr.bf16.mxu0 0
    %2627 = vmatpush1.bf16.msra.mxu0 0
    %2628 = vmatprep.subr.bf16.mxu0 0
    %2629 = vmatpush1.bf16.msra.mxu0 0
    %2630 = vmatprep.subr.bf16.mxu0 0
    %2631 = vmatpush1.bf16.msra.mxu0 0
    %2632 = vmatprep.subr.bf16.mxu0 0
    %2633 = vmatpush1.bf16.msra.mxu0 0
    %2634 = vmatprep.subr.bf16.mxu0 0
    %2635 = vmatpush1.bf16.msra.mxu0 0
    %2636 = vmatprep.subr.bf16.mxu0 0
    %2637 = vmatpush1.bf16.msra.mxu0 0
    %2638 = vmatprep.subr.bf16.mxu0 0
    %2639 = vmatpush1.bf16.msra.mxu0 0
    %2640 = vmatprep.subr.bf16.mxu0 0
    %2641 = vmatpush1.bf16.msra.mxu0 0
    %2642 = vmatprep.subr.bf16.mxu0 0
    %2643 = vmatpush1.bf16.msra.mxu0 0
    %2644 = vmatprep.subr.bf16.mxu0 0
    %2645 = vmatpush1.bf16.msra.mxu0 0
    %2646 = vmatprep.subr.bf16.mxu0 0
    %2647 = vmatpush1.bf16.msra.mxu0 0
    %2648 = vmatprep.subr.bf16.mxu0 0
    %2649 = vmatpush1.bf16.msra.mxu0 0
    %2650 = vmatprep.subr.bf16.mxu0 0
    %2651 = vmatpush1.bf16.msra.mxu0 0
    %2652 = vmatprep.subr.bf16.mxu0 0
    %2653 = vmatpush1.bf16.msra.mxu0 0
    %2654 = vmatprep.subr.bf16.mxu0 0
    %2655 = vmatpush1.bf16.msra.mxu0 0
    %2656 = vmatprep.mubr.bf16.mxu0 0
    %2657 = vmatmul.mubr.bf16.gmra.mrb[0].mxu0 %v2619
    %v2658 = vpop.f32.mrb[0].mxu0
    %v2659 = vadd.f32 0.0, %v2658
    %v2660 = vpop.f32.mrb[0].mxu0
    %v2661 = vpop.f32.mrb[0].mxu0
    %v2662 = vpop.f32.mrb[0].mxu0
    %2663 = vdwg.mxu0
    %v2665 = vsel %vm2056, %v2242, 0
    %v2668 = vsel %vm2252, %v1312, 0
    %2670 = vmatprep.subr.bf16.mxu0 0
    %2671 = vmatpush1.bf16.msra.mxu0 %v2668
    %2672 = vmatprep.subr.bf16.mxu0 0
    %2673 = vmatpush1.bf16.msra.mxu0 0
    %2674 = vmatprep.subr.bf16.mxu0 0
    %2675 = vmatpush1.bf16.msra.mxu0 0
    %2676 = vmatprep.subr.bf16.mxu0 0
    %2677 = vmatpush1.bf16.msra.mxu0 0
    %2678 = vmatprep.subr.bf16.mxu0 0
    %2679 = vmatpush1.bf16.msra.mxu0 0
    %2680 = vmatprep.subr.bf16.mxu0 0
    %2681 = vmatpush1.bf16.msra.mxu0 0
    %2682 = vmatprep.subr.bf16.mxu0 0
    %2683 = vmatpush1.bf16.msra.mxu0 0
    %2684 = vmatprep.subr.bf16.mxu0 0
    %2685 = vmatpush1.bf16.msra.mxu0 0
    %2686 = vmatprep.subr.bf16.mxu0 0
    %2687 = vmatpush1.bf16.msra.mxu0 0
    %2688 = vmatprep.subr.bf16.mxu0 0
    %2689 = vmatpush1.bf16.msra.mxu0 0
    %2690 = vmatprep.subr.bf16.mxu0 0
    %2691 = vmatpush1.bf16.msra.mxu0 0
    %2692 = vmatprep.subr.bf16.mxu0 0
    %2693 = vmatpush1.bf16.msra.mxu0 0
    %2694 = vmatprep.subr.bf16.mxu0 0
    %2695 = vmatpush1.bf16.msra.mxu0 0
    %2696 = vmatprep.subr.bf16.mxu0 0
    %2697 = vmatpush1.bf16.msra.mxu0 0
    %2698 = vmatprep.subr.bf16.mxu0 0
    %2699 = vmatpush1.bf16.msra.mxu0 0
    %2700 = vmatprep.subr.bf16.mxu0 0
    %2701 = vmatpush1.bf16.msra.mxu0 0
    %2702 = vmatprep.mubr.bf16.mxu0 0
    %2703 = vmatmul.mubr.bf16.gmra.mrb[0].mxu0 %v2665
    %v2704 = vpop.f32.mrb[0].mxu0
    %v2705 = vadd.f32 0.0, %v2704
    %v2706 = vpop.f32.mrb[0].mxu0
    %v2707 = vpop.f32.mrb[0].mxu0
    %v2708 = vpop.f32.mrb[0].mxu0
    %2709 = vdwg.mxu0
    %v2711 = vsel %vm2056, %v2243, 0
    %v2714 = vsel %vm2252, %v1313, 0
    %2716 = vmatprep.subr.bf16.mxu0 0
    %2717 = vmatpush1.bf16.msra.mxu0 %v2714
    %2718 = vmatprep.subr.bf16.mxu0 0
    %2719 = vmatpush1.bf16.msra.mxu0 0
    %2720 = vmatprep.subr.bf16.mxu0 0
    %2721 = vmatpush1.bf16.msra.mxu0 0
    %2722 = vmatprep.subr.bf16.mxu0 0
    %2723 = vmatpush1.bf16.msra.mxu0 0
    %2724 = vmatprep.subr.bf16.mxu0 0
    %2725 = vmatpush1.bf16.msra.mxu0 0
    %2726 = vmatprep.subr.bf16.mxu0 0
    %2727 = vmatpush1.bf16.msra.mxu0 0
    %2728 = vmatprep.subr.bf16.mxu0 0
    %2729 = vmatpush1.bf16.msra.mxu0 0
    %2730 = vmatprep.subr.bf16.mxu0 0
    %2731 = vmatpush1.bf16.msra.mxu0 0
    %2732 = vmatprep.subr.bf16.mxu0 0
    %2733 = vmatpush1.bf16.msra.mxu0 0
    %2734 = vmatprep.subr.bf16.mxu0 0
    %2735 = vmatpush1.bf16.msra.mxu0 0
    %2736 = vmatprep.subr.bf16.mxu0 0
    %2737 = vmatpush1.bf16.msra.mxu0 0
    %2738 = vmatprep.subr.bf16.mxu0 0
    %2739 = vmatpush1.bf16.msra.mxu0 0
    %2740 = vmatprep.subr.bf16.mxu0 0
    %2741 = vmatpush1.bf16.msra.mxu0 0
    %2742 = vmatprep.subr.bf16.mxu0 0
    %2743 = vmatpush1.bf16.msra.mxu0 0
    %2744 = vmatprep.subr.bf16.mxu0 0
    %2745 = vmatpush1.bf16.msra.mxu0 0
    %2746 = vmatprep.subr.bf16.mxu0 0
    %2747 = vmatpush1.bf16.msra.mxu0 0
    %2748 = vmatprep.mubr.bf16.mxu0 0
    %2749 = vmatmul.mubr.bf16.gmra.mrb[0].mxu0 %v2711
    %v2750 = vpop.f32.mrb[0].mxu0
    %v2751 = vadd.f32 0.0, %v2750
    %v2752 = vpop.f32.mrb[0].mxu0
    %v2753 = vpop.f32.mrb[0].mxu0
    %v2754 = vpop.f32.mrb[0].mxu0
    %2755 = vdwg.mxu0
    %v2757 = vsel %vm2056, %v2244, 0
    %v2760 = vsel %vm2252, %v1314, 0
    %2762 = vmatprep.subr.bf16.mxu0 0
    %2763 = vmatpush1.bf16.msra.mxu0 %v2760
    %2764 = vmatprep.subr.bf16.mxu0 0
    %2765 = vmatpush1.bf16.msra.mxu0 0
    %2766 = vmatprep.subr.bf16.mxu0 0
    %2767 = vmatpush1.bf16.msra.mxu0 0
    %2768 = vmatprep.subr.bf16.mxu0 0
    %2769 = vmatpush1.bf16.msra.mxu0 0
    %2770 = vmatprep.subr.bf16.mxu0 0
    %2771 = vmatpush1.bf16.msra.mxu0 0
    %2772 = vmatprep.subr.bf16.mxu0 0
    %2773 = vmatpush1.bf16.msra.mxu0 0
    %2774 = vmatprep.subr.bf16.mxu0 0
    %2775 = vmatpush1.bf16.msra.mxu0 0
    %2776 = vmatprep.subr.bf16.mxu0 0
    %2777 = vmatpush1.bf16.msra.mxu0 0
    %2778 = vmatprep.subr.bf16.mxu0 0
    %2779 = vmatpush1.bf16.msra.mxu0 0
    %2780 = vmatprep.subr.bf16.mxu0 0
    %2781 = vmatpush1.bf16.msra.mxu0 0
    %2782 = vmatprep.subr.bf16.mxu0 0
    %2783 = vmatpush1.bf16.msra.mxu0 0
    %2784 = vmatprep.subr.bf16.mxu0 0
    %2785 = vmatpush1.bf16.msra.mxu0 0
    %2786 = vmatprep.subr.bf16.mxu0 0
    %2787 = vmatpush1.bf16.msra.mxu0 0
    %2788 = vmatprep.subr.bf16.mxu0 0
    %2789 = vmatpush1.bf16.msra.mxu0 0
    %2790 = vmatprep.subr.bf16.mxu0 0
    %2791 = vmatpush1.bf16.msra.mxu0 0
    %2792 = vmatprep.subr.bf16.mxu0 0
    %2793 = vmatpush1.bf16.msra.mxu0 0
    %2794 = vmatprep.mubr.bf16.mxu0 0
    %2795 = vmatmul.mubr.bf16.gmra.mrb[0].mxu0 %v2757
    %v2796 = vpop.f32.mrb[0].mxu0
    %v2797 = vadd.f32 0.0, %v2796
    %v2798 = vpop.f32.mrb[0].mxu0
    %v2799 = vpop.f32.mrb[0].mxu0
    %v2800 = vpop.f32.mrb[0].mxu0
    %2801 = vdwg.mxu0
    %v2803 = vsel %vm2056, %v2245, 0
    %v2806 = vsel %vm2252, %v1315, 0
    %2808 = vmatprep.subr.bf16.mxu0 0
    %2809 = vmatpush1.bf16.msra.mxu0 %v2806
    %2810 = vmatprep.subr.bf16.mxu0 0
    %2811 = vmatpush1.bf16.msra.mxu0 0
    %2812 = vmatprep.subr.bf16.mxu0 0
    %2813 = vmatpush1.bf16.msra.mxu0 0
    %2814 = vmatprep.subr.bf16.mxu0 0
    %2815 = vmatpush1.bf16.msra.mxu0 0
    %2816 = vmatprep.subr.bf16.mxu0 0
    %2817 = vmatpush1.bf16.msra.mxu0 0
    %2818 = vmatprep.subr.bf16.mxu0 0
    %2819 = vmatpush1.bf16.msra.mxu0 0
    %2820 = vmatprep.subr.bf16.mxu0 0
    %2821 = vmatpush1.bf16.msra.mxu0 0
    %2822 = vmatprep.subr.bf16.mxu0 0
    %2823 = vmatpush1.bf16.msra.mxu0 0
    %2824 = vmatprep.subr.bf16.mxu0 0
    %2825 = vmatpush1.bf16.msra.mxu0 0
    %2826 = vmatprep.subr.bf16.mxu0 0
    %2827 = vmatpush1.bf16.msra.mxu0 0
    %2828 = vmatprep.subr.bf16.mxu0 0
    %2829 = vmatpush1.bf16.msra.mxu0 0
    %2830 = vmatprep.subr.bf16.mxu0 0
    %2831 = vmatpush1.bf16.msra.mxu0 0
    %2832 = vmatprep.subr.bf16.mxu0 0
    %2833 = vmatpush1.bf16.msra.mxu0 0
    %2834 = vmatprep.subr.bf16.mxu0 0
    %2835 = vmatpush1.bf16.msra.mxu0 0
    %2836 = vmatprep.subr.bf16.mxu0 0
    %2837 = vmatpush1.bf16.msra.mxu0 0
    %2838 = vmatprep.subr.bf16.mxu0 0
    %2839 = vmatpush1.bf16.msra.mxu0 0
    %2840 = vmatprep.mubr.bf16.mxu0 0
    %2841 = vmatmul.mubr.bf16.gmra.mrb[0].mxu0 %v2803
    %v2842 = vpop.f32.mrb[0].mxu0
    %v2843 = vadd.f32 0.0, %v2842
    %v2844 = vpop.f32.mrb[0].mxu0
    %v2845 = vpop.f32.mrb[0].mxu0
    %v2846 = vpop.f32.mrb[0].mxu0
    %2847 = vdwg.mxu0
    %v2849 = vsel %vm2056, %v2246, 0
    %v2852 = vsel %vm2252, %v1316, 0
    %2854 = vmatprep.subr.bf16.mxu0 0
    %2855 = vmatpush1.bf16.msra.mxu0 %v2852
    %2856 = vmatprep.subr.bf16.mxu0 0
    %2857 = vmatpush1.bf16.msra.mxu0 0
    %2858 = vmatprep.subr.bf16.mxu0 0
    %2859 = vmatpush1.bf16.msra.mxu0 0
    %2860 = vmatprep.subr.bf16.mxu0 0
    %2861 = vmatpush1.bf16.msra.mxu0 0
    %2862 = vmatprep.subr.bf16.mxu0 0
    %2863 = vmatpush1.bf16.msra.mxu0 0
    %2864 = vmatprep.subr.bf16.mxu0 0
    %2865 = vmatpush1.bf16.msra.mxu0 0
    %2866 = vmatprep.subr.bf16.mxu0 0
    %2867 = vmatpush1.bf16.msra.mxu0 0
    %2868 = vmatprep.subr.bf16.mxu0 0
    %2869 = vmatpush1.bf16.msra.mxu0 0
    %2870 = vmatprep.subr.bf16.mxu0 0
    %2871 = vmatpush1.bf16.msra.mxu0 0
    %2872 = vmatprep.subr.bf16.mxu0 0
    %2873 = vmatpush1.bf16.msra.mxu0 0
    %2874 = vmatprep.subr.bf16.mxu0 0
    %2875 = vmatpush1.bf16.msra.mxu0 0
    %2876 = vmatprep.subr.bf16.mxu0 0
    %2877 = vmatpush1.bf16.msra.mxu0 0
    %2878 = vmatprep.subr.bf16.mxu0 0
    %2879 = vmatpush1.bf16.msra.mxu0 0
    %2880 = vmatprep.subr.bf16.mxu0 0
    %2881 = vmatpush1.bf16.msra.mxu0 0
    %2882 = vmatprep.subr.bf16.mxu0 0
    %2883 = vmatpush1.bf16.msra.mxu0 0
    %2884 = vmatprep.subr.bf16.mxu0 0
    %2885 = vmatpush1.bf16.msra.mxu0 0
    %2886 = vmatprep.mubr.bf16.mxu0 0
    %2887 = vmatmul.mubr.bf16.gmra.mrb[0].mxu0 %v2849
    %v2888 = vpop.f32.mrb[0].mxu0
    %v2889 = vadd.f32 0.0, %v2888
    %v2890 = vpop.f32.mrb[0].mxu0
    %v2891 = vpop.f32.mrb[0].mxu0
    %v2892 = vpop.f32.mrb[0].mxu0
    %2893 = vdwg.mxu0
    %v2895 = vsel %vm2056, %v2247, 0
    %v2898 = vsel %vm2252, %v1317, 0
    %2900 = vmatprep.subr.bf16.mxu0 0
    %2901 = vmatpush1.bf16.msra.mxu0 %v2898
    %2902 = vmatprep.subr.bf16.mxu0 0
    %2903 = vmatpush1.bf16.msra.mxu0 0
    %2904 = vmatprep.subr.bf16.mxu0 0
    %2905 = vmatpush1.bf16.msra.mxu0 0
    %2906 = vmatprep.subr.bf16.mxu0 0
    %2907 = vmatpush1.bf16.msra.mxu0 0
    %2908 = vmatprep.subr.bf16.mxu0 0
    %2909 = vmatpush1.bf16.msra.mxu0 0
    %2910 = vmatprep.subr.bf16.mxu0 0
    %2911 = vmatpush1.bf16.msra.mxu0 0
    %2912 = vmatprep.subr.bf16.mxu0 0
    %2913 = vmatpush1.bf16.msra.mxu0 0
    %2914 = vmatprep.subr.bf16.mxu0 0
    %2915 = vmatpush1.bf16.msra.mxu0 0
    %2916 = vmatprep.subr.bf16.mxu0 0
    %2917 = vmatpush1.bf16.msra.mxu0 0
    %2918 = vmatprep.subr.bf16.mxu0 0
    %2919 = vmatpush1.bf16.msra.mxu0 0
    %2920 = vmatprep.subr.bf16.mxu0 0
    %2921 = vmatpush1.bf16.msra.mxu0 0
    %2922 = vmatprep.subr.bf16.mxu0 0
    %2923 = vmatpush1.bf16.msra.mxu0 0
    %2924 = vmatprep.subr.bf16.mxu0 0
    %2925 = vmatpush1.bf16.msra.mxu0 0
    %2926 = vmatprep.subr.bf16.mxu0 0
    %2927 = vmatpush1.bf16.msra.mxu0 0
    %2928 = vmatprep.subr.bf16.mxu0 0
    %2929 = vmatpush1.bf16.msra.mxu0 0
    %2930 = vmatprep.subr.bf16.mxu0 0
    %2931 = vmatpush1.bf16.msra.mxu0 0
    %2932 = vmatprep.mubr.bf16.mxu0 0
    %2933 = vmatmul.mubr.bf16.gmra.mrb[0].mxu0 %v2895
    %v2934 = vpop.f32.mrb[0].mxu0
    %v2935 = vadd.f32 0.0, %v2934
    %v2936 = vpop.f32.mrb[0].mxu0
    %v2937 = vpop.f32.mrb[0].mxu0
    %v2938 = vpop.f32.mrb[0].mxu0
    %2939 = vdwg.mxu0
    %v2941 = vsel %vm2056, %v2248, 0
    %v2944 = vsel %vm2252, %v1318, 0
    %2946 = vmatprep.subr.bf16.mxu0 0
    %2947 = vmatpush1.bf16.msra.mxu0 %v2944
    %2948 = vmatprep.subr.bf16.mxu0 0
    %2949 = vmatpush1.bf16.msra.mxu0 0
    %2950 = vmatprep.subr.bf16.mxu0 0
    %2951 = vmatpush1.bf16.msra.mxu0 0
    %2952 = vmatprep.subr.bf16.mxu0 0
    %2953 = vmatpush1.bf16.msra.mxu0 0
    %2954 = vmatprep.subr.bf16.mxu0 0
    %2955 = vmatpush1.bf16.msra.mxu0 0
    %2956 = vmatprep.subr.bf16.mxu0 0
    %2957 = vmatpush1.bf16.msra.mxu0 0
    %2958 = vmatprep.subr.bf16.mxu0 0
    %2959 = vmatpush1.bf16.msra.mxu0 0
    %2960 = vmatprep.subr.bf16.mxu0 0
    %2961 = vmatpush1.bf16.msra.mxu0 0
    %2962 = vmatprep.subr.bf16.mxu0 0
    %2963 = vmatpush1.bf16.msra.mxu0 0
    %2964 = vmatprep.subr.bf16.mxu0 0
    %2965 = vmatpush1.bf16.msra.mxu0 0
    %2966 = vmatprep.subr.bf16.mxu0 0
    %2967 = vmatpush1.bf16.msra.mxu0 0
    %2968 = vmatprep.subr.bf16.mxu0 0
    %2969 = vmatpush1.bf16.msra.mxu0 0
    %2970 = vmatprep.subr.bf16.mxu0 0
    %2971 = vmatpush1.bf16.msra.mxu0 0
    %2972 = vmatprep.subr.bf16.mxu0 0
    %2973 = vmatpush1.bf16.msra.mxu0 0
    %2974 = vmatprep.subr.bf16.mxu0 0
    %2975 = vmatpush1.bf16.msra.mxu0 0
    %2976 = vmatprep.subr.bf16.mxu0 0
    %2977 = vmatpush1.bf16.msra.mxu0 0
    %2978 = vmatprep.mubr.bf16.mxu0 0
    %2979 = vmatmul.mubr.bf16.gmra.mrb[0].mxu0 %v2941
    %v2980 = vpop.f32.mrb[0].mxu0
    %v2981 = vadd.f32 0.0, %v2980
    %v2982 = vpop.f32.mrb[0].mxu0
    %v2983 = vpop.f32.mrb[0].mxu0
    %v2984 = vpop.f32.mrb[0].mxu0
    %2985 = vdwg.mxu0
    %v2986 = vpack.c.bf16 %v2291, %v2291
    %v2987 = vpack.c.bf16 %v2337, %v2337
    %v2988 = vpack.c.bf16 %v2383, %v2383
    %v2989 = vpack.c.bf16 %v2429, %v2429
    %v2990 = vpack.c.bf16 %v2475, %v2475
    %v2991 = vpack.c.bf16 %v2521, %v2521
    %v2992 = vpack.c.bf16 %v2567, %v2567
    %v2993 = vpack.c.bf16 %v2613, %v2613
    %v2994 = vpack.c.bf16 %v2659, %v2659
    %v2995 = vpack.c.bf16 %v2705, %v2705
    %v2996 = vpack.c.bf16 %v2751, %v2751
    %v2997 = vpack.c.bf16 %v2797, %v2797
    %v2998 = vpack.c.bf16 %v2843, %v2843
    %v2999 = vpack.c.bf16 %v2889, %v2889
    %v3000 = vpack.c.bf16 %v2935, %v2935
    %v3001 = vpack.c.bf16 %v2981, %v2981
    %v3002 = vcombine.low %v2986, %v2994
    %v3004 = vunpack.c.l.s4 1983009808
    %v3005 = vunpack.c.0.s8 %v3004
    %v3006 = vlaneseq
    %v3007 = vshrl.u32 %v3006, 7
    %v3008 = vsub.s32 %v3005, %v3007
    %v3009 = vrot.slane %v3002, %v3008
    %v3010 = vcombine.low %v2990, %v2998
    %v3012 = vunpack.c.l.s4 1983009808
    %v3013 = vunpack.c.0.s8 %v3012
    %v3014 = vlaneseq
    %v3015 = vshrl.u32 %v3014, 7
    %v3016 = vsub.s32 %v3013, %v3015
    %v3017 = vrot.slane %v3010, %v3016
    %v3018 = vcombine.low %v3009, %v3017
    %v3019 = vcombine.high %v3009, %v3017
    %v3021 = vunpack.c.l.s4 1934713408
    %v3022 = vunpack.c.0.s8 %v3021
    %v3023 = vlaneseq
    %v3024 = vshrl.u32 %v3023, 7
    %v3025 = vsub.s32 %v3022, %v3024
    %v3026 = vrot.slane %v3018, %v3025
    %v3028 = vunpack.c.l.s4 1934713408
    %v3029 = vunpack.c.0.s8 %v3028
    %v3030 = vlaneseq
    %v3031 = vshrl.u32 %v3030, 7
    %v3032 = vsub.s32 %v3029, %v3031
    %v3033 = vrot.slane %v3019, %v3032
    %v3034 = vcombine.high %v3026, 0
    %v3035 = vcombine.high %v3033, 0
    %v3036 = vcombine.low %v2988, %v2996
    %v3038 = vunpack.c.l.s4 1983009808
    %v3039 = vunpack.c.0.s8 %v3038
    %v3040 = vlaneseq
    %v3041 = vshrl.u32 %v3040, 7
    %v3042 = vsub.s32 %v3039, %v3041
    %v3043 = vrot.slane %v3036, %v3042
    %v3044 = vcombine.low %v2992, %v3000
    %v3046 = vunpack.c.l.s4 1983009808
    %v3047 = vunpack.c.0.s8 %v3046
    %v3048 = vlaneseq
    %v3049 = vshrl.u32 %v3048, 7
    %v3050 = vsub.s32 %v3047, %v3049
    %v3051 = vrot.slane %v3044, %v3050
    %v3052 = vcombine.low %v3043, %v3051
    %v3053 = vcombine.high %v3043, %v3051
    %v3055 = vunpack.c.l.s4 1934713408
    %v3056 = vunpack.c.0.s8 %v3055
    %v3057 = vlaneseq
    %v3058 = vshrl.u32 %v3057, 7
    %v3059 = vsub.s32 %v3056, %v3058
    %v3060 = vrot.slane %v3052, %v3059
    %v3062 = vunpack.c.l.s4 1934713408
    %v3063 = vunpack.c.0.s8 %v3062
    %v3064 = vlaneseq
    %v3065 = vshrl.u32 %v3064, 7
    %v3066 = vsub.s32 %v3063, %v3065
    %v3067 = vrot.slane %v3053, %v3066
    %v3068 = vcombine.high %v3060, 0
    %v3069 = vcombine.high %v3067, 0
    %v3070 = vcombine.low %v2987, %v2995
    %v3072 = vunpack.c.l.s4 1983009808
    %v3073 = vunpack.c.0.s8 %v3072
    %v3074 = vlaneseq
    %v3075 = vshrl.u32 %v3074, 7
    %v3076 = vsub.s32 %v3073, %v3075
    %v3077 = vrot.slane %v3070, %v3076
    %v3078 = vcombine.low %v2991, %v2999
    %v3080 = vunpack.c.l.s4 1983009808
    %v3081 = vunpack.c.0.s8 %v3080
    %v3082 = vlaneseq
    %v3083 = vshrl.u32 %v3082, 7
    %v3084 = vsub.s32 %v3081, %v3083
    %v3085 = vrot.slane %v3078, %v3084
    %v3086 = vcombine.low %v3077, %v3085
    %v3087 = vcombine.high %v3077, %v3085
    %v3089 = vunpack.c.l.s4 1934713408
    %v3090 = vunpack.c.0.s8 %v3089
    %v3091 = vlaneseq
    %v3092 = vshrl.u32 %v3091, 7
    %v3093 = vsub.s32 %v3090, %v3092
    %v3094 = vrot.slane %v3086, %v3093
    %v3096 = vunpack.c.l.s4 1934713408
    %v3097 = vunpack.c.0.s8 %v3096
    %v3098 = vlaneseq
    %v3099 = vshrl.u32 %v3098, 7
    %v3100 = vsub.s32 %v3097, %v3099
    %v3101 = vrot.slane %v3087, %v3100
    %v3102 = vcombine.high %v3094, 0
    %v3103 = vcombine.high %v3101, 0
    %v3104 = vcombine.low %v2989, %v2997
    %v3106 = vunpack.c.l.s4 1983009808
    %v3107 = vunpack.c.0.s8 %v3106
    %v3108 = vlaneseq
    %v3109 = vshrl.u32 %v3108, 7
    %v3110 = vsub.s32 %v3107, %v3109
    %v3111 = vrot.slane %v3104, %v3110
    %v3112 = vcombine.low %v2993, %v3001
    %v3114 = vunpack.c.l.s4 1983009808
    %v3115 = vunpack.c.0.s8 %v3114
    %v3116 = vlaneseq
    %v3117 = vshrl.u32 %v3116, 7
    %v3118 = vsub.s32 %v3115, %v3117
    %v3119 = vrot.slane %v3112, %v3118
    %v3120 = vcombine.low %v3111, %v3119
    %v3121 = vcombine.high %v3111, %v3119
    %v3123 = vunpack.c.l.s4 1934713408
    %v3124 = vunpack.c.0.s8 %v3123
    %v3125 = vlaneseq
    %v3126 = vshrl.u32 %v3125, 7
    %v3127 = vsub.s32 %v3124, %v3126
    %v3128 = vrot.slane %v3120, %v3127
    %v3130 = vunpack.c.l.s4 1934713408
    %v3131 = vunpack.c.0.s8 %v3130
    %v3132 = vlaneseq
    %v3133 = vshrl.u32 %v3132, 7
    %v3134 = vsub.s32 %v3131, %v3133
    %v3135 = vrot.slane %v3121, %v3134
    %v3136 = vcombine.high %v3128, 0
    %v3137 = vcombine.high %v3135, 0
    %v3140 = vpack.i.b16 %v3060, %v3026
    %v3142 = vshrl.u32 %v3026, 16
    %v3143 = vshrl.u32 %v3060, 16
    %v3144 = vpack.i.b16 %v3143, %v3142
    %v3148 = vpack.i.b16 %v3068, %v3034
    %v3150 = vshrl.u32 %v3034, 16
    %v3151 = vshrl.u32 %v3068, 16
    %v3152 = vpack.i.b16 %v3151, %v3150
    %v3156 = vpack.i.b16 %v3067, %v3033
    %v3158 = vshrl.u32 %v3033, 16
    %v3159 = vshrl.u32 %v3067, 16
    %v3160 = vpack.i.b16 %v3159, %v3158
    %v3164 = vpack.i.b16 %v3069, %v3035
    %v3166 = vshrl.u32 %v3035, 16
    %v3167 = vshrl.u32 %v3069, 16
    %v3168 = vpack.i.b16 %v3167, %v3166
    %v3172 = vpack.i.b16 %v3128, %v3094
    %v3174 = vshrl.u32 %v3094, 16
    %v3175 = vshrl.u32 %v3128, 16
    %v3176 = vpack.i.b16 %v3175, %v3174
    %v3180 = vpack.i.b16 %v3136, %v3102
    %v3182 = vshrl.u32 %v3102, 16
    %v3183 = vshrl.u32 %v3136, 16
    %v3184 = vpack.i.b16 %v3183, %v3182
    %v3188 = vpack.i.b16 %v3135, %v3101
    %v3190 = vshrl.u32 %v3101, 16
    %v3191 = vshrl.u32 %v3135, 16
    %v3192 = vpack.i.b16 %v3191, %v3190
    %v3196 = vpack.i.b16 %v3137, %v3103
    %v3198 = vshrl.u32 %v3103, 16
    %v3199 = vshrl.u32 %v3137, 16
    %v3200 = vpack.i.b16 %v3199, %v3198
    %v3202 = vcombine.low %v3140, %v3156
    %v3204 = vunpack.c.l.s4 1983009808
    %v3205 = vunpack.c.0.s8 %v3204
    %v3206 = vlaneseq
    %v3207 = vshrl.u32 %v3206, 7
    %v3208 = vsub.s32 %v3205, %v3207
    %v3209 = vrot.slane %v3202, %v3208
    %v3210 = vcombine.low %v3148, %v3164
    %v3212 = vunpack.c.l.s4 1983009808
    %v3213 = vunpack.c.0.s8 %v3212
    %v3214 = vlaneseq
    %v3215 = vshrl.u32 %v3214, 7
    %v3216 = vsub.s32 %v3213, %v3215
    %v3217 = vrot.slane %v3210, %v3216
    %v3218 = vcombine.low %v3209, %v3217
    %v3219 = vcombine.high %v3209, %v3217
    %v3221 = vunpack.c.l.s4 1934713408
    %v3222 = vunpack.c.0.s8 %v3221
    %v3223 = vlaneseq
    %v3224 = vshrl.u32 %v3223, 7
    %v3225 = vsub.s32 %v3222, %v3224
    %v3226 = vrot.slane %v3218, %v3225
    %v3228 = vunpack.c.l.s4 1934713408
    %v3229 = vunpack.c.0.s8 %v3228
    %v3230 = vlaneseq
    %v3231 = vshrl.u32 %v3230, 7
    %v3232 = vsub.s32 %v3229, %v3231
    %v3233 = vrot.slane %v3219, %v3232
    %v3234 = vcombine.high %v3226, 0
    %v3235 = vcombine.high %v3233, 0
    %v3236 = vcombine.low %v3144, %v3160
    %v3238 = vunpack.c.l.s4 1983009808
    %v3239 = vunpack.c.0.s8 %v3238
    %v3240 = vlaneseq
    %v3241 = vshrl.u32 %v3240, 7
    %v3242 = vsub.s32 %v3239, %v3241
    %v3243 = vrot.slane %v3236, %v3242
    %v3244 = vcombine.low %v3152, %v3168
    %v3246 = vunpack.c.l.s4 1983009808
    %v3247 = vunpack.c.0.s8 %v3246
    %v3248 = vlaneseq
    %v3249 = vshrl.u32 %v3248, 7
    %v3250 = vsub.s32 %v3247, %v3249
    %v3251 = vrot.slane %v3244, %v3250
    %v3252 = vcombine.low %v3243, %v3251
    %v3253 = vcombine.high %v3243, %v3251
    %v3255 = vunpack.c.l.s4 1934713408
    %v3256 = vunpack.c.0.s8 %v3255
    %v3257 = vlaneseq
    %v3258 = vshrl.u32 %v3257, 7
    %v3259 = vsub.s32 %v3256, %v3258
    %v3260 = vrot.slane %v3252, %v3259
    %v3262 = vunpack.c.l.s4 1934713408
    %v3263 = vunpack.c.0.s8 %v3262
    %v3264 = vlaneseq
    %v3265 = vshrl.u32 %v3264, 7
    %v3266 = vsub.s32 %v3263, %v3265
    %v3267 = vrot.slane %v3253, %v3266
    %v3268 = vcombine.high %v3260, 0
    %v3269 = vcombine.high %v3267, 0
    %v3270 = vcombine.low %v3172, %v3188
    %v3272 = vunpack.c.l.s4 1983009808
    %v3273 = vunpack.c.0.s8 %v3272
    %v3274 = vlaneseq
    %v3275 = vshrl.u32 %v3274, 7
    %v3276 = vsub.s32 %v3273, %v3275
    %v3277 = vrot.slane %v3270, %v3276
    %v3278 = vcombine.low %v3180, %v3196
    %v3280 = vunpack.c.l.s4 1983009808
    %v3281 = vunpack.c.0.s8 %v3280
    %v3282 = vlaneseq
    %v3283 = vshrl.u32 %v3282, 7
    %v3284 = vsub.s32 %v3281, %v3283
    %v3285 = vrot.slane %v3278, %v3284
    %v3286 = vcombine.low %v3277, %v3285
    %v3287 = vcombine.high %v3277, %v3285
    %v3289 = vunpack.c.l.s4 1934713408
    %v3290 = vunpack.c.0.s8 %v3289
    %v3291 = vlaneseq
    %v3292 = vshrl.u32 %v3291, 7
    %v3293 = vsub.s32 %v3290, %v3292
    %v3294 = vrot.slane %v3286, %v3293
    %v3296 = vunpack.c.l.s4 1934713408
    %v3297 = vunpack.c.0.s8 %v3296
    %v3298 = vlaneseq
    %v3299 = vshrl.u32 %v3298, 7
    %v3300 = vsub.s32 %v3297, %v3299
    %v3301 = vrot.slane %v3287, %v3300
    %v3302 = vcombine.high %v3294, 0
    %v3303 = vcombine.high %v3301, 0
    %v3304 = vcombine.low %v3176, %v3192
    %v3306 = vunpack.c.l.s4 1983009808
    %v3307 = vunpack.c.0.s8 %v3306
    %v3308 = vlaneseq
    %v3309 = vshrl.u32 %v3308, 7
    %v3310 = vsub.s32 %v3307, %v3309
    %v3311 = vrot.slane %v3304, %v3310
    %v3312 = vcombine.low %v3184, %v3200
    %v3314 = vunpack.c.l.s4 1983009808
    %v3315 = vunpack.c.0.s8 %v3314
    %v3316 = vlaneseq
    %v3317 = vshrl.u32 %v3316, 7
    %v3318 = vsub.s32 %v3315, %v3317
    %v3319 = vrot.slane %v3312, %v3318
    %v3320 = vcombine.low %v3311, %v3319
    %v3321 = vcombine.high %v3311, %v3319
    %v3323 = vunpack.c.l.s4 1934713408
    %v3324 = vunpack.c.0.s8 %v3323
    %v3325 = vlaneseq
    %v3326 = vshrl.u32 %v3325, 7
    %v3327 = vsub.s32 %v3324, %v3326
    %v3328 = vrot.slane %v3320, %v3327
    %v3330 = vunpack.c.l.s4 1934713408
    %v3331 = vunpack.c.0.s8 %v3330
    %v3332 = vlaneseq
    %v3333 = vshrl.u32 %v3332, 7
    %v3334 = vsub.s32 %v3331, %v3333
    %v3335 = vrot.slane %v3321, %v3334
    %v3336 = vcombine.high %v3328, 0
    %v3337 = vcombine.high %v3335, 0
    %v3340 = vpack.i.b16 %v3260, %v3226
    %v3341 = vshrl.u32 %v3226, 16
    %v3342 = vshrl.u32 %v3260, 16
    %v3343 = vpack.i.b16 %v3342, %v3341
    %v3346 = vpack.i.b16 %v3268, %v3234
    %v3347 = vshrl.u32 %v3234, 16
    %v3348 = vshrl.u32 %v3268, 16
    %v3349 = vpack.i.b16 %v3348, %v3347
    %v3352 = vpack.i.b16 %v3267, %v3233
    %v3353 = vshrl.u32 %v3233, 16
    %v3354 = vshrl.u32 %v3267, 16
    %v3355 = vpack.i.b16 %v3354, %v3353
    %v3358 = vpack.i.b16 %v3269, %v3235
    %v3359 = vshrl.u32 %v3235, 16
    %v3360 = vshrl.u32 %v3269, 16
    %v3361 = vpack.i.b16 %v3360, %v3359
    %v3364 = vpack.i.b16 %v3328, %v3294
    %v3365 = vshrl.u32 %v3294, 16
    %v3366 = vshrl.u32 %v3328, 16
    %v3367 = vpack.i.b16 %v3366, %v3365
    %v3370 = vpack.i.b16 %v3336, %v3302
    %v3371 = vshrl.u32 %v3302, 16
    %v3372 = vshrl.u32 %v3336, 16
    %v3373 = vpack.i.b16 %v3372, %v3371
    %v3376 = vpack.i.b16 %v3335, %v3301
    %v3377 = vshrl.u32 %v3301, 16
    %v3378 = vshrl.u32 %v3335, 16
    %v3379 = vpack.i.b16 %v3378, %v3377
    %v3382 = vpack.i.b16 %v3337, %v3303
    %v3383 = vshrl.u32 %v3303, 16
    %v3384 = vshrl.u32 %v3337, 16
    %v3385 = vpack.i.b16 %v3384, %v3383
    %v3386 = vunpack.c.l.b16 %v3340
    %v3387 = vunpack.c.l.b16 %v3364
    %v3388 = vpack.c.b16 %v3387, %v3386
    %v3389 = vunpack.c.l.b16 %v3343
    %v3390 = vunpack.c.l.b16 %v3367
    %v3391 = vpack.c.b16 %v3390, %v3389
    %3392 = vrot.lane.b32.xlu0 %v3391, 16
    %v3393 = vpop.permute.xlu0 %3392
    %v3394 = vunpack.c.l.b16 %v3346
    %v3395 = vunpack.c.l.b16 %v3370
    %v3396 = vpack.c.b16 %v3395, %v3394
    %3397 = vrot.lane.b32.xlu0 %v3396, 32
    %v3398 = vpop.permute.xlu0 %3397
    %v3399 = vunpack.c.l.b16 %v3349
    %v3400 = vunpack.c.l.b16 %v3373
    %v3401 = vpack.c.b16 %v3400, %v3399
    %3402 = vrot.lane.b32.xlu0 %v3401, 48
    %v3403 = vpop.permute.xlu0 %3402
    %v3404 = vunpack.c.l.b16 %v3352
    %v3405 = vunpack.c.l.b16 %v3376
    %v3406 = vpack.c.b16 %v3405, %v3404
    %3407 = vrot.lane.b32.xlu0 %v3406, 64
    %v3408 = vpop.permute.xlu0 %3407
    %v3409 = vunpack.c.l.b16 %v3355
    %v3410 = vunpack.c.l.b16 %v3379
    %v3411 = vpack.c.b16 %v3410, %v3409
    %3412 = vrot.lane.b32.xlu0 %v3411, 80
    %v3413 = vpop.permute.xlu0 %3412
    %v3414 = vunpack.c.l.b16 %v3358
    %v3415 = vunpack.c.l.b16 %v3382
    %v3416 = vpack.c.b16 %v3415, %v3414
    %3417 = vrot.lane.b32.xlu0 %v3416, 96
    %v3418 = vpop.permute.xlu0 %3417
    %v3419 = vunpack.c.l.b16 %v3361
    %v3420 = vunpack.c.l.b16 %v3385
    %v3421 = vpack.c.b16 %v3420, %v3419
    %3422 = vrot.lane.b32.xlu0 %v3421, 112
    %v3423 = vpop.permute.xlu0 %3422
    %v3426 = vsel %vm1319, %v3388, %v3393
    %v3428 = vsel %vm103, %v3426, %v3398
    %vm3429 = vcmask 392192
    %v3431 = vsel %vm3429, %v3428, %v3403
    %vm3432 = vcmask 523264
    %v3434 = vsel %vm3432, %v3431, %v3408
    %vm3435 = vcmask 654336
    %v3437 = vsel %vm3435, %v3434, %v3413
    %vm3438 = vcmask 785408
    %v3440 = vsel %vm3438, %v3437, %v3418
    %vm3441 = vcmask 916480
    %v3443 = vsel %vm3441, %v3440, %v3423
    %v3445 = vld [vmem:[#allocation7] sm:$0xf]
    %v3446 = vld [vmem:[#allocation7 + $0x4] sm:$0xf]
    %v3447 = vld [vmem:[#allocation7 + $0x8] sm:$0xf]
    %v3448 = vld [vmem:[#allocation7 + $0xc] sm:$0xf]
    %v3449 = vld [vmem:[%s3] sm:$0x1]
    %v3451 = vlaneseq
    %v3452 = vshrl.u32 %v3451, 7
    %v3453 = vsub.s32 0, %v3452
    %v3454 = vrot.slane %v3449, %v3453
    %v3460 = vunpack.c.l.b16 %v3445
    %v3461 = vunpack.c.l.b16 %v3446
    %v3462 = vunpack.c.l.b16 %v3447
    %v3463 = vunpack.c.l.b16 %v3448
    %v3464 = vpack.c.b16 %v3461, %v3460
    %v3465 = vpack.c.b16 %v3463, %v3462
    %3468 = vmatprep.subr.bf16.mxu0 0
    %3469 = vmatpush1.bf16.xpose.msra.mxu0 %v3464
    %3470 = vmatprep.subr.bf16.mxu0 0
    %3471 = vmatpush1.bf16.xpose.msra.mxu0 %v3465
    %3472 = vmatprep.subr.bf16.mxu0 0
    %3473 = vmatpush1.bf16.xpose.msra.mxu0 0
    %3474 = vmatprep.subr.bf16.mxu0 0
    %3475 = vmatpush1.bf16.xpose.msra.mxu0 0
    %3476 = vmatprep.subr.bf16.mxu0 0
    %3477 = vmatpush1.bf16.xpose.msra.mxu0 0
    %3478 = vmatprep.subr.bf16.mxu0 0
    %3479 = vmatpush1.bf16.xpose.msra.mxu0 0
    %3480 = vmatprep.subr.bf16.mxu0 0
    %3481 = vmatpush1.bf16.xpose.msra.mxu0 0
    %3482 = vmatprep.subr.bf16.mxu0 0
    %3483 = vmatpush1.bf16.xpose.msra.mxu0 0
    %3484 = vmatprep.subr.bf16.mxu0 0
    %3485 = vmatpush1.bf16.xpose.msra.mxu0 0
    %3486 = vmatprep.subr.bf16.mxu0 0
    %3487 = vmatpush1.bf16.xpose.msra.mxu0 0
    %3488 = vmatprep.subr.bf16.mxu0 0
    %3489 = vmatpush1.bf16.xpose.msra.mxu0 0
    %3490 = vmatprep.subr.bf16.mxu0 0
    %3491 = vmatpush1.bf16.xpose.msra.mxu0 0
    %3492 = vmatprep.subr.bf16.mxu0 0
    %3493 = vmatpush1.bf16.xpose.msra.mxu0 0
    %3494 = vmatprep.subr.bf16.mxu0 0
    %3495 = vmatpush1.bf16.xpose.msra.mxu0 0
    %3496 = vmatprep.subr.bf16.mxu0 0
    %3497 = vmatpush1.bf16.xpose.msra.mxu0 0
    %3498 = vmatprep.subr.bf16.mxu0 0
    %3499 = vmatpush1.bf16.xpose.msra.mxu0 0
    %3500 = vmatprep.mubr.bf16.mxu0 0
    %3501 = vmatmul.mubr.bf16.gmra.mrb[0].mxu0 %v3443
    %v3502 = vpop.f32.mrb[0].mxu0
    %v3503 = vadd.f32 %v3454, %v3502
    %v3504 = vpop.f32.mrb[0].mxu0
    %v3505 = vpop.f32.mrb[0].mxu0
    %v3506 = vadd.f32 %v3454, %v3505
    %v3507 = vpop.f32.mrb[0].mxu0
    %3508 = vdwg.mxu0
    %3509 = vst.msk [vmem:[#allocation8] sm:$0xff] %vm103, %v3503
    %3510 = vst.msk [vmem:[#allocation8 + $0x8] sm:$0xff] %vm103, %v3506
    // Predicated region
    $region30: #{tpu_custom_call.1} parent=1 // pred_check
      _
    $region31: #{tpu_custom_call.1} parent=1 // pred_check_branch
      %3512 = sbr.rel (0) target = $region33
    $region32: #{tpu_custom_call.1} parent=1 // pred_region
      %s3514 = ssub.s32 256, 256
      %3515 = vsyncadd [#allocation4], %s3514
      %s3516 = sshll.u32 [#allocation8], 4
      %s3517 = int_to_ptr.vmem [resolvable:$true] %s3516
      %3522 = dma.vmem_to_hbm [thread:$0]  %s3517, 256, %s4, [#allocation4], 128, 128, 8
    $region33: #{tpu_custom_call.1} parent=1 // pred_fallthru
      _
    // Predicated region
    $region34: #{tpu_custom_call.1} parent=1 // pred_check
      _
    $region35: #{tpu_custom_call.1} parent=1 // pred_check_branch
      %3524 = sbr.rel (0) target = $region37
    $region36: #{tpu_custom_call.1} parent=1 // pred_region
      %3525 = dma.done [#allocation4], 256
    $region37: #{tpu_custom_call.1} parent=1 // pred_fallthru
      _
    %3526 = vsyncpa [#allocation3], 1
    %3527 = vsyncpa [#allocation6], 1
    %3528 = vsyncpa [#allocation4], 1

</llo_original>
